<compile_context>
chip_gen: v5e
topology: v5e:2x2
jax: 0.10.0
libtpu: 0.0.40
codegen_flags: <defaults>
</compile_context>

<pallas_src>
import functools

import jax
import jax.numpy as jnp
from jax import lax
from jax.experimental import pallas as pl
from jax.experimental.pallas import tpu as pltpu

LN_EPS = 1e-5


def _round_up(x, m):
    return (x + m - 1) // m * m


# ----------------------------------------------------------------------------
# Fused kernel: all subgraph layers + final DLAMax for one block of agents.
# One grid step processes TG agent-groups = TG * pack agents (pack agents share
# one 128-lane row).
# ----------------------------------------------------------------------------
def _make_fused_kernel(num_layers, tg, steps, hidden, pack):
    rows = tg * steps
    ph = pack * hidden
    n_params = 4 + 5 * (num_layers - 1)   # layer0: W,b,g,be ; layer>=1: Wa,Wb,b,g,be

    def kernel(*refs):
        x_ref, m_ref, e_ref, mm_ref = refs[:4]
        p_refs = refs[4:4 + n_params]
        o_hlm_ref, o_hmax_ref = refs[4 + n_params], refs[5 + n_params]

        x = x_ref[...]                                       # [rows, pack*D]  f32
        # 0/1 mask broadcast to every channel lane of its agent via a tiny
        # block-diagonal-ones matmul on the (idle) MXU; values are 0/1 so the
        # result is exact at any matmul precision.
        if pack == 1:
            mask_full = m_ref[...]                           # [rows, 1] (broadcasts)
        else:
            mask_full = jnp.dot(m_ref[...], e_ref[...],
                                preferred_element_type=jnp.float32)   # [rows, ph]
        mm = mm_ref[...]                                     # [ph, ph] block-diag 1/H

        h = None        # current shortcut activations, [rows, ph]
        hmax = None     # masked per-agent step-max of previous layer, [tg, ph]
        idx = 0
        for l in range(num_layers):
            if l == 0:
                w_ref = p_refs[idx]; idx += 1
                z = jnp.dot(x, w_ref[...], preferred_element_type=jnp.float32)
            else:
                # concat([h, repeat(hmax)]) @ W == h @ W[:H] + repeat(hmax @ W[H:])
                wa_ref, wb_ref = p_refs[idx], p_refs[idx + 1]; idx += 2
                za = jnp.dot(h, wa_ref[...],
                             preferred_element_type=jnp.float32)       # [rows, ph]
                zb = jnp.dot(hmax, wb_ref[...],
                             preferred_element_type=jnp.float32)       # [tg, ph]
                z = (za.reshape(tg, steps, ph) + zb[:, None, :]).reshape(rows, ph)

            b_ref, g_ref, be_ref = p_refs[idx:idx + 3]; idx += 3

            # Linear bias -> LayerNorm over each agent's `hidden` channels.
            # Segmented mean/var via block-diagonal (1/H) matmuls: the lane
            # reductions go to the idle MXU instead of the XLU.  HIGHEST keeps
            # full f32 accuracy for the statistics.
            z = z + b_ref[...]
            mu = jnp.dot(z, mm, precision=lax.Precision.HIGHEST,
                         preferred_element_type=jnp.float32)
            d = z - mu
            var = jnp.dot(d * d, mm, precision=lax.Precision.HIGHEST,
                          preferred_element_type=jnp.float32)
            zn = d * lax.rsqrt(var + LN_EPS)
            h = jnp.maximum(zn * g_ref[...] + be_ref[...], 0.0)        # shortcut

            # Masked DLAMax over steps.  h >= 0, so multiplying by the 0/1 mask
            # is exactly the reference's relu(h + (mask - 1) * 1e7).
            hmax = jnp.max((h * mask_full).reshape(tg, steps, ph), axis=1)  # [tg, ph]

        # Final DLAMax over steps of concat([shortcut, repeat(hmax)]):
        #   first H channels per agent -> step-max of the unmasked shortcut
        #   second H channels          -> hmax (constant along steps)
        # Written as two lane-dense slabs (no in-kernel lane concat).
        o_hlm_ref[...] = jnp.max(h.reshape(tg, steps, ph), axis=1).astype(o_hlm_ref.dtype)
        o_hmax_ref[...] = hmax.astype(o_hmax_ref.dtype)

    return kernel


# ----------------------------------------------------------------------------
# Module wrapper
# ----------------------------------------------------------------------------
def init_params(key, in_channels, hidden_unit, num_subgraph_layers):
    params = []
    cin = in_channels
    for _ in range(num_subgraph_layers):
        key, kw, kb = jax.random.split(key, 3)
        w = jax.random.normal(kw, (cin, hidden_unit), jnp.float32) * 0.1
        b = jax.random.normal(kb, (1, hidden_unit), jnp.float32) * 0.01
        gamma = jnp.ones((1, hidden_unit), jnp.float32)
        beta = jnp.zeros((1, hidden_unit), jnp.float32)
        params.append((w, b, gamma, beta))
        cin = hidden_unit * 2
    return params


@functools.partial(jax.jit, static_argnames=("agents_per_block",))
def agent_vec_encoder(agent, mask, params, *, agents_per_block=256):
    """agent: [B, A, S, D] float32, mask: [B, A, S, 1] float32 (0/1).
    Returns: [B, A, 1, 2*hidden_unit]."""
    B, A, S, D = agent.shape
    N = B * A
    H = params[0][0].shape[1]
    L = len(params)

    # Pack P agents side-by-side on the 128-lane axis (full lane occupancy
    # for hidden < 128; degenerates to the plain layout for hidden >= 128).
    P = max(1, 128 // H)
    unit = 8 * P                              # keeps TG = TN // P a multiple of 8

    # TN agents per grid step; capped so grid >= 2 for large N (both v7x TCs
    # get work).  Sweep agents_per_block (256-512) for throughput.
    TN = min(agents_per_block, _round_up(-(-N // 2), unit))
    TN = _round_up(max(TN, unit), unit)
    N_pad = _round_up(N, TN)
    grid = N_pad // TN
    NG, TG = N_pad // P, TN // P
    PH, PD = P * H, P * D

    x = agent.reshape(N, S, D).astype(jnp.float32)
    m = mask.reshape(N, S).astype(jnp.float32)
    if N_pad != N:
        x = jnp.pad(x, ((0, N_pad - N), (0, 0), (0, 0)))
        m = jnp.pad(m, ((0, N_pad - N), (0, 0)))      # padded agents fully masked

    # Lane-pack: row = (agent_group, step), lanes = (agent_in_group, channel).
    x_p = x.reshape(NG, P, S, D).transpose(0, 2, 1, 3).reshape(NG * S, PD)
    m_p = m.reshape(NG, P, S).transpose(0, 2, 1).reshape(NG * S, P)

    eye_p = jnp.eye(P, dtype=jnp.float32)
    e_mat = jnp.kron(eye_p, jnp.ones((1, H), jnp.float32))             # [P, PH]
    m_mat = jnp.kron(eye_p, jnp.full((H, H), 1.0 / H, jnp.float32))    # [PH, PH]

    flat_params, param_specs = [], []

    def add(t):
        flat_params.append(t)
        # tiny & grid-invariant -> stays resident in VMEM
        param_specs.append(pl.BlockSpec(t.shape, lambda i: (0, 0)))

    for l, (w, b, g, be) in enumerate(params):
        if l == 0:
            add(jnp.kron(eye_p, w))                    # [P*D, PH] block-diag
        else:
            add(jnp.kron(eye_p, w[:H, :]))             # shortcut half  [PH, PH]
            add(jnp.kron(eye_p, w[H:, :]))             # pooled half    [PH, PH]
        add(jnp.tile(b, (1, P)))
        add(jnp.tile(g, (1, P)))
        add(jnp.tile(be, (1, P)))

    kernel = _make_fused_kernel(L, TG, S, H, P)

    rows_p = NG * S
    flops = (2 * rows_p * PD * PH                      # layer-0 linear
             + 4 * rows_p * PH * PH * max(L - 1, 0)    # split matmuls (layers >= 1)
             + 4 * rows_p * PH * PH * L                # LN mean/var matmuls
             + 2 * rows_p * P * PH)                    # mask lane expansion
    param_bytes = 4 * (e_mat.size + m_mat.size + sum(int(t.size) for t in flat_params))
    cost = pl.CostEstimate(
        flops=int(flops),
        transcendentals=int(rows_p * PH * L),
        bytes_accessed=int(4 * (x_p.size + m_p.size) + param_bytes + 8 * NG * PH),
    )

    hlm, hmax = pl.pallas_call(
        kernel,
        out_shape=(jax.ShapeDtypeStruct((NG, PH), jnp.float32),
                   jax.ShapeDtypeStruct((NG, PH), jnp.float32)),
        grid=(grid,),
        in_specs=[
            pl.BlockSpec((TG * S, PD), lambda i: (i, 0)),   # packed agent features
            pl.BlockSpec((TG * S, P), lambda i: (i, 0)),    # packed 0/1 mask
            pl.BlockSpec((P, PH), lambda i: (0, 0)),        # mask lane-expand matrix
            pl.BlockSpec((PH, PH), lambda i: (0, 0)),       # LN segmented-mean matrix
            *param_specs,
        ],
        out_specs=[pl.BlockSpec((TG, PH), lambda i: (i, 0)),
                   pl.BlockSpec((TG, PH), lambda i: (i, 0))],
        compiler_params=pltpu.CompilerParams(dimension_semantics=("parallel",)),
        cost_estimate=cost,
    )(x_p, m_p, e_mat, m_mat, *flat_params)

    # Unpack lanes -> per-agent [N, 2H] (wrapper-side layout plumbing, tiny).
    pooled = jnp.concatenate([hlm.reshape(NG, P, H), hmax.reshape(NG, P, H)], axis=-1)
    return pooled.reshape(N_pad, 2 * H)[:N].reshape(B, A, 1, 2 * H)


# Pure-JAX reference (mirrors the PyTorch forward exactly, in [B,A,S,D] layout).
def reference(agent, mask, params):
    x = agent
    m = (mask - 1.0) * 1e7
    for (w, b, g, be) in params:
        h = x @ w + b[0]
        mu = jnp.mean(h, axis=-1, keepdims=True)
        var = jnp.mean((h - mu) ** 2, axis=-1, keepdims=True)
        h = (h - mu) / jnp.sqrt(var + LN_EPS) * g[0] + be[0]
        h = jax.nn.relu(h)                                   # MLP output (shortcut)
        masked = jax.nn.relu(h + m)
        h_max = jnp.max(masked, axis=2, keepdims=True)       # DLAMax over steps
        h_max = jnp.broadcast_to(h_max, h.shape)             # DLARepeat
        x = jnp.concatenate([h, h_max], axis=-1)
    return jnp.max(x, axis=2, keepdims=True)                 # final DLAMax


if __name__ == "__main__":
    B, A, S = 2, 4, 8                 # batch, max_agent_num, steps
    in_channels, hidden_unit = 16, 32
    num_subgraph_layers = 2

    key = jax.random.PRNGKey(0)
    key, ka, km, kp = jax.random.split(key, 4)
    agent = jax.random.normal(ka, (B, A, S, in_channels), jnp.float32)
    mask = (jax.random.uniform(km, (B, A, S, 1)) > 0.3).astype(jnp.float32)
    params = init_params(kp, in_channels, hidden_unit, num_subgraph_layers)

    out = jax.block_until_ready(agent_vec_encoder(agent, mask, params))
    ref = reference(agent, mask, params)
    assert out.shape == (B, A, 1, 2 * hidden_unit), out.shape
    assert jnp.allclose(out, ref, atol=1e-3, rtol=1e-3), float(jnp.max(jnp.abs(out - ref)))

    # Second check: multi-block grid with padding (N not a multiple of TN).
    B2, A2 = 3, 21                    # N = 63 -> TN = 32, grid = 2, 1 padded agent
    key, ka2, km2 = jax.random.split(key, 3)
    agent2 = jax.random.normal(ka2, (B2, A2, S, in_channels), jnp.float32)
    mask2 = (jax.random.uniform(km2, (B2, A2, S, 1)) > 0.3).astype(jnp.float32)
    out2 = jax.block_until_ready(
        agent_vec_encoder(agent2, mask2, params, agents_per_block=32))
    ref2 = reference(agent2, mask2, params)
    assert out2.shape == (B2, A2, 1, 2 * hidden_unit), out2.shape
    assert jnp.allclose(out2, ref2, atol=1e-3, rtol=1e-3), float(jnp.max(jnp.abs(out2 - ref2)))

    print("KERNEL_OK")
</pallas_src>

<mosaic_0001>
module attributes {stable_mosaic.version = 11 : i64} {
  func.func @kernel(%arg0: i32, %arg1: memref<64x64xf32, #tpu.memory_space<vmem>>, %arg2: memref<64x4xf32, #tpu.memory_space<vmem>>, %arg3: memref<4x128xf32, #tpu.memory_space<vmem>>, %arg4: memref<128x128xf32, #tpu.memory_space<vmem>>, %arg5: memref<64x128xf32, #tpu.memory_space<vmem>>, %arg6: memref<1x128xf32, #tpu.memory_space<vmem>>, %arg7: memref<1x128xf32, #tpu.memory_space<vmem>>, %arg8: memref<1x128xf32, #tpu.memory_space<vmem>>, %arg9: memref<128x128xf32, #tpu.memory_space<vmem>>, %arg10: memref<128x128xf32, #tpu.memory_space<vmem>>, %arg11: memref<1x128xf32, #tpu.memory_space<vmem>>, %arg12: memref<1x128xf32, #tpu.memory_space<vmem>>, %arg13: memref<1x128xf32, #tpu.memory_space<vmem>>, %arg14: memref<8x128xf32, #tpu.memory_space<vmem>>, %arg15: memref<8x128xf32, #tpu.memory_space<vmem>>) attributes {dimension_semantics = [#tpu.dimension_semantics<parallel>], iteration_bounds = array<i64: 1>, scalar_prefetch = 0 : i64, scratch_operands = 0 : i64, tpu.core_type = #tpu.core_type<tc>, window_params = [{transform_indices = @transform_0, window_bounds = array<i64: 64, 64>}, {transform_indices = @transform_1, window_bounds = array<i64: 64, 4>}, {pipeline_mode = #tpu.pipeline_mode<synchronous>, transform_indices = @transform_2, window_bounds = array<i64: 4, 128>}, {pipeline_mode = #tpu.pipeline_mode<synchronous>, transform_indices = @transform_3, window_bounds = array<i64: 128, 128>}, {pipeline_mode = #tpu.pipeline_mode<synchronous>, transform_indices = @transform_4, window_bounds = array<i64: 64, 128>}, {pipeline_mode = #tpu.pipeline_mode<synchronous>, transform_indices = @transform_5, window_bounds = array<i64: 1, 128>}, {pipeline_mode = #tpu.pipeline_mode<synchronous>, transform_indices = @transform_6, window_bounds = array<i64: 1, 128>}, {pipeline_mode = #tpu.pipeline_mode<synchronous>, transform_indices = @transform_7, window_bounds = array<i64: 1, 128>}, {pipeline_mode = #tpu.pipeline_mode<synchronous>, transform_indices = @transform_8, window_bounds = array<i64: 128, 128>}, {pipeline_mode = #tpu.pipeline_mode<synchronous>, transform_indices = @transform_9, window_bounds = array<i64: 128, 128>}, {pipeline_mode = #tpu.pipeline_mode<synchronous>, transform_indices = @transform_10, window_bounds = array<i64: 1, 128>}, {pipeline_mode = #tpu.pipeline_mode<synchronous>, transform_indices = @transform_11, window_bounds = array<i64: 1, 128>}, {pipeline_mode = #tpu.pipeline_mode<synchronous>, transform_indices = @transform_12, window_bounds = array<i64: 1, 128>}, {transform_indices = @transform_13, window_bounds = array<i64: 8, 128>}, {transform_indices = @transform_14, window_bounds = array<i64: 8, 128>}]} {
    %c0 = arith.constant 0 : index
    %c0_0 = arith.constant 0 : index
    %0 = vector.load %arg1[%c0, %c0_0] : memref<64x64xf32, #tpu.memory_space<vmem>>, vector<64x64xf32>
    %c0_1 = arith.constant 0 : index
    %c0_2 = arith.constant 0 : index
    %1 = vector.load %arg2[%c0_1, %c0_2] : memref<64x4xf32, #tpu.memory_space<vmem>>, vector<64x4xf32>
    %c0_3 = arith.constant 0 : index
    %c0_4 = arith.constant 0 : index
    %2 = vector.load %arg3[%c0_3, %c0_4] : memref<4x128xf32, #tpu.memory_space<vmem>>, vector<4x128xf32>
    %cst = arith.constant dense<0.000000e+00> : vector<64x128xf32>
    %3 = tpu.matmul %1, %2, %cst {dimension_numbers = #tpu.dot_dimension_numbers<[1], [0], [0], [1], [0, 0, 1, 1], [], []>} : vector<64x4xf32>, vector<4x128xf32>, vector<64x128xf32> -> vector<64x128xf32>
    %c0_5 = arith.constant 0 : index
    %c0_6 = arith.constant 0 : index
    %4 = vector.load %arg4[%c0_5, %c0_6] : memref<128x128xf32, #tpu.memory_space<vmem>>, vector<128x128xf32>
    %c0_7 = arith.constant 0 : index
    %c0_8 = arith.constant 0 : index
    %5 = vector.load %arg5[%c0_7, %c0_8] : memref<64x128xf32, #tpu.memory_space<vmem>>, vector<64x128xf32>
    %cst_9 = arith.constant dense<0.000000e+00> : vector<64x128xf32>
    %6 = tpu.matmul %0, %5, %cst_9 {dimension_numbers = #tpu.dot_dimension_numbers<[1], [0], [0], [1], [0, 0, 1, 1], [], []>} : vector<64x64xf32>, vector<64x128xf32>, vector<64x128xf32> -> vector<64x128xf32>
    %c0_10 = arith.constant 0 : index
    %c0_11 = arith.constant 0 : index
    %7 = vector.load %arg6[%c0_10, %c0_11] : memref<1x128xf32, #tpu.memory_space<vmem>>, vector<1x128xf32>
    %8 = vector.broadcast %7 : vector<1x128xf32> to vector<64x128xf32>
    %9 = arith.addf %6, %8 : vector<64x128xf32>
    %cst_12 = arith.constant dense<0.000000e+00> : vector<64x128xf32>
    %10 = tpu.matmul %9, %4, %cst_12 {dimension_numbers = #tpu.dot_dimension_numbers<[1], [0], [0], [1], [0, 0, 1, 1], [], []>, precision = #tpu.contract_precision<fp32>} : vector<64x128xf32>, vector<128x128xf32>, vector<64x128xf32> -> vector<64x128xf32>
    %11 = arith.subf %9, %10 : vector<64x128xf32>
    %12 = arith.mulf %11, %11 : vector<64x128xf32>
    %cst_13 = arith.constant dense<0.000000e+00> : vector<64x128xf32>
    %13 = tpu.matmul %12, %4, %cst_13 {dimension_numbers = #tpu.dot_dimension_numbers<[1], [0], [0], [1], [0, 0, 1, 1], [], []>, precision = #tpu.contract_precision<fp32>} : vector<64x128xf32>, vector<128x128xf32>, vector<64x128xf32> -> vector<64x128xf32>
    %cst_14 = arith.constant 9.99999974E-6 : f32
    %14 = vector.broadcast %cst_14 : f32 to vector<64x128xf32>
    %15 = arith.addf %13, %14 : vector<64x128xf32>
    %16 = math.rsqrt %15 : vector<64x128xf32>
    %17 = arith.mulf %11, %16 : vector<64x128xf32>
    %c0_15 = arith.constant 0 : index
    %c0_16 = arith.constant 0 : index
    %18 = vector.load %arg7[%c0_15, %c0_16] : memref<1x128xf32, #tpu.memory_space<vmem>>, vector<1x128xf32>
    %19 = vector.broadcast %18 : vector<1x128xf32> to vector<64x128xf32>
    %20 = arith.mulf %17, %19 : vector<64x128xf32>
    %c0_17 = arith.constant 0 : index
    %c0_18 = arith.constant 0 : index
    %21 = vector.load %arg8[%c0_17, %c0_18] : memref<1x128xf32, #tpu.memory_space<vmem>>, vector<1x128xf32>
    %22 = vector.broadcast %21 : vector<1x128xf32> to vector<64x128xf32>
    %23 = arith.addf %20, %22 : vector<64x128xf32>
    %cst_19 = arith.constant 0.000000e+00 : f32
    %24 = vector.broadcast %cst_19 : f32 to vector<64x128xf32>
    %25 = arith.maximumf %23, %24 : vector<64x128xf32>
    %26 = arith.mulf %25, %3 : vector<64x128xf32>
    %27 = vector.shape_cast %26 : vector<64x128xf32> to vector<8x8x128xf32>
    %cst_20 = arith.constant dense<0xFF800000> : vector<8x128xf32>
    %28 = vector.multi_reduction <maximumf>, %27, %cst_20 [1] : vector<8x8x128xf32> to vector<8x128xf32>
    %c0_21 = arith.constant 0 : index
    %c0_22 = arith.constant 0 : index
    %29 = vector.load %arg9[%c0_21, %c0_22] : memref<128x128xf32, #tpu.memory_space<vmem>>, vector<128x128xf32>
    %cst_23 = arith.constant dense<0.000000e+00> : vector<64x128xf32>
    %30 = tpu.matmul %25, %29, %cst_23 {dimension_numbers = #tpu.dot_dimension_numbers<[1], [0], [0], [1], [0, 0, 1, 1], [], []>} : vector<64x128xf32>, vector<128x128xf32>, vector<64x128xf32> -> vector<64x128xf32>
    %c0_24 = arith.constant 0 : index
    %c0_25 = arith.constant 0 : index
    %31 = vector.load %arg10[%c0_24, %c0_25] : memref<128x128xf32, #tpu.memory_space<vmem>>, vector<128x128xf32>
    %cst_26 = arith.constant dense<0.000000e+00> : vector<8x128xf32>
    %32 = tpu.matmul %28, %31, %cst_26 {dimension_numbers = #tpu.dot_dimension_numbers<[1], [0], [0], [1], [0, 0, 1, 1], [], []>} : vector<8x128xf32>, vector<128x128xf32>, vector<8x128xf32> -> vector<8x128xf32>
    %33 = vector.shape_cast %30 : vector<64x128xf32> to vector<8x8x128xf32>
    %34 = vector.shape_cast %32 : vector<8x128xf32> to vector<8x1x128xf32>
    %35 = vector.broadcast %34 : vector<8x1x128xf32> to vector<8x8x128xf32>
    %36 = arith.addf %33, %35 : vector<8x8x128xf32>
    %37 = vector.shape_cast %36 : vector<8x8x128xf32> to vector<64x128xf32>
    %c0_27 = arith.constant 0 : index
    %c0_28 = arith.constant 0 : index
    %38 = vector.load %arg11[%c0_27, %c0_28] : memref<1x128xf32, #tpu.memory_space<vmem>>, vector<1x128xf32>
    %39 = vector.broadcast %38 : vector<1x128xf32> to vector<64x128xf32>
    %40 = arith.addf %37, %39 : vector<64x128xf32>
    %cst_29 = arith.constant dense<0.000000e+00> : vector<64x128xf32>
    %41 = tpu.matmul %40, %4, %cst_29 {dimension_numbers = #tpu.dot_dimension_numbers<[1], [0], [0], [1], [0, 0, 1, 1], [], []>, precision = #tpu.contract_precision<fp32>} : vector<64x128xf32>, vector<128x128xf32>, vector<64x128xf32> -> vector<64x128xf32>
    %42 = arith.subf %40, %41 : vector<64x128xf32>
    %43 = arith.mulf %42, %42 : vector<64x128xf32>
    %cst_30 = arith.constant dense<0.000000e+00> : vector<64x128xf32>
    %44 = tpu.matmul %43, %4, %cst_30 {dimension_numbers = #tpu.dot_dimension_numbers<[1], [0], [0], [1], [0, 0, 1, 1], [], []>, precision = #tpu.contract_precision<fp32>} : vector<64x128xf32>, vector<128x128xf32>, vector<64x128xf32> -> vector<64x128xf32>
    %cst_31 = arith.constant 9.99999974E-6 : f32
    %45 = vector.broadcast %cst_31 : f32 to vector<64x128xf32>
    %46 = arith.addf %44, %45 : vector<64x128xf32>
    %47 = math.rsqrt %46 : vector<64x128xf32>
    %48 = arith.mulf %42, %47 : vector<64x128xf32>
    %c0_32 = arith.constant 0 : index
    %c0_33 = arith.constant 0 : index
    %49 = vector.load %arg12[%c0_32, %c0_33] : memref<1x128xf32, #tpu.memory_space<vmem>>, vector<1x128xf32>
    %50 = vector.broadcast %49 : vector<1x128xf32> to vector<64x128xf32>
    %51 = arith.mulf %48, %50 : vector<64x128xf32>
    %c0_34 = arith.constant 0 : index
    %c0_35 = arith.constant 0 : index
    %52 = vector.load %arg13[%c0_34, %c0_35] : memref<1x128xf32, #tpu.memory_space<vmem>>, vector<1x128xf32>
    %53 = vector.broadcast %52 : vector<1x128xf32> to vector<64x128xf32>
    %54 = arith.addf %51, %53 : vector<64x128xf32>
    %cst_36 = arith.constant 0.000000e+00 : f32
    %55 = vector.broadcast %cst_36 : f32 to vector<64x128xf32>
    %56 = arith.maximumf %54, %55 : vector<64x128xf32>
    %57 = arith.mulf %56, %3 : vector<64x128xf32>
    %58 = vector.shape_cast %57 : vector<64x128xf32> to vector<8x8x128xf32>
    %cst_37 = arith.constant dense<0xFF800000> : vector<8x128xf32>
    %59 = vector.multi_reduction <maximumf>, %58, %cst_37 [1] : vector<8x8x128xf32> to vector<8x128xf32>
    %60 = vector.shape_cast %56 : vector<64x128xf32> to vector<8x8x128xf32>
    %cst_38 = arith.constant dense<0xFF800000> : vector<8x128xf32>
    %61 = vector.multi_reduction <maximumf>, %60, %cst_38 [1] : vector<8x8x128xf32> to vector<8x128xf32>
    %c0_39 = arith.constant 0 : index
    %c0_40 = arith.constant 0 : index
    %62 = vector.load %arg14[%c0_39, %c0_40] : memref<8x128xf32, #tpu.memory_space<vmem>>, vector<8x128xf32>
    tpu.vector_store %arg14[%c0_39, %c0_40], %61 {strides = array<i32>} : memref<8x128xf32, #tpu.memory_space<vmem>>, vector<8x128xf32>,
    %c0_41 = arith.constant 0 : index
    %c0_42 = arith.constant 0 : index
    %63 = vector.load %arg15[%c0_41, %c0_42] : memref<8x128xf32, #tpu.memory_space<vmem>>, vector<8x128xf32>
    tpu.vector_store %arg15[%c0_41, %c0_42], %59 {strides = array<i32>} : memref<8x128xf32, #tpu.memory_space<vmem>>, vector<8x128xf32>,
    return
  }
  func.func @transform_0(%arg0: i32) -> (i32, i32) {
    %c0_i32 = arith.constant 0 : i32
    %c0_i32_0 = arith.constant 0 : i32
    return %arg0, %c0_i32 : i32, i32
  }
  func.func @transform_1(%arg0: i32) -> (i32, i32) {
    %c0_i32 = arith.constant 0 : i32
    %c0_i32_0 = arith.constant 0 : i32
    return %arg0, %c0_i32 : i32, i32
  }
  func.func @transform_2(%arg0: i32) -> (i32, i32) {
    %c0_i32 = arith.constant 0 : i32
    %c0_i32_0 = arith.constant 0 : i32
    %c0_i32_1 = arith.constant 0 : i32
    return %c0_i32, %c0_i32_0 : i32, i32
  }
  func.func @transform_3(%arg0: i32) -> (i32, i32) {
    %c0_i32 = arith.constant 0 : i32
    %c0_i32_0 = arith.constant 0 : i32
    %c0_i32_1 = arith.constant 0 : i32
    return %c0_i32, %c0_i32_0 : i32, i32
  }
  func.func @transform_4(%arg0: i32) -> (i32, i32) {
    %c0_i32 = arith.constant 0 : i32
    %c0_i32_0 = arith.constant 0 : i32
    %c0_i32_1 = arith.constant 0 : i32
    return %c0_i32, %c0_i32_0 : i32, i32
  }
  func.func @transform_5(%arg0: i32) -> (i32, i32) {
    %c0_i32 = arith.constant 0 : i32
    %c0_i32_0 = arith.constant 0 : i32
    %c0_i32_1 = arith.constant 0 : i32
    return %c0_i32, %c0_i32_0 : i32, i32
  }
  func.func @transform_6(%arg0: i32) -> (i32, i32) {
    %c0_i32 = arith.constant 0 : i32
    %c0_i32_0 = arith.constant 0 : i32
    %c0_i32_1 = arith.constant 0 : i32
    return %c0_i32, %c0_i32_0 : i32, i32
  }
  func.func @transform_7(%arg0: i32) -> (i32, i32) {
    %c0_i32 = arith.constant 0 : i32
    %c0_i32_0 = arith.constant 0 : i32
    %c0_i32_1 = arith.constant 0 : i32
    return %c0_i32, %c0_i32_0 : i32, i32
  }
  func.func @transform_8(%arg0: i32) -> (i32, i32) {
    %c0_i32 = arith.constant 0 : i32
    %c0_i32_0 = arith.constant 0 : i32
    %c0_i32_1 = arith.constant 0 : i32
    return %c0_i32, %c0_i32_0 : i32, i32
  }
  func.func @transform_9(%arg0: i32) -> (i32, i32) {
    %c0_i32 = arith.constant 0 : i32
    %c0_i32_0 = arith.constant 0 : i32
    %c0_i32_1 = arith.constant 0 : i32
    return %c0_i32, %c0_i32_0 : i32, i32
  }
  func.func @transform_10(%arg0: i32) -> (i32, i32) {
    %c0_i32 = arith.constant 0 : i32
    %c0_i32_0 = arith.constant 0 : i32
    %c0_i32_1 = arith.constant 0 : i32
    return %c0_i32, %c0_i32_0 : i32, i32
  }
  func.func @transform_11(%arg0: i32) -> (i32, i32) {
    %c0_i32 = arith.constant 0 : i32
    %c0_i32_0 = arith.constant 0 : i32
    %c0_i32_1 = arith.constant 0 : i32
    return %c0_i32, %c0_i32_0 : i32, i32
  }
  func.func @transform_12(%arg0: i32) -> (i32, i32) {
    %c0_i32 = arith.constant 0 : i32
    %c0_i32_0 = arith.constant 0 : i32
    %c0_i32_1 = arith.constant 0 : i32
    return %c0_i32, %c0_i32_0 : i32, i32
  }
  func.func @transform_13(%arg0: i32) -> (i32, i32) {
    %c0_i32 = arith.constant 0 : i32
    %c0_i32_0 = arith.constant 0 : i32
    return %arg0, %c0_i32 : i32, i32
  }
  func.func @transform_14(%arg0: i32) -> (i32, i32) {
    %c0_i32 = arith.constant 0 : i32
    %c0_i32_0 = arith.constant 0 : i32
    return %arg0, %c0_i32 : i32, i32
  }
}

</mosaic_0001>

<llo_original>
// kernel: agent_vec_encoder.1
$region0: #{agent_vec_encoder.1}
  #allocation0 [shape = 'u32[]', space=smem, size = 0x4, offset = 0x4, fixed_abs, tag = 'smem constant byte address 0x4 - core index']
  #allocation1 [shape = 'u32[72,128]{1,0:T(1,128)}', space=vmem, size = 0x9000, scoped, tag = 'internal scratch']
  %s0 = inlined_call_operand.vmem [shape: f32[64,64], index: 0, kind: input, shape index: {}]
  %s1 = inlined_call_operand.vmem [shape: f32[64,4], index: 1, kind: input, shape index: {}]
  %s2 = inlined_call_operand.vmem [shape: f32[4,128], index: 2, kind: input, shape index: {}]
  %s3 = inlined_call_operand.vmem [shape: f32[128,128], index: 3, kind: input, shape index: {}]
  %s4 = inlined_call_operand.vmem [shape: f32[64,128], index: 4, kind: input, shape index: {}]
  %s5 = inlined_call_operand.vmem [shape: f32[1,128], index: 5, kind: input, shape index: {}]
  %s6 = inlined_call_operand.vmem [shape: f32[1,128], index: 6, kind: input, shape index: {}]
  %s7 = inlined_call_operand.vmem [shape: f32[1,128], index: 7, kind: input, shape index: {}]
  %s8 = inlined_call_operand.vmem [shape: f32[128,128], index: 8, kind: input, shape index: {}]
  %s9 = inlined_call_operand.vmem [shape: f32[128,128], index: 9, kind: input, shape index: {}]
  %s10 = inlined_call_operand.vmem [shape: f32[1,128], index: 10, kind: input, shape index: {}]
  %s11 = inlined_call_operand.vmem [shape: f32[1,128], index: 11, kind: input, shape index: {}]
  %s12 = inlined_call_operand.vmem [shape: f32[1,128], index: 12, kind: input, shape index: {}]
  %s13 = inlined_call_operand.vmem [shape: f32[8,128], index: 13, kind: output, shape index: {0}]
  %s14 = inlined_call_operand.vmem [shape: f32[8,128], index: 14, kind: output, shape index: {1}]
  %15 = xla_tuple %s13, %s14
  %s16 = sld [smem:[#allocation0]]
  $region70: #{agent_vec_encoder.1} parent=0
    _
  %s18 = ssub.s32 1, %s16
  %s19 = scalar_select 0, %s18, %s16
  // Predicated region
  $region2: #{agent_vec_encoder.1} parent=0 // pred_check
    _
  $region3: #{agent_vec_encoder.1} parent=0 // pred_check_branch
    %21 = sbr.rel (0) target = $region5
  $region4: #{agent_vec_encoder.1} parent=0 // pred_region
    _
  $region5: #{agent_vec_encoder.1} parent=0 // pred_fallthru
    _
  // Predicated region
  $region6: #{agent_vec_encoder.1} parent=0 // pred_check
    _
  $region7: #{agent_vec_encoder.1} parent=0 // pred_check_branch
    %23 = sbr.rel (0) target = $region9
  $region8: #{agent_vec_encoder.1} parent=0 // pred_region
    _
  $region9: #{agent_vec_encoder.1} parent=0 // pred_fallthru
    _
  // Predicated region
  $region10: #{agent_vec_encoder.1} parent=0 // pred_check
    _
  $region11: #{agent_vec_encoder.1} parent=0 // pred_check_branch
    %25 = sbr.rel (0) target = $region13
  $region12: #{agent_vec_encoder.1} parent=0 // pred_region
    _
  $region13: #{agent_vec_encoder.1} parent=0 // pred_fallthru
    _
  // Predicated region
  $region14: #{agent_vec_encoder.1} parent=0 // pred_check
    _
  $region15: #{agent_vec_encoder.1} parent=0 // pred_check_branch
    %27 = sbr.rel (0) target = $region17
  $region16: #{agent_vec_encoder.1} parent=0 // pred_region
    _
  $region17: #{agent_vec_encoder.1} parent=0 // pred_fallthru
    _
  // Predicated region
  $region18: #{agent_vec_encoder.1} parent=0 // pred_check
    _
  $region19: #{agent_vec_encoder.1} parent=0 // pred_check_branch
    %29 = sbr.rel (0) target = $region21
  $region20: #{agent_vec_encoder.1} parent=0 // pred_region
    _
  $region21: #{agent_vec_encoder.1} parent=0 // pred_fallthru
    _
  // Predicated region
  $region22: #{agent_vec_encoder.1} parent=0 // pred_check
    _
  $region23: #{agent_vec_encoder.1} parent=0 // pred_check_branch
    %31 = sbr.rel (0) target = $region25
  $region24: #{agent_vec_encoder.1} parent=0 // pred_region
    _
  $region25: #{agent_vec_encoder.1} parent=0 // pred_fallthru
    _
  // Predicated region
  $region26: #{agent_vec_encoder.1} parent=0 // pred_check
    _
  $region27: #{agent_vec_encoder.1} parent=0 // pred_check_branch
    %33 = sbr.rel (0) target = $region29
  $region28: #{agent_vec_encoder.1} parent=0 // pred_region
    _
  $region29: #{agent_vec_encoder.1} parent=0 // pred_fallthru
    _
  // Predicated region
  $region30: #{agent_vec_encoder.1} parent=0 // pred_check
    _
  $region31: #{agent_vec_encoder.1} parent=0 // pred_check_branch
    %35 = sbr.rel (0) target = $region33
  $region32: #{agent_vec_encoder.1} parent=0 // pred_region
    _
  $region33: #{agent_vec_encoder.1} parent=0 // pred_fallthru
    _
  // Predicated region
  $region34: #{agent_vec_encoder.1} parent=0 // pred_check
    _
  $region35: #{agent_vec_encoder.1} parent=0 // pred_check_branch
    %37 = sbr.rel (0) target = $region37
  $region36: #{agent_vec_encoder.1} parent=0 // pred_region
    _
  $region37: #{agent_vec_encoder.1} parent=0 // pred_fallthru
    _
  // Predicated region
  $region38: #{agent_vec_encoder.1} parent=0 // pred_check
    _
  $region39: #{agent_vec_encoder.1} parent=0 // pred_check_branch
    %39 = sbr.rel (0) target = $region41
  $region40: #{agent_vec_encoder.1} parent=0 // pred_region
    _
  $region41: #{agent_vec_encoder.1} parent=0 // pred_fallthru
    _
  // Predicated region
  $region42: #{agent_vec_encoder.1} parent=0 // pred_check
    _
  $region43: #{agent_vec_encoder.1} parent=0 // pred_check_branch
    %41 = sbr.rel (0) target = $region45
  $region44: #{agent_vec_encoder.1} parent=0 // pred_region
    _
  $region45: #{agent_vec_encoder.1} parent=0 // pred_fallthru
    _
  // Predicated region
  $region46: #{agent_vec_encoder.1} parent=0 // pred_check
    _
  $region47: #{agent_vec_encoder.1} parent=0 // pred_check_branch
    %43 = sbr.rel (0) target = $region49
  $region48: #{agent_vec_encoder.1} parent=0 // pred_region
    _
  $region49: #{agent_vec_encoder.1} parent=0 // pred_fallthru
    _
  // Predicated region
  $region50: #{agent_vec_encoder.1} parent=0 // pred_check
    _
  $region51: #{agent_vec_encoder.1} parent=0 // pred_check_branch
    %45 = sbr.rel (0) target = $region53
  $region52: #{agent_vec_encoder.1} parent=0 // pred_region
    _
  $region53: #{agent_vec_encoder.1} parent=0 // pred_fallthru
    _
  %v46 = vld [vmem:[%s0] sm:$0xff]
  %v47 = vld [vmem:[%s0 + $0x8] sm:$0xff]
  %v48 = vld [vmem:[%s0 + $0x10] sm:$0xff]
  %v49 = vld [vmem:[%s0 + $0x18] sm:$0xff]
  %v50 = vld [vmem:[%s0 + $0x20] sm:$0xff]
  %v51 = vld [vmem:[%s0 + $0x28] sm:$0xff]
  %v52 = vld [vmem:[%s0 + $0x30] sm:$0xff]
  %v53 = vld [vmem:[%s0 + $0x38] sm:$0xff]
  %v54 = vld [vmem:[%s1] sm:$0xff]
  %v55 = vld [vmem:[%s1 + $0x8] sm:$0xff]
  %v56 = vld [vmem:[%s1 + $0x10] sm:$0xff]
  %v57 = vld [vmem:[%s1 + $0x18] sm:$0xff]
  %v58 = vld [vmem:[%s1 + $0x20] sm:$0xff]
  %v59 = vld [vmem:[%s1 + $0x28] sm:$0xff]
  %v60 = vld [vmem:[%s1 + $0x30] sm:$0xff]
  %v61 = vld [vmem:[%s1 + $0x38] sm:$0xff]
  %v62 = vld [vmem:[%s2] sm:$0xf]
  %vm63 = vcmask 31744
  %v65 = vsel %vm63, %v54, 0
  %v68 = vsel %vm63, %v55, 0
  %v71 = vsel %vm63, %v56, 0
  %v74 = vsel %vm63, %v57, 0
  %v77 = vsel %vm63, %v58, 0
  %v80 = vsel %vm63, %v59, 0
  %v83 = vsel %vm63, %v60, 0
  %v86 = vsel %vm63, %v61, 0
  %vm88 = vcmask 1043456
  %v90 = vsel %vm88, %v62, 0
  %92 = vmatpush.msra.mxu0 0.0
  %93 = vmatpush.msra.mxu0 0.0
  %94 = vmatpush.msra.mxu0 0.0
  %95 = vmatpush.msra.mxu0 0.0
  %96 = vmatpush.msra.mxu0 0.0
  %97 = vmatpush.msra.mxu0 0.0
  %98 = vmatpush.msra.mxu0 0.0
  %99 = vmatpush.msra.mxu0 0.0
  %100 = vmatpush.msra.mxu0 0.0
  %101 = vmatpush.msra.mxu0 0.0
  %102 = vmatpush.msra.mxu0 0.0
  %103 = vmatpush.msra.mxu0 0.0
  %104 = vmatpush.msra.mxu0 0.0
  %105 = vmatpush.msra.mxu0 0.0
  %106 = vmatpush.msra.mxu0 0.0
  %107 = vmatpush.msra.mxu0 %v90
  %108 = vmatmul.f32.gmra.mxu0 %v65
  %v109 = vpop.f32.mrf.mxu0
  %v110 = vadd.f32 0.0, %v109
  %111 = vmatmul.f32.gmra.mxu0 %v68
  %v112 = vpop.f32.mrf.mxu0
  %v113 = vadd.f32 0.0, %v112
  %114 = vmatmul.f32.gmra.mxu0 %v71
  %v115 = vpop.f32.mrf.mxu0
  %v116 = vadd.f32 0.0, %v115
  %117 = vmatmul.f32.gmra.mxu0 %v74
  %v118 = vpop.f32.mrf.mxu0
  %v119 = vadd.f32 0.0, %v118
  %120 = vmatmul.f32.gmra.mxu0 %v77
  %v121 = vpop.f32.mrf.mxu0
  %v122 = vadd.f32 0.0, %v121
  %123 = vmatmul.f32.gmra.mxu0 %v80
  %v124 = vpop.f32.mrf.mxu0
  %v125 = vadd.f32 0.0, %v124
  %126 = vmatmul.f32.gmra.mxu0 %v83
  %v127 = vpop.f32.mrf.mxu0
  %v128 = vadd.f32 0.0, %v127
  %129 = vmatmul.f32.gmra.mxu0 %v86
  %v130 = vpop.f32.mrf.mxu0
  %v131 = vadd.f32 0.0, %v130
  %132 = vdwg.mxu0
  %v133 = vld [vmem:[%s3] sm:$0xff]
  %v134 = vld [vmem:[%s3 + $0x8] sm:$0xff]
  %v135 = vld [vmem:[%s3 + $0x10] sm:$0xff]
  %v136 = vld [vmem:[%s3 + $0x18] sm:$0xff]
  %v137 = vld [vmem:[%s3 + $0x20] sm:$0xff]
  %v138 = vld [vmem:[%s3 + $0x28] sm:$0xff]
  %v139 = vld [vmem:[%s3 + $0x30] sm:$0xff]
  %v140 = vld [vmem:[%s3 + $0x38] sm:$0xff]
  %v141 = vld [vmem:[%s3 + $0x40] sm:$0xff]
  %v142 = vld [vmem:[%s3 + $0x48] sm:$0xff]
  %v143 = vld [vmem:[%s3 + $0x50] sm:$0xff]
  %v144 = vld [vmem:[%s3 + $0x58] sm:$0xff]
  %v145 = vld [vmem:[%s3 + $0x60] sm:$0xff]
  %v146 = vld [vmem:[%s3 + $0x68] sm:$0xff]
  %v147 = vld [vmem:[%s3 + $0x70] sm:$0xff]
  %v148 = vld [vmem:[%s3 + $0x78] sm:$0xff]
  %v149 = vld [vmem:[%s4] sm:$0xff]
  %v150 = vld [vmem:[%s4 + $0x8] sm:$0xff]
  %v151 = vld [vmem:[%s4 + $0x10] sm:$0xff]
  %v152 = vld [vmem:[%s4 + $0x18] sm:$0xff]
  %v153 = vld [vmem:[%s4 + $0x20] sm:$0xff]
  %v154 = vld [vmem:[%s4 + $0x28] sm:$0xff]
  %v155 = vld [vmem:[%s4 + $0x30] sm:$0xff]
  %v156 = vld [vmem:[%s4 + $0x38] sm:$0xff]
  %v157 = vld [vmem:[%s5] sm:$0x1]
  %v159 = vperm.slane %v157, 0
  %vm161 = vcmask 523264
  %v163 = vsel %vm161, %v46, 0
  %v166 = vsel %vm161, %v47, 0
  %v169 = vsel %vm161, %v48, 0
  %v172 = vsel %vm161, %v49, 0
  %v175 = vsel %vm161, %v50, 0
  %v178 = vsel %vm161, %v51, 0
  %v181 = vsel %vm161, %v52, 0
  %v184 = vsel %vm161, %v53, 0
  %186 = vmatpush.msra.mxu0 0.0
  %187 = vmatpush.msra.mxu0 0.0
  %188 = vmatpush.msra.mxu0 0.0
  %189 = vmatpush.msra.mxu0 0.0
  %190 = vmatpush.msra.mxu0 0.0
  %191 = vmatpush.msra.mxu0 0.0
  %192 = vmatpush.msra.mxu0 0.0
  %193 = vmatpush.msra.mxu0 0.0
  %194 = vmatpush.msra.mxu0 %v156
  %195 = vmatpush.msra.mxu0 %v155
  %196 = vmatpush.msra.mxu0 %v154
  %197 = vmatpush.msra.mxu0 %v153
  %198 = vmatpush.msra.mxu0 %v152
  %199 = vmatpush.msra.mxu0 %v151
  %200 = vmatpush.msra.mxu0 %v150
  %201 = vmatpush.msra.mxu0 %v149
  %202 = vmatmul.f32.gmra.mxu0 %v163
  %v203 = vpop.f32.mrf.mxu0
  %v204 = vadd.f32 %v159, %v203
  %205 = vmatmul.f32.gmra.mxu0 %v166
  %v206 = vpop.f32.mrf.mxu0
  %v207 = vadd.f32 %v159, %v206
  %208 = vmatmul.f32.gmra.mxu0 %v169
  %v209 = vpop.f32.mrf.mxu0
  %v210 = vadd.f32 %v159, %v209
  %211 = vmatmul.f32.gmra.mxu0 %v172
  %v212 = vpop.f32.mrf.mxu0
  %v213 = vadd.f32 %v159, %v212
  %214 = vmatmul.f32.gmra.mxu0 %v175
  %v215 = vpop.f32.mrf.mxu0
  %v216 = vadd.f32 %v159, %v215
  %217 = vmatmul.f32.gmra.mxu0 %v178
  %v218 = vpop.f32.mrf.mxu0
  %v219 = vadd.f32 %v159, %v218
  %220 = vmatmul.f32.gmra.mxu0 %v181
  %v221 = vpop.f32.mrf.mxu0
  %v222 = vadd.f32 %v159, %v221
  %223 = vmatmul.f32.gmra.mxu0 %v184
  %v224 = vpop.f32.mrf.mxu0
  %v225 = vadd.f32 %v159, %v224
  %226 = vdwg.mxu0
  %v227 = vand.u32 %v148, 4294901760
  %228 = vmatpush.msra.mxu0 %v227
  %v229 = vand.u32 %v147, 4294901760
  %230 = vmatpush.msra.mxu0 %v229
  %v231 = vand.u32 %v146, 4294901760
  %232 = vmatpush.msra.mxu0 %v231
  %v233 = vand.u32 %v145, 4294901760
  %234 = vmatpush.msra.mxu0 %v233
  %v235 = vand.u32 %v144, 4294901760
  %236 = vmatpush.msra.mxu0 %v235
  %v237 = vand.u32 %v143, 4294901760
  %238 = vmatpush.msra.mxu0 %v237
  %v239 = vand.u32 %v142, 4294901760
  %240 = vmatpush.msra.mxu0 %v239
  %v241 = vand.u32 %v141, 4294901760
  %242 = vmatpush.msra.mxu0 %v241
  %v243 = vand.u32 %v140, 4294901760
  %244 = vmatpush.msra.mxu0 %v243
  %v245 = vand.u32 %v139, 4294901760
  %246 = vmatpush.msra.mxu0 %v245
  %v247 = vand.u32 %v138, 4294901760
  %248 = vmatpush.msra.mxu0 %v247
  %v249 = vand.u32 %v137, 4294901760
  %250 = vmatpush.msra.mxu0 %v249
  %v251 = vand.u32 %v136, 4294901760
  %252 = vmatpush.msra.mxu0 %v251
  %v253 = vand.u32 %v135, 4294901760
  %254 = vmatpush.msra.mxu0 %v253
  %v255 = vand.u32 %v134, 4294901760
  %256 = vmatpush.msra.mxu0 %v255
  %v257 = vand.u32 %v133, 4294901760
  %258 = vmatpush.msra.mxu0 %v257
  %v259 = vand.u32 %v204, 4294901760
  %v260 = vsub.f32 %v204, %v259
  %v261 = vand.u32 %v260, 4294901760
  %v262 = vsub.f32 %v260, %v261
  %v263 = vand.u32 %v262, 4294901760
  %264 = vmatmul.f32.gmra.mxu0 %v263
  %v265 = vpop.f32.mrf.mxu0
  %v266 = vadd.f32 0.0, %v265
  %v267 = vand.u32 %v207, 4294901760
  %v268 = vsub.f32 %v207, %v267
  %v269 = vand.u32 %v268, 4294901760
  %v270 = vsub.f32 %v268, %v269
  %v271 = vand.u32 %v270, 4294901760
  %272 = vmatmul.f32.gmra.mxu0 %v271
  %v273 = vpop.f32.mrf.mxu0
  %v274 = vadd.f32 0.0, %v273
  %v275 = vand.u32 %v210, 4294901760
  %v276 = vsub.f32 %v210, %v275
  %v277 = vand.u32 %v276, 4294901760
  %v278 = vsub.f32 %v276, %v277
  %v279 = vand.u32 %v278, 4294901760
  %280 = vmatmul.f32.gmra.mxu0 %v279
  %v281 = vpop.f32.mrf.mxu0
  %v282 = vadd.f32 0.0, %v281
  %v283 = vand.u32 %v213, 4294901760
  %v284 = vsub.f32 %v213, %v283
  %v285 = vand.u32 %v284, 4294901760
  %v286 = vsub.f32 %v284, %v285
  %v287 = vand.u32 %v286, 4294901760
  %288 = vmatmul.f32.gmra.mxu0 %v287
  %v289 = vpop.f32.mrf.mxu0
  %v290 = vadd.f32 0.0, %v289
  %v291 = vand.u32 %v216, 4294901760
  %v292 = vsub.f32 %v216, %v291
  %v293 = vand.u32 %v292, 4294901760
  %v294 = vsub.f32 %v292, %v293
  %v295 = vand.u32 %v294, 4294901760
  %296 = vmatmul.f32.gmra.mxu0 %v295
  %v297 = vpop.f32.mrf.mxu0
  %v298 = vadd.f32 0.0, %v297
  %v299 = vand.u32 %v219, 4294901760
  %v300 = vsub.f32 %v219, %v299
  %v301 = vand.u32 %v300, 4294901760
  %v302 = vsub.f32 %v300, %v301
  %v303 = vand.u32 %v302, 4294901760
  %304 = vmatmul.f32.gmra.mxu0 %v303
  %v305 = vpop.f32.mrf.mxu0
  %v306 = vadd.f32 0.0, %v305
  %v307 = vand.u32 %v222, 4294901760
  %v308 = vsub.f32 %v222, %v307
  %v309 = vand.u32 %v308, 4294901760
  %v310 = vsub.f32 %v308, %v309
  %v311 = vand.u32 %v310, 4294901760
  %312 = vmatmul.f32.gmra.mxu0 %v311
  %v313 = vpop.f32.mrf.mxu0
  %v314 = vadd.f32 0.0, %v313
  %v315 = vand.u32 %v225, 4294901760
  %v316 = vsub.f32 %v225, %v315
  %v317 = vand.u32 %v316, 4294901760
  %v318 = vsub.f32 %v316, %v317
  %v319 = vand.u32 %v318, 4294901760
  %320 = vmatmul.f32.gmra.mxu0 %v319
  %v321 = vpop.f32.mrf.mxu0
  %v322 = vadd.f32 0.0, %v321
  %323 = vdwg.mxu0
  %v324 = vand.u32 %v148, 4294901760
  %v325 = vsub.f32 %v148, %v324
  %v326 = vand.u32 %v325, 4294901760
  %v327 = vsub.f32 %v325, %v326
  %v328 = vand.u32 %v327, 4294901760
  %329 = vmatpush.msra.mxu0 %v328
  %v330 = vand.u32 %v147, 4294901760
  %v331 = vsub.f32 %v147, %v330
  %v332 = vand.u32 %v331, 4294901760
  %v333 = vsub.f32 %v331, %v332
  %v334 = vand.u32 %v333, 4294901760
  %335 = vmatpush.msra.mxu0 %v334
  %v336 = vand.u32 %v146, 4294901760
  %v337 = vsub.f32 %v146, %v336
  %v338 = vand.u32 %v337, 4294901760
  %v339 = vsub.f32 %v337, %v338
  %v340 = vand.u32 %v339, 4294901760
  %341 = vmatpush.msra.mxu0 %v340
  %v342 = vand.u32 %v145, 4294901760
  %v343 = vsub.f32 %v145, %v342
  %v344 = vand.u32 %v343, 4294901760
  %v345 = vsub.f32 %v343, %v344
  %v346 = vand.u32 %v345, 4294901760
  %347 = vmatpush.msra.mxu0 %v346
  %v348 = vand.u32 %v144, 4294901760
  %v349 = vsub.f32 %v144, %v348
  %v350 = vand.u32 %v349, 4294901760
  %v351 = vsub.f32 %v349, %v350
  %v352 = vand.u32 %v351, 4294901760
  %353 = vmatpush.msra.mxu0 %v352
  %v354 = vand.u32 %v143, 4294901760
  %v355 = vsub.f32 %v143, %v354
  %v356 = vand.u32 %v355, 4294901760
  %v357 = vsub.f32 %v355, %v356
  %v358 = vand.u32 %v357, 4294901760
  %359 = vmatpush.msra.mxu0 %v358
  %v360 = vand.u32 %v142, 4294901760
  %v361 = vsub.f32 %v142, %v360
  %v362 = vand.u32 %v361, 4294901760
  %v363 = vsub.f32 %v361, %v362
  %v364 = vand.u32 %v363, 4294901760
  %365 = vmatpush.msra.mxu0 %v364
  %v366 = vand.u32 %v141, 4294901760
  %v367 = vsub.f32 %v141, %v366
  %v368 = vand.u32 %v367, 4294901760
  %v369 = vsub.f32 %v367, %v368
  %v370 = vand.u32 %v369, 4294901760
  %371 = vmatpush.msra.mxu0 %v370
  %v372 = vand.u32 %v140, 4294901760
  %v373 = vsub.f32 %v140, %v372
  %v374 = vand.u32 %v373, 4294901760
  %v375 = vsub.f32 %v373, %v374
  %v376 = vand.u32 %v375, 4294901760
  %377 = vmatpush.msra.mxu0 %v376
  %v378 = vand.u32 %v139, 4294901760
  %v379 = vsub.f32 %v139, %v378
  %v380 = vand.u32 %v379, 4294901760
  %v381 = vsub.f32 %v379, %v380
  %v382 = vand.u32 %v381, 4294901760
  %383 = vmatpush.msra.mxu0 %v382
  %v384 = vand.u32 %v138, 4294901760
  %v385 = vsub.f32 %v138, %v384
  %v386 = vand.u32 %v385, 4294901760
  %v387 = vsub.f32 %v385, %v386
  %v388 = vand.u32 %v387, 4294901760
  %389 = vmatpush.msra.mxu0 %v388
  %v390 = vand.u32 %v137, 4294901760
  %v391 = vsub.f32 %v137, %v390
  %v392 = vand.u32 %v391, 4294901760
  %v393 = vsub.f32 %v391, %v392
  %v394 = vand.u32 %v393, 4294901760
  %395 = vmatpush.msra.mxu0 %v394
  %v396 = vand.u32 %v136, 4294901760
  %v397 = vsub.f32 %v136, %v396
  %v398 = vand.u32 %v397, 4294901760
  %v399 = vsub.f32 %v397, %v398
  %v400 = vand.u32 %v399, 4294901760
  %401 = vmatpush.msra.mxu0 %v400
  %v402 = vand.u32 %v135, 4294901760
  %v403 = vsub.f32 %v135, %v402
  %v404 = vand.u32 %v403, 4294901760
  %v405 = vsub.f32 %v403, %v404
  %v406 = vand.u32 %v405, 4294901760
  %407 = vmatpush.msra.mxu0 %v406
  %v408 = vand.u32 %v134, 4294901760
  %v409 = vsub.f32 %v134, %v408
  %v410 = vand.u32 %v409, 4294901760
  %v411 = vsub.f32 %v409, %v410
  %v412 = vand.u32 %v411, 4294901760
  %413 = vmatpush.msra.mxu0 %v412
  %v414 = vand.u32 %v133, 4294901760
  %v415 = vsub.f32 %v133, %v414
  %v416 = vand.u32 %v415, 4294901760
  %v417 = vsub.f32 %v415, %v416
  %v418 = vand.u32 %v417, 4294901760
  %419 = vmatpush.msra.mxu0 %v418
  %v420 = vand.u32 %v204, 4294901760
  %421 = vmatmul.f32.gmra.mxu0 %v420
  %v422 = vpop.f32.mrf.mxu0
  %v423 = vadd.f32 %v266, %v422
  %v424 = vand.u32 %v207, 4294901760
  %425 = vmatmul.f32.gmra.mxu0 %v424
  %v426 = vpop.f32.mrf.mxu0
  %v427 = vadd.f32 %v274, %v426
  %v428 = vand.u32 %v210, 4294901760
  %429 = vmatmul.f32.gmra.mxu0 %v428
  %v430 = vpop.f32.mrf.mxu0
  %v431 = vadd.f32 %v282, %v430
  %v432 = vand.u32 %v213, 4294901760
  %433 = vmatmul.f32.gmra.mxu0 %v432
  %v434 = vpop.f32.mrf.mxu0
  %v435 = vadd.f32 %v290, %v434
  %v436 = vand.u32 %v216, 4294901760
  %437 = vmatmul.f32.gmra.mxu0 %v436
  %v438 = vpop.f32.mrf.mxu0
  %v439 = vadd.f32 %v298, %v438
  %v440 = vand.u32 %v219, 4294901760
  %441 = vmatmul.f32.gmra.mxu0 %v440
  %v442 = vpop.f32.mrf.mxu0
  %v443 = vadd.f32 %v306, %v442
  %v444 = vand.u32 %v222, 4294901760
  %445 = vmatmul.f32.gmra.mxu0 %v444
  %v446 = vpop.f32.mrf.mxu0
  %v447 = vadd.f32 %v314, %v446
  %v448 = vand.u32 %v225, 4294901760
  %449 = vmatmul.f32.gmra.mxu0 %v448
  %v450 = vpop.f32.mrf.mxu0
  %v451 = vadd.f32 %v322, %v450
  %452 = vdwg.mxu0
  %v453 = vand.u32 %v148, 4294901760
  %v454 = vsub.f32 %v148, %v453
  %455 = vmatpush.msra.mxu0 %v454
  %v456 = vand.u32 %v147, 4294901760
  %v457 = vsub.f32 %v147, %v456
  %458 = vmatpush.msra.mxu0 %v457
  %v459 = vand.u32 %v146, 4294901760
  %v460 = vsub.f32 %v146, %v459
  %461 = vmatpush.msra.mxu0 %v460
  %v462 = vand.u32 %v145, 4294901760
  %v463 = vsub.f32 %v145, %v462
  %464 = vmatpush.msra.mxu0 %v463
  %v465 = vand.u32 %v144, 4294901760
  %v466 = vsub.f32 %v144, %v465
  %467 = vmatpush.msra.mxu0 %v466
  %v468 = vand.u32 %v143, 4294901760
  %v469 = vsub.f32 %v143, %v468
  %470 = vmatpush.msra.mxu0 %v469
  %v471 = vand.u32 %v142, 4294901760
  %v472 = vsub.f32 %v142, %v471
  %473 = vmatpush.msra.mxu0 %v472
  %v474 = vand.u32 %v141, 4294901760
  %v475 = vsub.f32 %v141, %v474
  %476 = vmatpush.msra.mxu0 %v475
  %v477 = vand.u32 %v140, 4294901760
  %v478 = vsub.f32 %v140, %v477
  %479 = vmatpush.msra.mxu0 %v478
  %v480 = vand.u32 %v139, 4294901760
  %v481 = vsub.f32 %v139, %v480
  %482 = vmatpush.msra.mxu0 %v481
  %v483 = vand.u32 %v138, 4294901760
  %v484 = vsub.f32 %v138, %v483
  %485 = vmatpush.msra.mxu0 %v484
  %v486 = vand.u32 %v137, 4294901760
  %v487 = vsub.f32 %v137, %v486
  %488 = vmatpush.msra.mxu0 %v487
  %v489 = vand.u32 %v136, 4294901760
  %v490 = vsub.f32 %v136, %v489
  %491 = vmatpush.msra.mxu0 %v490
  %v492 = vand.u32 %v135, 4294901760
  %v493 = vsub.f32 %v135, %v492
  %494 = vmatpush.msra.mxu0 %v493
  %v495 = vand.u32 %v134, 4294901760
  %v496 = vsub.f32 %v134, %v495
  %497 = vmatpush.msra.mxu0 %v496
  %v498 = vand.u32 %v133, 4294901760
  %v499 = vsub.f32 %v133, %v498
  %500 = vmatpush.msra.mxu0 %v499
  %v501 = vand.u32 %v204, 4294901760
  %v502 = vsub.f32 %v204, %v501
  %503 = vmatmul.f32.gmra.mxu0 %v502
  %v504 = vpop.f32.mrf.mxu0
  %v505 = vadd.f32 %v423, %v504
  %v506 = vand.u32 %v207, 4294901760
  %v507 = vsub.f32 %v207, %v506
  %508 = vmatmul.f32.gmra.mxu0 %v507
  %v509 = vpop.f32.mrf.mxu0
  %v510 = vadd.f32 %v427, %v509
  %v511 = vand.u32 %v210, 4294901760
  %v512 = vsub.f32 %v210, %v511
  %513 = vmatmul.f32.gmra.mxu0 %v512
  %v514 = vpop.f32.mrf.mxu0
  %v515 = vadd.f32 %v431, %v514
  %v516 = vand.u32 %v213, 4294901760
  %v517 = vsub.f32 %v213, %v516
  %518 = vmatmul.f32.gmra.mxu0 %v517
  %v519 = vpop.f32.mrf.mxu0
  %v520 = vadd.f32 %v435, %v519
  %v521 = vand.u32 %v216, 4294901760
  %v522 = vsub.f32 %v216, %v521
  %523 = vmatmul.f32.gmra.mxu0 %v522
  %v524 = vpop.f32.mrf.mxu0
  %v525 = vadd.f32 %v439, %v524
  %v526 = vand.u32 %v219, 4294901760
  %v527 = vsub.f32 %v219, %v526
  %528 = vmatmul.f32.gmra.mxu0 %v527
  %v529 = vpop.f32.mrf.mxu0
  %v530 = vadd.f32 %v443, %v529
  %v531 = vand.u32 %v222, 4294901760
  %v532 = vsub.f32 %v222, %v531
  %533 = vmatmul.f32.gmra.mxu0 %v532
  %v534 = vpop.f32.mrf.mxu0
  %v535 = vadd.f32 %v447, %v534
  %v536 = vand.u32 %v225, 4294901760
  %v537 = vsub.f32 %v225, %v536
  %538 = vmatmul.f32.gmra.mxu0 %v537
  %v539 = vpop.f32.mrf.mxu0
  %v540 = vadd.f32 %v451, %v539
  %541 = vdwg.mxu0
  %v542 = vand.u32 %v148, 4294901760
  %543 = vmatpush.msra.mxu0 %v542
  %v544 = vand.u32 %v147, 4294901760
  %545 = vmatpush.msra.mxu0 %v544
  %v546 = vand.u32 %v146, 4294901760
  %547 = vmatpush.msra.mxu0 %v546
  %v548 = vand.u32 %v145, 4294901760
  %549 = vmatpush.msra.mxu0 %v548
  %v550 = vand.u32 %v144, 4294901760
  %551 = vmatpush.msra.mxu0 %v550
  %v552 = vand.u32 %v143, 4294901760
  %553 = vmatpush.msra.mxu0 %v552
  %v554 = vand.u32 %v142, 4294901760
  %555 = vmatpush.msra.mxu0 %v554
  %v556 = vand.u32 %v141, 4294901760
  %557 = vmatpush.msra.mxu0 %v556
  %v558 = vand.u32 %v140, 4294901760
  %559 = vmatpush.msra.mxu0 %v558
  %v560 = vand.u32 %v139, 4294901760
  %561 = vmatpush.msra.mxu0 %v560
  %v562 = vand.u32 %v138, 4294901760
  %563 = vmatpush.msra.mxu0 %v562
  %v564 = vand.u32 %v137, 4294901760
  %565 = vmatpush.msra.mxu0 %v564
  %v566 = vand.u32 %v136, 4294901760
  %567 = vmatpush.msra.mxu0 %v566
  %v568 = vand.u32 %v135, 4294901760
  %569 = vmatpush.msra.mxu0 %v568
  %v570 = vand.u32 %v134, 4294901760
  %571 = vmatpush.msra.mxu0 %v570
  %v572 = vand.u32 %v133, 4294901760
  %573 = vmatpush.msra.mxu0 %v572
  %v574 = vand.u32 %v204, 4294901760
  %v575 = vsub.f32 %v204, %v574
  %v576 = vand.u32 %v575, 4294901760
  %577 = vmatmul.f32.gmra.mxu0 %v576
  %v578 = vpop.f32.mrf.mxu0
  %v579 = vadd.f32 %v505, %v578
  %v580 = vand.u32 %v207, 4294901760
  %v581 = vsub.f32 %v207, %v580
  %v582 = vand.u32 %v581, 4294901760
  %583 = vmatmul.f32.gmra.mxu0 %v582
  %v584 = vpop.f32.mrf.mxu0
  %v585 = vadd.f32 %v510, %v584
  %v586 = vand.u32 %v210, 4294901760
  %v587 = vsub.f32 %v210, %v586
  %v588 = vand.u32 %v587, 4294901760
  %589 = vmatmul.f32.gmra.mxu0 %v588
  %v590 = vpop.f32.mrf.mxu0
  %v591 = vadd.f32 %v515, %v590
  %v592 = vand.u32 %v213, 4294901760
  %v593 = vsub.f32 %v213, %v592
  %v594 = vand.u32 %v593, 4294901760
  %595 = vmatmul.f32.gmra.mxu0 %v594
  %v596 = vpop.f32.mrf.mxu0
  %v597 = vadd.f32 %v520, %v596
  %v598 = vand.u32 %v216, 4294901760
  %v599 = vsub.f32 %v216, %v598
  %v600 = vand.u32 %v599, 4294901760
  %601 = vmatmul.f32.gmra.mxu0 %v600
  %v602 = vpop.f32.mrf.mxu0
  %v603 = vadd.f32 %v525, %v602
  %v604 = vand.u32 %v219, 4294901760
  %v605 = vsub.f32 %v219, %v604
  %v606 = vand.u32 %v605, 4294901760
  %607 = vmatmul.f32.gmra.mxu0 %v606
  %v608 = vpop.f32.mrf.mxu0
  %v609 = vadd.f32 %v530, %v608
  %v610 = vand.u32 %v222, 4294901760
  %v611 = vsub.f32 %v222, %v610
  %v612 = vand.u32 %v611, 4294901760
  %613 = vmatmul.f32.gmra.mxu0 %v612
  %v614 = vpop.f32.mrf.mxu0
  %v615 = vadd.f32 %v535, %v614
  %v616 = vand.u32 %v225, 4294901760
  %v617 = vsub.f32 %v225, %v616
  %v618 = vand.u32 %v617, 4294901760
  %619 = vmatmul.f32.gmra.mxu0 %v618
  %v620 = vpop.f32.mrf.mxu0
  %v621 = vadd.f32 %v540, %v620
  %622 = vdwg.mxu0
  %v623 = vand.u32 %v148, 4294901760
  %v624 = vsub.f32 %v148, %v623
  %v625 = vand.u32 %v624, 4294901760
  %626 = vmatpush.msra.mxu0 %v625
  %v627 = vand.u32 %v147, 4294901760
  %v628 = vsub.f32 %v147, %v627
  %v629 = vand.u32 %v628, 4294901760
  %630 = vmatpush.msra.mxu0 %v629
  %v631 = vand.u32 %v146, 4294901760
  %v632 = vsub.f32 %v146, %v631
  %v633 = vand.u32 %v632, 4294901760
  %634 = vmatpush.msra.mxu0 %v633
  %v635 = vand.u32 %v145, 4294901760
  %v636 = vsub.f32 %v145, %v635
  %v637 = vand.u32 %v636, 4294901760
  %638 = vmatpush.msra.mxu0 %v637
  %v639 = vand.u32 %v144, 4294901760
  %v640 = vsub.f32 %v144, %v639
  %v641 = vand.u32 %v640, 4294901760
  %642 = vmatpush.msra.mxu0 %v641
  %v643 = vand.u32 %v143, 4294901760
  %v644 = vsub.f32 %v143, %v643
  %v645 = vand.u32 %v644, 4294901760
  %646 = vmatpush.msra.mxu0 %v645
  %v647 = vand.u32 %v142, 4294901760
  %v648 = vsub.f32 %v142, %v647
  %v649 = vand.u32 %v648, 4294901760
  %650 = vmatpush.msra.mxu0 %v649
  %v651 = vand.u32 %v141, 4294901760
  %v652 = vsub.f32 %v141, %v651
  %v653 = vand.u32 %v652, 4294901760
  %654 = vmatpush.msra.mxu0 %v653
  %v655 = vand.u32 %v140, 4294901760
  %v656 = vsub.f32 %v140, %v655
  %v657 = vand.u32 %v656, 4294901760
  %658 = vmatpush.msra.mxu0 %v657
  %v659 = vand.u32 %v139, 4294901760
  %v660 = vsub.f32 %v139, %v659
  %v661 = vand.u32 %v660, 4294901760
  %662 = vmatpush.msra.mxu0 %v661
  %v663 = vand.u32 %v138, 4294901760
  %v664 = vsub.f32 %v138, %v663
  %v665 = vand.u32 %v664, 4294901760
  %666 = vmatpush.msra.mxu0 %v665
  %v667 = vand.u32 %v137, 4294901760
  %v668 = vsub.f32 %v137, %v667
  %v669 = vand.u32 %v668, 4294901760
  %670 = vmatpush.msra.mxu0 %v669
  %v671 = vand.u32 %v136, 4294901760
  %v672 = vsub.f32 %v136, %v671
  %v673 = vand.u32 %v672, 4294901760
  %674 = vmatpush.msra.mxu0 %v673
  %v675 = vand.u32 %v135, 4294901760
  %v676 = vsub.f32 %v135, %v675
  %v677 = vand.u32 %v676, 4294901760
  %678 = vmatpush.msra.mxu0 %v677
  %v679 = vand.u32 %v134, 4294901760
  %v680 = vsub.f32 %v134, %v679
  %v681 = vand.u32 %v680, 4294901760
  %682 = vmatpush.msra.mxu0 %v681
  %v683 = vand.u32 %v133, 4294901760
  %v684 = vsub.f32 %v133, %v683
  %v685 = vand.u32 %v684, 4294901760
  %686 = vmatpush.msra.mxu0 %v685
  %v687 = vand.u32 %v204, 4294901760
  %688 = vmatmul.f32.gmra.mxu0 %v687
  %v689 = vpop.f32.mrf.mxu0
  %v690 = vadd.f32 %v579, %v689
  %v691 = vand.u32 %v207, 4294901760
  %692 = vmatmul.f32.gmra.mxu0 %v691
  %v693 = vpop.f32.mrf.mxu0
  %v694 = vadd.f32 %v585, %v693
  %v695 = vand.u32 %v210, 4294901760
  %696 = vmatmul.f32.gmra.mxu0 %v695
  %v697 = vpop.f32.mrf.mxu0
  %v698 = vadd.f32 %v591, %v697
  %v699 = vand.u32 %v213, 4294901760
  %700 = vmatmul.f32.gmra.mxu0 %v699
  %v701 = vpop.f32.mrf.mxu0
  %v702 = vadd.f32 %v597, %v701
  %v703 = vand.u32 %v216, 4294901760
  %704 = vmatmul.f32.gmra.mxu0 %v703
  %v705 = vpop.f32.mrf.mxu0
  %v706 = vadd.f32 %v603, %v705
  %v707 = vand.u32 %v219, 4294901760
  %708 = vmatmul.f32.gmra.mxu0 %v707
  %v709 = vpop.f32.mrf.mxu0
  %v710 = vadd.f32 %v609, %v709
  %v711 = vand.u32 %v222, 4294901760
  %712 = vmatmul.f32.gmra.mxu0 %v711
  %v713 = vpop.f32.mrf.mxu0
  %v714 = vadd.f32 %v615, %v713
  %v715 = vand.u32 %v225, 4294901760
  %716 = vmatmul.f32.gmra.mxu0 %v715
  %v717 = vpop.f32.mrf.mxu0
  %v718 = vadd.f32 %v621, %v717
  %719 = vdwg.mxu0
  %v720 = vand.u32 %v148, 4294901760
  %721 = vmatpush.msra.mxu0 %v720
  %v722 = vand.u32 %v147, 4294901760
  %723 = vmatpush.msra.mxu0 %v722
  %v724 = vand.u32 %v146, 4294901760
  %725 = vmatpush.msra.mxu0 %v724
  %v726 = vand.u32 %v145, 4294901760
  %727 = vmatpush.msra.mxu0 %v726
  %v728 = vand.u32 %v144, 4294901760
  %729 = vmatpush.msra.mxu0 %v728
  %v730 = vand.u32 %v143, 4294901760
  %731 = vmatpush.msra.mxu0 %v730
  %v732 = vand.u32 %v142, 4294901760
  %733 = vmatpush.msra.mxu0 %v732
  %v734 = vand.u32 %v141, 4294901760
  %735 = vmatpush.msra.mxu0 %v734
  %v736 = vand.u32 %v140, 4294901760
  %737 = vmatpush.msra.mxu0 %v736
  %v738 = vand.u32 %v139, 4294901760
  %739 = vmatpush.msra.mxu0 %v738
  %v740 = vand.u32 %v138, 4294901760
  %741 = vmatpush.msra.mxu0 %v740
  %v742 = vand.u32 %v137, 4294901760
  %743 = vmatpush.msra.mxu0 %v742
  %v744 = vand.u32 %v136, 4294901760
  %745 = vmatpush.msra.mxu0 %v744
  %v746 = vand.u32 %v135, 4294901760
  %747 = vmatpush.msra.mxu0 %v746
  %v748 = vand.u32 %v134, 4294901760
  %749 = vmatpush.msra.mxu0 %v748
  %v750 = vand.u32 %v133, 4294901760
  %751 = vmatpush.msra.mxu0 %v750
  %v752 = vand.u32 %v204, 4294901760
  %753 = vmatmul.f32.gmra.mxu0 %v752
  %v754 = vpop.f32.mrf.mxu0
  %v755 = vadd.f32 %v690, %v754
  %v756 = vand.u32 %v207, 4294901760
  %757 = vmatmul.f32.gmra.mxu0 %v756
  %v758 = vpop.f32.mrf.mxu0
  %v759 = vadd.f32 %v694, %v758
  %v760 = vand.u32 %v210, 4294901760
  %761 = vmatmul.f32.gmra.mxu0 %v760
  %v762 = vpop.f32.mrf.mxu0
  %v763 = vadd.f32 %v698, %v762
  %v764 = vand.u32 %v213, 4294901760
  %765 = vmatmul.f32.gmra.mxu0 %v764
  %v766 = vpop.f32.mrf.mxu0
  %v767 = vadd.f32 %v702, %v766
  %v768 = vand.u32 %v216, 4294901760
  %769 = vmatmul.f32.gmra.mxu0 %v768
  %v770 = vpop.f32.mrf.mxu0
  %v771 = vadd.f32 %v706, %v770
  %v772 = vand.u32 %v219, 4294901760
  %773 = vmatmul.f32.gmra.mxu0 %v772
  %v774 = vpop.f32.mrf.mxu0
  %v775 = vadd.f32 %v710, %v774
  %v776 = vand.u32 %v222, 4294901760
  %777 = vmatmul.f32.gmra.mxu0 %v776
  %v778 = vpop.f32.mrf.mxu0
  %v779 = vadd.f32 %v714, %v778
  %v780 = vand.u32 %v225, 4294901760
  %781 = vmatmul.f32.gmra.mxu0 %v780
  %v782 = vpop.f32.mrf.mxu0
  %v783 = vadd.f32 %v718, %v782
  %784 = vdwg.mxu0
  %v785 = vsub.f32 %v204, %v755
  %v786 = vsub.f32 %v207, %v759
  %v787 = vsub.f32 %v210, %v763
  %v788 = vsub.f32 %v213, %v767
  %v789 = vsub.f32 %v216, %v771
  %v790 = vsub.f32 %v219, %v775
  %v791 = vsub.f32 %v222, %v779
  %v792 = vsub.f32 %v225, %v783
  %v793 = vmul.f32 %v785, %v785
  %v794 = vmul.f32 %v786, %v786
  %v795 = vmul.f32 %v787, %v787
  %v796 = vmul.f32 %v788, %v788
  %v797 = vmul.f32 %v789, %v789
  %v798 = vmul.f32 %v790, %v790
  %v799 = vmul.f32 %v791, %v791
  %v800 = vmul.f32 %v792, %v792
  %v801 = vand.u32 %v148, 4294901760
  %802 = vmatpush.msra.mxu0 %v801
  %v803 = vand.u32 %v147, 4294901760
  %804 = vmatpush.msra.mxu0 %v803
  %v805 = vand.u32 %v146, 4294901760
  %806 = vmatpush.msra.mxu0 %v805
  %v807 = vand.u32 %v145, 4294901760
  %808 = vmatpush.msra.mxu0 %v807
  %v809 = vand.u32 %v144, 4294901760
  %810 = vmatpush.msra.mxu0 %v809
  %v811 = vand.u32 %v143, 4294901760
  %812 = vmatpush.msra.mxu0 %v811
  %v813 = vand.u32 %v142, 4294901760
  %814 = vmatpush.msra.mxu0 %v813
  %v815 = vand.u32 %v141, 4294901760
  %816 = vmatpush.msra.mxu0 %v815
  %v817 = vand.u32 %v140, 4294901760
  %818 = vmatpush.msra.mxu0 %v817
  %v819 = vand.u32 %v139, 4294901760
  %820 = vmatpush.msra.mxu0 %v819
  %v821 = vand.u32 %v138, 4294901760
  %822 = vmatpush.msra.mxu0 %v821
  %v823 = vand.u32 %v137, 4294901760
  %824 = vmatpush.msra.mxu0 %v823
  %v825 = vand.u32 %v136, 4294901760
  %826 = vmatpush.msra.mxu0 %v825
  %v827 = vand.u32 %v135, 4294901760
  %828 = vmatpush.msra.mxu0 %v827
  %v829 = vand.u32 %v134, 4294901760
  %830 = vmatpush.msra.mxu0 %v829
  %v831 = vand.u32 %v133, 4294901760
  %832 = vmatpush.msra.mxu0 %v831
  %v833 = vand.u32 %v793, 4294901760
  %v834 = vsub.f32 %v793, %v833
  %v835 = vand.u32 %v834, 4294901760
  %v836 = vsub.f32 %v834, %v835
  %v837 = vand.u32 %v836, 4294901760
  %838 = vmatmul.f32.gmra.mxu0 %v837
  %v839 = vpop.f32.mrf.mxu0
  %v840 = vadd.f32 1e-05, %v839
  %v841 = vand.u32 %v794, 4294901760
  %v842 = vsub.f32 %v794, %v841
  %v843 = vand.u32 %v842, 4294901760
  %v844 = vsub.f32 %v842, %v843
  %v845 = vand.u32 %v844, 4294901760
  %846 = vmatmul.f32.gmra.mxu0 %v845
  %v847 = vpop.f32.mrf.mxu0
  %v848 = vadd.f32 1e-05, %v847
  %v849 = vand.u32 %v795, 4294901760
  %v850 = vsub.f32 %v795, %v849
  %v851 = vand.u32 %v850, 4294901760
  %v852 = vsub.f32 %v850, %v851
  %v853 = vand.u32 %v852, 4294901760
  %854 = vmatmul.f32.gmra.mxu0 %v853
  %v855 = vpop.f32.mrf.mxu0
  %v856 = vadd.f32 1e-05, %v855
  %v857 = vand.u32 %v796, 4294901760
  %v858 = vsub.f32 %v796, %v857
  %v859 = vand.u32 %v858, 4294901760
  %v860 = vsub.f32 %v858, %v859
  %v861 = vand.u32 %v860, 4294901760
  %862 = vmatmul.f32.gmra.mxu0 %v861
  %v863 = vpop.f32.mrf.mxu0
  %v864 = vadd.f32 1e-05, %v863
  %v865 = vand.u32 %v797, 4294901760
  %v866 = vsub.f32 %v797, %v865
  %v867 = vand.u32 %v866, 4294901760
  %v868 = vsub.f32 %v866, %v867
  %v869 = vand.u32 %v868, 4294901760
  %870 = vmatmul.f32.gmra.mxu0 %v869
  %v871 = vpop.f32.mrf.mxu0
  %v872 = vadd.f32 1e-05, %v871
  %v873 = vand.u32 %v798, 4294901760
  %v874 = vsub.f32 %v798, %v873
  %v875 = vand.u32 %v874, 4294901760
  %v876 = vsub.f32 %v874, %v875
  %v877 = vand.u32 %v876, 4294901760
  %878 = vmatmul.f32.gmra.mxu0 %v877
  %v879 = vpop.f32.mrf.mxu0
  %v880 = vadd.f32 1e-05, %v879
  %v881 = vand.u32 %v799, 4294901760
  %v882 = vsub.f32 %v799, %v881
  %v883 = vand.u32 %v882, 4294901760
  %v884 = vsub.f32 %v882, %v883
  %v885 = vand.u32 %v884, 4294901760
  %886 = vmatmul.f32.gmra.mxu0 %v885
  %v887 = vpop.f32.mrf.mxu0
  %v888 = vadd.f32 1e-05, %v887
  %v889 = vand.u32 %v800, 4294901760
  %v890 = vsub.f32 %v800, %v889
  %v891 = vand.u32 %v890, 4294901760
  %v892 = vsub.f32 %v890, %v891
  %v893 = vand.u32 %v892, 4294901760
  %894 = vmatmul.f32.gmra.mxu0 %v893
  %v895 = vpop.f32.mrf.mxu0
  %v896 = vadd.f32 1e-05, %v895
  %897 = vdwg.mxu0
  %v898 = vand.u32 %v148, 4294901760
  %v899 = vsub.f32 %v148, %v898
  %v900 = vand.u32 %v899, 4294901760
  %v901 = vsub.f32 %v899, %v900
  %v902 = vand.u32 %v901, 4294901760
  %903 = vmatpush.msra.mxu0 %v902
  %v904 = vand.u32 %v147, 4294901760
  %v905 = vsub.f32 %v147, %v904
  %v906 = vand.u32 %v905, 4294901760
  %v907 = vsub.f32 %v905, %v906
  %v908 = vand.u32 %v907, 4294901760
  %909 = vmatpush.msra.mxu0 %v908
  %v910 = vand.u32 %v146, 4294901760
  %v911 = vsub.f32 %v146, %v910
  %v912 = vand.u32 %v911, 4294901760
  %v913 = vsub.f32 %v911, %v912
  %v914 = vand.u32 %v913, 4294901760
  %915 = vmatpush.msra.mxu0 %v914
  %v916 = vand.u32 %v145, 4294901760
  %v917 = vsub.f32 %v145, %v916
  %v918 = vand.u32 %v917, 4294901760
  %v919 = vsub.f32 %v917, %v918
  %v920 = vand.u32 %v919, 4294901760
  %921 = vmatpush.msra.mxu0 %v920
  %v922 = vand.u32 %v144, 4294901760
  %v923 = vsub.f32 %v144, %v922
  %v924 = vand.u32 %v923, 4294901760
  %v925 = vsub.f32 %v923, %v924
  %v926 = vand.u32 %v925, 4294901760
  %927 = vmatpush.msra.mxu0 %v926
  %v928 = vand.u32 %v143, 4294901760
  %v929 = vsub.f32 %v143, %v928
  %v930 = vand.u32 %v929, 4294901760
  %v931 = vsub.f32 %v929, %v930
  %v932 = vand.u32 %v931, 4294901760
  %933 = vmatpush.msra.mxu0 %v932
  %v934 = vand.u32 %v142, 4294901760
  %v935 = vsub.f32 %v142, %v934
  %v936 = vand.u32 %v935, 4294901760
  %v937 = vsub.f32 %v935, %v936
  %v938 = vand.u32 %v937, 4294901760
  %939 = vmatpush.msra.mxu0 %v938
  %v940 = vand.u32 %v141, 4294901760
  %v941 = vsub.f32 %v141, %v940
  %v942 = vand.u32 %v941, 4294901760
  %v943 = vsub.f32 %v941, %v942
  %v944 = vand.u32 %v943, 4294901760
  %945 = vmatpush.msra.mxu0 %v944
  %v946 = vand.u32 %v140, 4294901760
  %v947 = vsub.f32 %v140, %v946
  %v948 = vand.u32 %v947, 4294901760
  %v949 = vsub.f32 %v947, %v948
  %v950 = vand.u32 %v949, 4294901760
  %951 = vmatpush.msra.mxu0 %v950
  %v952 = vand.u32 %v139, 4294901760
  %v953 = vsub.f32 %v139, %v952
  %v954 = vand.u32 %v953, 4294901760
  %v955 = vsub.f32 %v953, %v954
  %v956 = vand.u32 %v955, 4294901760
  %957 = vmatpush.msra.mxu0 %v956
  %v958 = vand.u32 %v138, 4294901760
  %v959 = vsub.f32 %v138, %v958
  %v960 = vand.u32 %v959, 4294901760
  %v961 = vsub.f32 %v959, %v960
  %v962 = vand.u32 %v961, 4294901760
  %963 = vmatpush.msra.mxu0 %v962
  %v964 = vand.u32 %v137, 4294901760
  %v965 = vsub.f32 %v137, %v964
  %v966 = vand.u32 %v965, 4294901760
  %v967 = vsub.f32 %v965, %v966
  %v968 = vand.u32 %v967, 4294901760
  %969 = vmatpush.msra.mxu0 %v968
  %v970 = vand.u32 %v136, 4294901760
  %v971 = vsub.f32 %v136, %v970
  %v972 = vand.u32 %v971, 4294901760
  %v973 = vsub.f32 %v971, %v972
  %v974 = vand.u32 %v973, 4294901760
  %975 = vmatpush.msra.mxu0 %v974
  %v976 = vand.u32 %v135, 4294901760
  %v977 = vsub.f32 %v135, %v976
  %v978 = vand.u32 %v977, 4294901760
  %v979 = vsub.f32 %v977, %v978
  %v980 = vand.u32 %v979, 4294901760
  %981 = vmatpush.msra.mxu0 %v980
  %v982 = vand.u32 %v134, 4294901760
  %v983 = vsub.f32 %v134, %v982
  %v984 = vand.u32 %v983, 4294901760
  %v985 = vsub.f32 %v983, %v984
  %v986 = vand.u32 %v985, 4294901760
  %987 = vmatpush.msra.mxu0 %v986
  %v988 = vand.u32 %v133, 4294901760
  %v989 = vsub.f32 %v133, %v988
  %v990 = vand.u32 %v989, 4294901760
  %v991 = vsub.f32 %v989, %v990
  %v992 = vand.u32 %v991, 4294901760
  %993 = vmatpush.msra.mxu0 %v992
  %v994 = vand.u32 %v793, 4294901760
  %995 = vmatmul.f32.gmra.mxu0 %v994
  %v996 = vpop.f32.mrf.mxu0
  %v997 = vadd.f32 %v840, %v996
  %v998 = vand.u32 %v794, 4294901760
  %999 = vmatmul.f32.gmra.mxu0 %v998
  %v1000 = vpop.f32.mrf.mxu0
  %v1001 = vadd.f32 %v848, %v1000
  %v1002 = vand.u32 %v795, 4294901760
  %1003 = vmatmul.f32.gmra.mxu0 %v1002
  %v1004 = vpop.f32.mrf.mxu0
  %v1005 = vadd.f32 %v856, %v1004
  %v1006 = vand.u32 %v796, 4294901760
  %1007 = vmatmul.f32.gmra.mxu0 %v1006
  %v1008 = vpop.f32.mrf.mxu0
  %v1009 = vadd.f32 %v864, %v1008
  %v1010 = vand.u32 %v797, 4294901760
  %1011 = vmatmul.f32.gmra.mxu0 %v1010
  %v1012 = vpop.f32.mrf.mxu0
  %v1013 = vadd.f32 %v872, %v1012
  %v1014 = vand.u32 %v798, 4294901760
  %1015 = vmatmul.f32.gmra.mxu0 %v1014
  %v1016 = vpop.f32.mrf.mxu0
  %v1017 = vadd.f32 %v880, %v1016
  %v1018 = vand.u32 %v799, 4294901760
  %1019 = vmatmul.f32.gmra.mxu0 %v1018
  %v1020 = vpop.f32.mrf.mxu0
  %v1021 = vadd.f32 %v888, %v1020
  %v1022 = vand.u32 %v800, 4294901760
  %1023 = vmatmul.f32.gmra.mxu0 %v1022
  %v1024 = vpop.f32.mrf.mxu0
  %v1025 = vadd.f32 %v896, %v1024
  %1026 = vdwg.mxu0
  %v1027 = vand.u32 %v148, 4294901760
  %v1028 = vsub.f32 %v148, %v1027
  %1029 = vmatpush.msra.mxu0 %v1028
  %v1030 = vand.u32 %v147, 4294901760
  %v1031 = vsub.f32 %v147, %v1030
  %1032 = vmatpush.msra.mxu0 %v1031
  %v1033 = vand.u32 %v146, 4294901760
  %v1034 = vsub.f32 %v146, %v1033
  %1035 = vmatpush.msra.mxu0 %v1034
  %v1036 = vand.u32 %v145, 4294901760
  %v1037 = vsub.f32 %v145, %v1036
  %1038 = vmatpush.msra.mxu0 %v1037
  %v1039 = vand.u32 %v144, 4294901760
  %v1040 = vsub.f32 %v144, %v1039
  %1041 = vmatpush.msra.mxu0 %v1040
  %v1042 = vand.u32 %v143, 4294901760
  %v1043 = vsub.f32 %v143, %v1042
  %1044 = vmatpush.msra.mxu0 %v1043
  %v1045 = vand.u32 %v142, 4294901760
  %v1046 = vsub.f32 %v142, %v1045
  %1047 = vmatpush.msra.mxu0 %v1046
  %v1048 = vand.u32 %v141, 4294901760
  %v1049 = vsub.f32 %v141, %v1048
  %1050 = vmatpush.msra.mxu0 %v1049
  %v1051 = vand.u32 %v140, 4294901760
  %v1052 = vsub.f32 %v140, %v1051
  %1053 = vmatpush.msra.mxu0 %v1052
  %v1054 = vand.u32 %v139, 4294901760
  %v1055 = vsub.f32 %v139, %v1054
  %1056 = vmatpush.msra.mxu0 %v1055
  %v1057 = vand.u32 %v138, 4294901760
  %v1058 = vsub.f32 %v138, %v1057
  %1059 = vmatpush.msra.mxu0 %v1058
  %v1060 = vand.u32 %v137, 4294901760
  %v1061 = vsub.f32 %v137, %v1060
  %1062 = vmatpush.msra.mxu0 %v1061
  %v1063 = vand.u32 %v136, 4294901760
  %v1064 = vsub.f32 %v136, %v1063
  %1065 = vmatpush.msra.mxu0 %v1064
  %v1066 = vand.u32 %v135, 4294901760
  %v1067 = vsub.f32 %v135, %v1066
  %1068 = vmatpush.msra.mxu0 %v1067
  %v1069 = vand.u32 %v134, 4294901760
  %v1070 = vsub.f32 %v134, %v1069
  %1071 = vmatpush.msra.mxu0 %v1070
  %v1072 = vand.u32 %v133, 4294901760
  %v1073 = vsub.f32 %v133, %v1072
  %1074 = vmatpush.msra.mxu0 %v1073
  %v1075 = vand.u32 %v793, 4294901760
  %v1076 = vsub.f32 %v793, %v1075
  %1077 = vmatmul.f32.gmra.mxu0 %v1076
  %v1078 = vpop.f32.mrf.mxu0
  %v1079 = vadd.f32 %v997, %v1078
  %v1080 = vand.u32 %v794, 4294901760
  %v1081 = vsub.f32 %v794, %v1080
  %1082 = vmatmul.f32.gmra.mxu0 %v1081
  %v1083 = vpop.f32.mrf.mxu0
  %v1084 = vadd.f32 %v1001, %v1083
  %v1085 = vand.u32 %v795, 4294901760
  %v1086 = vsub.f32 %v795, %v1085
  %1087 = vmatmul.f32.gmra.mxu0 %v1086
  %v1088 = vpop.f32.mrf.mxu0
  %v1089 = vadd.f32 %v1005, %v1088
  %v1090 = vand.u32 %v796, 4294901760
  %v1091 = vsub.f32 %v796, %v1090
  %1092 = vmatmul.f32.gmra.mxu0 %v1091
  %v1093 = vpop.f32.mrf.mxu0
  %v1094 = vadd.f32 %v1009, %v1093
  %v1095 = vand.u32 %v797, 4294901760
  %v1096 = vsub.f32 %v797, %v1095
  %1097 = vmatmul.f32.gmra.mxu0 %v1096
  %v1098 = vpop.f32.mrf.mxu0
  %v1099 = vadd.f32 %v1013, %v1098
  %v1100 = vand.u32 %v798, 4294901760
  %v1101 = vsub.f32 %v798, %v1100
  %1102 = vmatmul.f32.gmra.mxu0 %v1101
  %v1103 = vpop.f32.mrf.mxu0
  %v1104 = vadd.f32 %v1017, %v1103
  %v1105 = vand.u32 %v799, 4294901760
  %v1106 = vsub.f32 %v799, %v1105
  %1107 = vmatmul.f32.gmra.mxu0 %v1106
  %v1108 = vpop.f32.mrf.mxu0
  %v1109 = vadd.f32 %v1021, %v1108
  %v1110 = vand.u32 %v800, 4294901760
  %v1111 = vsub.f32 %v800, %v1110
  %1112 = vmatmul.f32.gmra.mxu0 %v1111
  %v1113 = vpop.f32.mrf.mxu0
  %v1114 = vadd.f32 %v1025, %v1113
  %1115 = vdwg.mxu0
  %v1116 = vand.u32 %v148, 4294901760
  %1117 = vmatpush.msra.mxu0 %v1116
  %v1118 = vand.u32 %v147, 4294901760
  %1119 = vmatpush.msra.mxu0 %v1118
  %v1120 = vand.u32 %v146, 4294901760
  %1121 = vmatpush.msra.mxu0 %v1120
  %v1122 = vand.u32 %v145, 4294901760
  %1123 = vmatpush.msra.mxu0 %v1122
  %v1124 = vand.u32 %v144, 4294901760
  %1125 = vmatpush.msra.mxu0 %v1124
  %v1126 = vand.u32 %v143, 4294901760
  %1127 = vmatpush.msra.mxu0 %v1126
  %v1128 = vand.u32 %v142, 4294901760
  %1129 = vmatpush.msra.mxu0 %v1128
  %v1130 = vand.u32 %v141, 4294901760
  %1131 = vmatpush.msra.mxu0 %v1130
  %v1132 = vand.u32 %v140, 4294901760
  %1133 = vmatpush.msra.mxu0 %v1132
  %v1134 = vand.u32 %v139, 4294901760
  %1135 = vmatpush.msra.mxu0 %v1134
  %v1136 = vand.u32 %v138, 4294901760
  %1137 = vmatpush.msra.mxu0 %v1136
  %v1138 = vand.u32 %v137, 4294901760
  %1139 = vmatpush.msra.mxu0 %v1138
  %v1140 = vand.u32 %v136, 4294901760
  %1141 = vmatpush.msra.mxu0 %v1140
  %v1142 = vand.u32 %v135, 4294901760
  %1143 = vmatpush.msra.mxu0 %v1142
  %v1144 = vand.u32 %v134, 4294901760
  %1145 = vmatpush.msra.mxu0 %v1144
  %v1146 = vand.u32 %v133, 4294901760
  %1147 = vmatpush.msra.mxu0 %v1146
  %v1148 = vand.u32 %v793, 4294901760
  %v1149 = vsub.f32 %v793, %v1148
  %v1150 = vand.u32 %v1149, 4294901760
  %1151 = vmatmul.f32.gmra.mxu0 %v1150
  %v1152 = vpop.f32.mrf.mxu0
  %v1153 = vadd.f32 %v1079, %v1152
  %v1154 = vand.u32 %v794, 4294901760
  %v1155 = vsub.f32 %v794, %v1154
  %v1156 = vand.u32 %v1155, 4294901760
  %1157 = vmatmul.f32.gmra.mxu0 %v1156
  %v1158 = vpop.f32.mrf.mxu0
  %v1159 = vadd.f32 %v1084, %v1158
  %v1160 = vand.u32 %v795, 4294901760
  %v1161 = vsub.f32 %v795, %v1160
  %v1162 = vand.u32 %v1161, 4294901760
  %1163 = vmatmul.f32.gmra.mxu0 %v1162
  %v1164 = vpop.f32.mrf.mxu0
  %v1165 = vadd.f32 %v1089, %v1164
  %v1166 = vand.u32 %v796, 4294901760
  %v1167 = vsub.f32 %v796, %v1166
  %v1168 = vand.u32 %v1167, 4294901760
  %1169 = vmatmul.f32.gmra.mxu0 %v1168
  %v1170 = vpop.f32.mrf.mxu0
  %v1171 = vadd.f32 %v1094, %v1170
  %v1172 = vand.u32 %v797, 4294901760
  %v1173 = vsub.f32 %v797, %v1172
  %v1174 = vand.u32 %v1173, 4294901760
  %1175 = vmatmul.f32.gmra.mxu0 %v1174
  %v1176 = vpop.f32.mrf.mxu0
  %v1177 = vadd.f32 %v1099, %v1176
  %v1178 = vand.u32 %v798, 4294901760
  %v1179 = vsub.f32 %v798, %v1178
  %v1180 = vand.u32 %v1179, 4294901760
  %1181 = vmatmul.f32.gmra.mxu0 %v1180
  %v1182 = vpop.f32.mrf.mxu0
  %v1183 = vadd.f32 %v1104, %v1182
  %v1184 = vand.u32 %v799, 4294901760
  %v1185 = vsub.f32 %v799, %v1184
  %v1186 = vand.u32 %v1185, 4294901760
  %1187 = vmatmul.f32.gmra.mxu0 %v1186
  %v1188 = vpop.f32.mrf.mxu0
  %v1189 = vadd.f32 %v1109, %v1188
  %v1190 = vand.u32 %v800, 4294901760
  %v1191 = vsub.f32 %v800, %v1190
  %v1192 = vand.u32 %v1191, 4294901760
  %1193 = vmatmul.f32.gmra.mxu0 %v1192
  %v1194 = vpop.f32.mrf.mxu0
  %v1195 = vadd.f32 %v1114, %v1194
  %1196 = vdwg.mxu0
  %v1197 = vand.u32 %v148, 4294901760
  %v1198 = vsub.f32 %v148, %v1197
  %v1199 = vand.u32 %v1198, 4294901760
  %1200 = vmatpush.msra.mxu0 %v1199
  %v1201 = vand.u32 %v147, 4294901760
  %v1202 = vsub.f32 %v147, %v1201
  %v1203 = vand.u32 %v1202, 4294901760
  %1204 = vmatpush.msra.mxu0 %v1203
  %v1205 = vand.u32 %v146, 4294901760
  %v1206 = vsub.f32 %v146, %v1205
  %v1207 = vand.u32 %v1206, 4294901760
  %1208 = vmatpush.msra.mxu0 %v1207
  %v1209 = vand.u32 %v145, 4294901760
  %v1210 = vsub.f32 %v145, %v1209
  %v1211 = vand.u32 %v1210, 4294901760
  %1212 = vmatpush.msra.mxu0 %v1211
  %v1213 = vand.u32 %v144, 4294901760
  %v1214 = vsub.f32 %v144, %v1213
  %v1215 = vand.u32 %v1214, 4294901760
  %1216 = vmatpush.msra.mxu0 %v1215
  %v1217 = vand.u32 %v143, 4294901760
  %v1218 = vsub.f32 %v143, %v1217
  %v1219 = vand.u32 %v1218, 4294901760
  %1220 = vmatpush.msra.mxu0 %v1219
  %v1221 = vand.u32 %v142, 4294901760
  %v1222 = vsub.f32 %v142, %v1221
  %v1223 = vand.u32 %v1222, 4294901760
  %1224 = vmatpush.msra.mxu0 %v1223
  %v1225 = vand.u32 %v141, 4294901760
  %v1226 = vsub.f32 %v141, %v1225
  %v1227 = vand.u32 %v1226, 4294901760
  %1228 = vmatpush.msra.mxu0 %v1227
  %v1229 = vand.u32 %v140, 4294901760
  %v1230 = vsub.f32 %v140, %v1229
  %v1231 = vand.u32 %v1230, 4294901760
  %1232 = vmatpush.msra.mxu0 %v1231
  %v1233 = vand.u32 %v139, 4294901760
  %v1234 = vsub.f32 %v139, %v1233
  %v1235 = vand.u32 %v1234, 4294901760
  %1236 = vmatpush.msra.mxu0 %v1235
  %v1237 = vand.u32 %v138, 4294901760
  %v1238 = vsub.f32 %v138, %v1237
  %v1239 = vand.u32 %v1238, 4294901760
  %1240 = vmatpush.msra.mxu0 %v1239
  %v1241 = vand.u32 %v137, 4294901760
  %v1242 = vsub.f32 %v137, %v1241
  %v1243 = vand.u32 %v1242, 4294901760
  %1244 = vmatpush.msra.mxu0 %v1243
  %v1245 = vand.u32 %v136, 4294901760
  %v1246 = vsub.f32 %v136, %v1245
  %v1247 = vand.u32 %v1246, 4294901760
  %1248 = vmatpush.msra.mxu0 %v1247
  %v1249 = vand.u32 %v135, 4294901760
  %v1250 = vsub.f32 %v135, %v1249
  %v1251 = vand.u32 %v1250, 4294901760
  %1252 = vmatpush.msra.mxu0 %v1251
  %v1253 = vand.u32 %v134, 4294901760
  %v1254 = vsub.f32 %v134, %v1253
  %v1255 = vand.u32 %v1254, 4294901760
  %1256 = vmatpush.msra.mxu0 %v1255
  %v1257 = vand.u32 %v133, 4294901760
  %v1258 = vsub.f32 %v133, %v1257
  %v1259 = vand.u32 %v1258, 4294901760
  %1260 = vmatpush.msra.mxu0 %v1259
  %v1261 = vand.u32 %v793, 4294901760
  %1262 = vmatmul.f32.gmra.mxu0 %v1261
  %v1263 = vpop.f32.mrf.mxu0
  %v1264 = vadd.f32 %v1153, %v1263
  %v1265 = vand.u32 %v794, 4294901760
  %1266 = vmatmul.f32.gmra.mxu0 %v1265
  %v1267 = vpop.f32.mrf.mxu0
  %v1268 = vadd.f32 %v1159, %v1267
  %v1269 = vand.u32 %v795, 4294901760
  %1270 = vmatmul.f32.gmra.mxu0 %v1269
  %v1271 = vpop.f32.mrf.mxu0
  %v1272 = vadd.f32 %v1165, %v1271
  %v1273 = vand.u32 %v796, 4294901760
  %1274 = vmatmul.f32.gmra.mxu0 %v1273
  %v1275 = vpop.f32.mrf.mxu0
  %v1276 = vadd.f32 %v1171, %v1275
  %v1277 = vand.u32 %v797, 4294901760
  %1278 = vmatmul.f32.gmra.mxu0 %v1277
  %v1279 = vpop.f32.mrf.mxu0
  %v1280 = vadd.f32 %v1177, %v1279
  %v1281 = vand.u32 %v798, 4294901760
  %1282 = vmatmul.f32.gmra.mxu0 %v1281
  %v1283 = vpop.f32.mrf.mxu0
  %v1284 = vadd.f32 %v1183, %v1283
  %v1285 = vand.u32 %v799, 4294901760
  %1286 = vmatmul.f32.gmra.mxu0 %v1285
  %v1287 = vpop.f32.mrf.mxu0
  %v1288 = vadd.f32 %v1189, %v1287
  %v1289 = vand.u32 %v800, 4294901760
  %1290 = vmatmul.f32.gmra.mxu0 %v1289
  %v1291 = vpop.f32.mrf.mxu0
  %v1292 = vadd.f32 %v1195, %v1291
  %1293 = vdwg.mxu0
  %v1294 = vand.u32 %v148, 4294901760
  %1295 = vmatpush.msra.mxu0 %v1294
  %v1296 = vand.u32 %v147, 4294901760
  %1297 = vmatpush.msra.mxu0 %v1296
  %v1298 = vand.u32 %v146, 4294901760
  %1299 = vmatpush.msra.mxu0 %v1298
  %v1300 = vand.u32 %v145, 4294901760
  %1301 = vmatpush.msra.mxu0 %v1300
  %v1302 = vand.u32 %v144, 4294901760
  %1303 = vmatpush.msra.mxu0 %v1302
  %v1304 = vand.u32 %v143, 4294901760
  %1305 = vmatpush.msra.mxu0 %v1304
  %v1306 = vand.u32 %v142, 4294901760
  %1307 = vmatpush.msra.mxu0 %v1306
  %v1308 = vand.u32 %v141, 4294901760
  %1309 = vmatpush.msra.mxu0 %v1308
  %v1310 = vand.u32 %v140, 4294901760
  %1311 = vmatpush.msra.mxu0 %v1310
  %v1312 = vand.u32 %v139, 4294901760
  %1313 = vmatpush.msra.mxu0 %v1312
  %v1314 = vand.u32 %v138, 4294901760
  %1315 = vmatpush.msra.mxu0 %v1314
  %v1316 = vand.u32 %v137, 4294901760
  %1317 = vmatpush.msra.mxu0 %v1316
  %v1318 = vand.u32 %v136, 4294901760
  %1319 = vmatpush.msra.mxu0 %v1318
  %v1320 = vand.u32 %v135, 4294901760
  %1321 = vmatpush.msra.mxu0 %v1320
  %v1322 = vand.u32 %v134, 4294901760
  %1323 = vmatpush.msra.mxu0 %v1322
  %v1324 = vand.u32 %v133, 4294901760
  %1325 = vmatpush.msra.mxu0 %v1324
  %v1326 = vand.u32 %v793, 4294901760
  %1327 = vmatmul.f32.gmra.mxu0 %v1326
  %v1328 = vpop.f32.mrf.mxu0
  %v1329 = vadd.f32 %v1264, %v1328
  %v1330 = vand.u32 %v794, 4294901760
  %1331 = vmatmul.f32.gmra.mxu0 %v1330
  %v1332 = vpop.f32.mrf.mxu0
  %v1333 = vadd.f32 %v1268, %v1332
  %v1334 = vand.u32 %v795, 4294901760
  %1335 = vmatmul.f32.gmra.mxu0 %v1334
  %v1336 = vpop.f32.mrf.mxu0
  %v1337 = vadd.f32 %v1272, %v1336
  %v1338 = vand.u32 %v796, 4294901760
  %1339 = vmatmul.f32.gmra.mxu0 %v1338
  %v1340 = vpop.f32.mrf.mxu0
  %v1341 = vadd.f32 %v1276, %v1340
  %v1342 = vand.u32 %v797, 4294901760
  %1343 = vmatmul.f32.gmra.mxu0 %v1342
  %v1344 = vpop.f32.mrf.mxu0
  %v1345 = vadd.f32 %v1280, %v1344
  %v1346 = vand.u32 %v798, 4294901760
  %1347 = vmatmul.f32.gmra.mxu0 %v1346
  %v1348 = vpop.f32.mrf.mxu0
  %v1349 = vadd.f32 %v1284, %v1348
  %v1350 = vand.u32 %v799, 4294901760
  %1351 = vmatmul.f32.gmra.mxu0 %v1350
  %v1352 = vpop.f32.mrf.mxu0
  %v1353 = vadd.f32 %v1288, %v1352
  %v1354 = vand.u32 %v800, 4294901760
  %1355 = vmatmul.f32.gmra.mxu0 %v1354
  %v1356 = vpop.f32.mrf.mxu0
  %v1357 = vadd.f32 %v1292, %v1356
  %1358 = vdwg.mxu0
  %v1359 = vrsqrt.pop %v1329
  %v1360 = vmul.f32 %v1359, %v1329
  %v1361 = vmul.f32 %v1360, %v1359
  %v1362 = vmul.f32 0.5, %v1361
  %v1363 = vsub.f32 1.5, %v1362
  %v1364 = vmul.f32 %v1359, %v1363
  %vm1365 = vweird.f32 %v1329
  %vm1366 = vweird.f32 %v1359
  %vm1367 = vmor %vm1365, %vm1366
  %v1368 = vsel %vm1367, %v1359, %v1364
  %v1369 = vrsqrt.pop %v1333
  %v1370 = vmul.f32 %v1369, %v1333
  %v1371 = vmul.f32 %v1370, %v1369
  %v1372 = vmul.f32 0.5, %v1371
  %v1373 = vsub.f32 1.5, %v1372
  %v1374 = vmul.f32 %v1369, %v1373
  %vm1375 = vweird.f32 %v1333
  %vm1376 = vweird.f32 %v1369
  %vm1377 = vmor %vm1375, %vm1376
  %v1378 = vsel %vm1377, %v1369, %v1374
  %v1379 = vrsqrt.pop %v1337
  %v1380 = vmul.f32 %v1379, %v1337
  %v1381 = vmul.f32 %v1380, %v1379
  %v1382 = vmul.f32 0.5, %v1381
  %v1383 = vsub.f32 1.5, %v1382
  %v1384 = vmul.f32 %v1379, %v1383
  %vm1385 = vweird.f32 %v1337
  %vm1386 = vweird.f32 %v1379
  %vm1387 = vmor %vm1385, %vm1386
  %v1388 = vsel %vm1387, %v1379, %v1384
  %v1389 = vrsqrt.pop %v1341
  %v1390 = vmul.f32 %v1389, %v1341
  %v1391 = vmul.f32 %v1390, %v1389
  %v1392 = vmul.f32 0.5, %v1391
  %v1393 = vsub.f32 1.5, %v1392
  %v1394 = vmul.f32 %v1389, %v1393
  %vm1395 = vweird.f32 %v1341
  %vm1396 = vweird.f32 %v1389
  %vm1397 = vmor %vm1395, %vm1396
  %v1398 = vsel %vm1397, %v1389, %v1394
  %v1399 = vrsqrt.pop %v1345
  %v1400 = vmul.f32 %v1399, %v1345
  %v1401 = vmul.f32 %v1400, %v1399
  %v1402 = vmul.f32 0.5, %v1401
  %v1403 = vsub.f32 1.5, %v1402
  %v1404 = vmul.f32 %v1399, %v1403
  %vm1405 = vweird.f32 %v1345
  %vm1406 = vweird.f32 %v1399
  %vm1407 = vmor %vm1405, %vm1406
  %v1408 = vsel %vm1407, %v1399, %v1404
  %v1409 = vrsqrt.pop %v1349
  %v1410 = vmul.f32 %v1409, %v1349
  %v1411 = vmul.f32 %v1410, %v1409
  %v1412 = vmul.f32 0.5, %v1411
  %v1413 = vsub.f32 1.5, %v1412
  %v1414 = vmul.f32 %v1409, %v1413
  %vm1415 = vweird.f32 %v1349
  %vm1416 = vweird.f32 %v1409
  %vm1417 = vmor %vm1415, %vm1416
  %v1418 = vsel %vm1417, %v1409, %v1414
  %v1419 = vrsqrt.pop %v1353
  %v1420 = vmul.f32 %v1419, %v1353
  %v1421 = vmul.f32 %v1420, %v1419
  %v1422 = vmul.f32 0.5, %v1421
  %v1423 = vsub.f32 1.5, %v1422
  %v1424 = vmul.f32 %v1419, %v1423
  %vm1425 = vweird.f32 %v1353
  %vm1426 = vweird.f32 %v1419
  %vm1427 = vmor %vm1425, %vm1426
  %v1428 = vsel %vm1427, %v1419, %v1424
  %v1429 = vrsqrt.pop %v1357
  %v1430 = vmul.f32 %v1429, %v1357
  %v1431 = vmul.f32 %v1430, %v1429
  %v1432 = vmul.f32 0.5, %v1431
  %v1433 = vsub.f32 1.5, %v1432
  %v1434 = vmul.f32 %v1429, %v1433
  %vm1435 = vweird.f32 %v1357
  %vm1436 = vweird.f32 %v1429
  %vm1437 = vmor %vm1435, %vm1436
  %v1438 = vsel %vm1437, %v1429, %v1434
  %v1439 = vmul.f32 %v785, %v1368
  %v1440 = vmul.f32 %v786, %v1378
  %v1441 = vmul.f32 %v787, %v1388
  %v1442 = vmul.f32 %v788, %v1398
  %v1443 = vmul.f32 %v789, %v1408
  %v1444 = vmul.f32 %v790, %v1418
  %v1445 = vmul.f32 %v791, %v1428
  %v1446 = vmul.f32 %v792, %v1438
  %v1447 = vld [vmem:[%s6] sm:$0x1]
  %v1449 = vperm.slane %v1447, 0
  %v1451 = vmul.f32 %v1439, %v1449
  %v1452 = vmul.f32 %v1440, %v1449
  %v1453 = vmul.f32 %v1441, %v1449
  %v1454 = vmul.f32 %v1442, %v1449
  %v1455 = vmul.f32 %v1443, %v1449
  %v1456 = vmul.f32 %v1444, %v1449
  %v1457 = vmul.f32 %v1445, %v1449
  %v1458 = vmul.f32 %v1446, %v1449
  %v1459 = vld [vmem:[%s7] sm:$0x1]
  %v1461 = vperm.slane %v1459, 0
  %v1463 = vadd.f32 %v1451, %v1461
  %v1464 = vadd.f32 %v1452, %v1461
  %v1465 = vadd.f32 %v1453, %v1461
  %v1466 = vadd.f32 %v1454, %v1461
  %v1467 = vadd.f32 %v1455, %v1461
  %v1468 = vadd.f32 %v1456, %v1461
  %v1469 = vadd.f32 %v1457, %v1461
  %v1470 = vadd.f32 %v1458, %v1461
  %v1471 = vmax.f32 %v1463, 0.0
  %v1472 = vmax.f32 %v1464, 0.0
  %v1473 = vmax.f32 %v1465, 0.0
  %v1474 = vmax.f32 %v1466, 0.0
  %v1475 = vmax.f32 %v1467, 0.0
  %v1476 = vmax.f32 %v1468, 0.0
  %v1477 = vmax.f32 %v1469, 0.0
  %v1478 = vmax.f32 %v1470, 0.0
  %v1479 = vmul.f32 %v1471, %v110
  %v1480 = vmul.f32 %v1472, %v113
  %v1481 = vmul.f32 %v1473, %v116
  %v1482 = vmul.f32 %v1474, %v119
  %v1483 = vmul.f32 %v1475, %v122
  %v1484 = vmul.f32 %v1476, %v125
  %v1485 = vmul.f32 %v1477, %v128
  %v1486 = vmul.f32 %v1478, %v131
  %v1487 = vrot.slane %v1479, 4
  %v1488 = vmax.f32 %v1479, %v1487
  %v1489 = vrot.slane %v1488, 2
  %v1490 = vmax.f32 %v1488, %v1489
  %v1491 = vrot.slane %v1490, 1
  %v1492 = vmax.f32 %v1490, %v1491
  %v1493 = vrot.slane %v1480, 4
  %v1494 = vmax.f32 %v1480, %v1493
  %v1495 = vrot.slane %v1494, 2
  %v1496 = vmax.f32 %v1494, %v1495
  %v1497 = vrot.slane %v1496, 1
  %v1498 = vmax.f32 %v1496, %v1497
  %v1499 = vrot.slane %v1481, 4
  %v1500 = vmax.f32 %v1481, %v1499
  %v1501 = vrot.slane %v1500, 2
  %v1502 = vmax.f32 %v1500, %v1501
  %v1503 = vrot.slane %v1502, 1
  %v1504 = vmax.f32 %v1502, %v1503
  %v1505 = vrot.slane %v1482, 4
  %v1506 = vmax.f32 %v1482, %v1505
  %v1507 = vrot.slane %v1506, 2
  %v1508 = vmax.f32 %v1506, %v1507
  %v1509 = vrot.slane %v1508, 1
  %v1510 = vmax.f32 %v1508, %v1509
  %v1511 = vrot.slane %v1483, 4
  %v1512 = vmax.f32 %v1483, %v1511
  %v1513 = vrot.slane %v1512, 2
  %v1514 = vmax.f32 %v1512, %v1513
  %v1515 = vrot.slane %v1514, 1
  %v1516 = vmax.f32 %v1514, %v1515
  %v1517 = vrot.slane %v1484, 4
  %v1518 = vmax.f32 %v1484, %v1517
  %v1519 = vrot.slane %v1518, 2
  %v1520 = vmax.f32 %v1518, %v1519
  %v1521 = vrot.slane %v1520, 1
  %v1522 = vmax.f32 %v1520, %v1521
  %v1523 = vrot.slane %v1485, 4
  %v1524 = vmax.f32 %v1485, %v1523
  %v1525 = vrot.slane %v1524, 2
  %v1526 = vmax.f32 %v1524, %v1525
  %v1527 = vrot.slane %v1526, 1
  %v1528 = vmax.f32 %v1526, %v1527
  %v1529 = vrot.slane %v1486, 4
  %v1530 = vmax.f32 %v1486, %v1529
  %v1531 = vrot.slane %v1530, 2
  %v1532 = vmax.f32 %v1530, %v1531
  %v1533 = vrot.slane %v1532, 1
  %v1534 = vmax.f32 %v1532, %v1533
  %v1535 = vld [vmem:[%s8] sm:$0xff]
  %v1536 = vld [vmem:[%s8 + $0x8] sm:$0xff]
  %v1537 = vld [vmem:[%s8 + $0x10] sm:$0xff]
  %v1538 = vld [vmem:[%s8 + $0x18] sm:$0xff]
  %v1539 = vld [vmem:[%s8 + $0x20] sm:$0xff]
  %v1540 = vld [vmem:[%s8 + $0x28] sm:$0xff]
  %v1541 = vld [vmem:[%s8 + $0x30] sm:$0xff]
  %v1542 = vld [vmem:[%s8 + $0x38] sm:$0xff]
  %v1543 = vld [vmem:[%s8 + $0x40] sm:$0xff]
  %v1544 = vld [vmem:[%s8 + $0x48] sm:$0xff]
  %v1545 = vld [vmem:[%s8 + $0x50] sm:$0xff]
  %v1546 = vld [vmem:[%s8 + $0x58] sm:$0xff]
  %v1547 = vld [vmem:[%s8 + $0x60] sm:$0xff]
  %v1548 = vld [vmem:[%s8 + $0x68] sm:$0xff]
  %v1549 = vld [vmem:[%s8 + $0x70] sm:$0xff]
  %v1550 = vld [vmem:[%s8 + $0x78] sm:$0xff]
  %1551 = vmatpush.msra.mxu0 %v1550
  %1552 = vmatpush.msra.mxu0 %v1549
  %1553 = vmatpush.msra.mxu0 %v1548
  %1554 = vmatpush.msra.mxu0 %v1547
  %1555 = vmatpush.msra.mxu0 %v1546
  %1556 = vmatpush.msra.mxu0 %v1545
  %1557 = vmatpush.msra.mxu0 %v1544
  %1558 = vmatpush.msra.mxu0 %v1543
  %1559 = vmatpush.msra.mxu0 %v1542
  %1560 = vmatpush.msra.mxu0 %v1541
  %1561 = vmatpush.msra.mxu0 %v1540
  %1562 = vmatpush.msra.mxu0 %v1539
  %1563 = vmatpush.msra.mxu0 %v1538
  %1564 = vmatpush.msra.mxu0 %v1537
  %1565 = vmatpush.msra.mxu0 %v1536
  %1566 = vmatpush.msra.mxu0 %v1535
  %1567 = vmatmul.f32.gmra.mxu0 %v1471
  %v1568 = vpop.f32.mrf.mxu0
  %v1569 = vadd.f32 0.0, %v1568
  %1570 = vmatmul.f32.gmra.mxu0 %v1472
  %v1571 = vpop.f32.mrf.mxu0
  %v1572 = vadd.f32 0.0, %v1571
  %1573 = vmatmul.f32.gmra.mxu0 %v1473
  %v1574 = vpop.f32.mrf.mxu0
  %v1575 = vadd.f32 0.0, %v1574
  %1576 = vmatmul.f32.gmra.mxu0 %v1474
  %v1577 = vpop.f32.mrf.mxu0
  %v1578 = vadd.f32 0.0, %v1577
  %1579 = vmatmul.f32.gmra.mxu0 %v1475
  %v1580 = vpop.f32.mrf.mxu0
  %v1581 = vadd.f32 0.0, %v1580
  %1582 = vmatmul.f32.gmra.mxu0 %v1476
  %v1583 = vpop.f32.mrf.mxu0
  %v1584 = vadd.f32 0.0, %v1583
  %1585 = vmatmul.f32.gmra.mxu0 %v1477
  %v1586 = vpop.f32.mrf.mxu0
  %v1587 = vadd.f32 0.0, %v1586
  %1588 = vmatmul.f32.gmra.mxu0 %v1478
  %v1589 = vpop.f32.mrf.mxu0
  %v1590 = vadd.f32 0.0, %v1589
  %1591 = vdwg.mxu0
  %v1592 = vld [vmem:[%s9] sm:$0xff]
  %v1593 = vld [vmem:[%s9 + $0x8] sm:$0xff]
  %v1594 = vld [vmem:[%s9 + $0x10] sm:$0xff]
  %v1595 = vld [vmem:[%s9 + $0x18] sm:$0xff]
  %v1596 = vld [vmem:[%s9 + $0x20] sm:$0xff]
  %v1597 = vld [vmem:[%s9 + $0x28] sm:$0xff]
  %v1598 = vld [vmem:[%s9 + $0x30] sm:$0xff]
  %v1599 = vld [vmem:[%s9 + $0x38] sm:$0xff]
  %v1600 = vld [vmem:[%s9 + $0x40] sm:$0xff]
  %v1601 = vld [vmem:[%s9 + $0x48] sm:$0xff]
  %v1602 = vld [vmem:[%s9 + $0x50] sm:$0xff]
  %v1603 = vld [vmem:[%s9 + $0x58] sm:$0xff]
  %v1604 = vld [vmem:[%s9 + $0x60] sm:$0xff]
  %v1605 = vld [vmem:[%s9 + $0x68] sm:$0xff]
  %v1606 = vld [vmem:[%s9 + $0x70] sm:$0xff]
  %v1607 = vld [vmem:[%s9 + $0x78] sm:$0xff]
  %vm1616 = vcmask 1041409
  %v1617 = vsel %vm1616, %v1498, %v1492
  %vm1618 = vcmask 1042434
  %v1619 = vsel %vm1618, %v1504, %v1617
  %vm1620 = vcmask 1043459
  %v1621 = vsel %vm1620, %v1510, %v1619
  %vm1622 = vcmask 1044484
  %v1623 = vsel %vm1622, %v1516, %v1621
  %vm1624 = vcmask 1045509
  %v1625 = vsel %vm1624, %v1522, %v1623
  %vm1626 = vcmask 1046534
  %v1627 = vsel %vm1626, %v1528, %v1625
  %vm1628 = vcmask 1047559
  %v1629 = vsel %vm1628, %v1534, %v1627
  %1631 = vmatpush.msra.mxu0 %v1607
  %1632 = vmatpush.msra.mxu0 %v1606
  %1633 = vmatpush.msra.mxu0 %v1605
  %1634 = vmatpush.msra.mxu0 %v1604
  %1635 = vmatpush.msra.mxu0 %v1603
  %1636 = vmatpush.msra.mxu0 %v1602
  %1637 = vmatpush.msra.mxu0 %v1601
  %1638 = vmatpush.msra.mxu0 %v1600
  %1639 = vmatpush.msra.mxu0 %v1599
  %1640 = vmatpush.msra.mxu0 %v1598
  %1641 = vmatpush.msra.mxu0 %v1597
  %1642 = vmatpush.msra.mxu0 %v1596
  %1643 = vmatpush.msra.mxu0 %v1595
  %1644 = vmatpush.msra.mxu0 %v1594
  %1645 = vmatpush.msra.mxu0 %v1593
  %1646 = vmatpush.msra.mxu0 %v1592
  %1647 = vmatmul.f32.gmra.mxu0 %v1629
  %v1648 = vpop.f32.mrf.mxu0
  %v1649 = vadd.f32 0.0, %v1648
  %1650 = vdwg.mxu0
  %v1652 = vrot.slane %v1649, 1
  %v1653 = vrot.slane %v1649, 2
  %v1654 = vrot.slane %v1649, 3
  %v1655 = vrot.slane %v1649, 4
  %v1656 = vrot.slane %v1649, 5
  %v1657 = vrot.slane %v1649, 6
  %v1658 = vrot.slane %v1649, 7
  %v1659 = vperm.slane %v1649, 0
  %v1660 = vperm.slane %v1652, 0
  %v1661 = vperm.slane %v1653, 0
  %v1662 = vperm.slane %v1654, 0
  %v1663 = vperm.slane %v1655, 0
  %v1664 = vperm.slane %v1656, 0
  %v1665 = vperm.slane %v1657, 0
  %v1666 = vperm.slane %v1658, 0
  %v1675 = vadd.f32 %v1569, %v1659
  %v1676 = vadd.f32 %v1572, %v1660
  %v1677 = vadd.f32 %v1575, %v1661
  %v1678 = vadd.f32 %v1578, %v1662
  %v1679 = vadd.f32 %v1581, %v1663
  %v1680 = vadd.f32 %v1584, %v1664
  %v1681 = vadd.f32 %v1587, %v1665
  %v1682 = vadd.f32 %v1590, %v1666
  %v1683 = vld [vmem:[%s10] sm:$0x1]
  %v1685 = vperm.slane %v1683, 0
  %v1687 = vadd.f32 %v1675, %v1685
  %v1688 = vadd.f32 %v1676, %v1685
  %v1689 = vadd.f32 %v1677, %v1685
  %v1690 = vadd.f32 %v1678, %v1685
  %v1691 = vadd.f32 %v1679, %v1685
  %v1692 = vadd.f32 %v1680, %v1685
  %v1693 = vadd.f32 %v1681, %v1685
  %v1694 = vadd.f32 %v1682, %v1685
  %v1695 = vand.u32 %v148, 4294901760
  %1696 = vmatpush.msra.mxu0 %v1695
  %v1697 = vand.u32 %v147, 4294901760
  %1698 = vmatpush.msra.mxu0 %v1697
  %v1699 = vand.u32 %v146, 4294901760
  %1700 = vmatpush.msra.mxu0 %v1699
  %v1701 = vand.u32 %v145, 4294901760
  %1702 = vmatpush.msra.mxu0 %v1701
  %v1703 = vand.u32 %v144, 4294901760
  %1704 = vmatpush.msra.mxu0 %v1703
  %v1705 = vand.u32 %v143, 4294901760
  %1706 = vmatpush.msra.mxu0 %v1705
  %v1707 = vand.u32 %v142, 4294901760
  %1708 = vmatpush.msra.mxu0 %v1707
  %v1709 = vand.u32 %v141, 4294901760
  %1710 = vmatpush.msra.mxu0 %v1709
  %v1711 = vand.u32 %v140, 4294901760
  %1712 = vmatpush.msra.mxu0 %v1711
  %v1713 = vand.u32 %v139, 4294901760
  %1714 = vmatpush.msra.mxu0 %v1713
  %v1715 = vand.u32 %v138, 4294901760
  %1716 = vmatpush.msra.mxu0 %v1715
  %v1717 = vand.u32 %v137, 4294901760
  %1718 = vmatpush.msra.mxu0 %v1717
  %v1719 = vand.u32 %v136, 4294901760
  %1720 = vmatpush.msra.mxu0 %v1719
  %v1721 = vand.u32 %v135, 4294901760
  %1722 = vmatpush.msra.mxu0 %v1721
  %v1723 = vand.u32 %v134, 4294901760
  %1724 = vmatpush.msra.mxu0 %v1723
  %v1725 = vand.u32 %v133, 4294901760
  %1726 = vmatpush.msra.mxu0 %v1725
  %v1727 = vand.u32 %v1687, 4294901760
  %v1728 = vsub.f32 %v1687, %v1727
  %v1729 = vand.u32 %v1728, 4294901760
  %v1730 = vsub.f32 %v1728, %v1729
  %v1731 = vand.u32 %v1730, 4294901760
  %1732 = vmatmul.f32.gmra.mxu0 %v1731
  %v1733 = vpop.f32.mrf.mxu0
  %v1734 = vadd.f32 0.0, %v1733
  %v1735 = vand.u32 %v1688, 4294901760
  %v1736 = vsub.f32 %v1688, %v1735
  %v1737 = vand.u32 %v1736, 4294901760
  %v1738 = vsub.f32 %v1736, %v1737
  %v1739 = vand.u32 %v1738, 4294901760
  %1740 = vmatmul.f32.gmra.mxu0 %v1739
  %v1741 = vpop.f32.mrf.mxu0
  %v1742 = vadd.f32 0.0, %v1741
  %v1743 = vand.u32 %v1689, 4294901760
  %v1744 = vsub.f32 %v1689, %v1743
  %v1745 = vand.u32 %v1744, 4294901760
  %v1746 = vsub.f32 %v1744, %v1745
  %v1747 = vand.u32 %v1746, 4294901760
  %1748 = vmatmul.f32.gmra.mxu0 %v1747
  %v1749 = vpop.f32.mrf.mxu0
  %v1750 = vadd.f32 0.0, %v1749
  %v1751 = vand.u32 %v1690, 4294901760
  %v1752 = vsub.f32 %v1690, %v1751
  %v1753 = vand.u32 %v1752, 4294901760
  %v1754 = vsub.f32 %v1752, %v1753
  %v1755 = vand.u32 %v1754, 4294901760
  %1756 = vmatmul.f32.gmra.mxu0 %v1755
  %v1757 = vpop.f32.mrf.mxu0
  %v1758 = vadd.f32 0.0, %v1757
  %v1759 = vand.u32 %v1691, 4294901760
  %v1760 = vsub.f32 %v1691, %v1759
  %v1761 = vand.u32 %v1760, 4294901760
  %v1762 = vsub.f32 %v1760, %v1761
  %v1763 = vand.u32 %v1762, 4294901760
  %1764 = vmatmul.f32.gmra.mxu0 %v1763
  %v1765 = vpop.f32.mrf.mxu0
  %v1766 = vadd.f32 0.0, %v1765
  %v1767 = vand.u32 %v1692, 4294901760
  %v1768 = vsub.f32 %v1692, %v1767
  %v1769 = vand.u32 %v1768, 4294901760
  %v1770 = vsub.f32 %v1768, %v1769
  %v1771 = vand.u32 %v1770, 4294901760
  %1772 = vmatmul.f32.gmra.mxu0 %v1771
  %v1773 = vpop.f32.mrf.mxu0
  %v1774 = vadd.f32 0.0, %v1773
  %v1775 = vand.u32 %v1693, 4294901760
  %v1776 = vsub.f32 %v1693, %v1775
  %v1777 = vand.u32 %v1776, 4294901760
  %v1778 = vsub.f32 %v1776, %v1777
  %v1779 = vand.u32 %v1778, 4294901760
  %1780 = vmatmul.f32.gmra.mxu0 %v1779
  %v1781 = vpop.f32.mrf.mxu0
  %v1782 = vadd.f32 0.0, %v1781
  %v1783 = vand.u32 %v1694, 4294901760
  %v1784 = vsub.f32 %v1694, %v1783
  %v1785 = vand.u32 %v1784, 4294901760
  %v1786 = vsub.f32 %v1784, %v1785
  %v1787 = vand.u32 %v1786, 4294901760
  %1788 = vmatmul.f32.gmra.mxu0 %v1787
  %v1789 = vpop.f32.mrf.mxu0
  %v1790 = vadd.f32 0.0, %v1789
  %1791 = vdwg.mxu0
  %v1792 = vand.u32 %v148, 4294901760
  %v1793 = vsub.f32 %v148, %v1792
  %v1794 = vand.u32 %v1793, 4294901760
  %v1795 = vsub.f32 %v1793, %v1794
  %v1796 = vand.u32 %v1795, 4294901760
  %1797 = vmatpush.msra.mxu0 %v1796
  %v1798 = vand.u32 %v147, 4294901760
  %v1799 = vsub.f32 %v147, %v1798
  %v1800 = vand.u32 %v1799, 4294901760
  %v1801 = vsub.f32 %v1799, %v1800
  %v1802 = vand.u32 %v1801, 4294901760
  %1803 = vmatpush.msra.mxu0 %v1802
  %v1804 = vand.u32 %v146, 4294901760
  %v1805 = vsub.f32 %v146, %v1804
  %v1806 = vand.u32 %v1805, 4294901760
  %v1807 = vsub.f32 %v1805, %v1806
  %v1808 = vand.u32 %v1807, 4294901760
  %1809 = vmatpush.msra.mxu0 %v1808
  %v1810 = vand.u32 %v145, 4294901760
  %v1811 = vsub.f32 %v145, %v1810
  %v1812 = vand.u32 %v1811, 4294901760
  %v1813 = vsub.f32 %v1811, %v1812
  %v1814 = vand.u32 %v1813, 4294901760
  %1815 = vmatpush.msra.mxu0 %v1814
  %v1816 = vand.u32 %v144, 4294901760
  %v1817 = vsub.f32 %v144, %v1816
  %v1818 = vand.u32 %v1817, 4294901760
  %v1819 = vsub.f32 %v1817, %v1818
  %v1820 = vand.u32 %v1819, 4294901760
  %1821 = vmatpush.msra.mxu0 %v1820
  %v1822 = vand.u32 %v143, 4294901760
  %v1823 = vsub.f32 %v143, %v1822
  %v1824 = vand.u32 %v1823, 4294901760
  %v1825 = vsub.f32 %v1823, %v1824
  %v1826 = vand.u32 %v1825, 4294901760
  %1827 = vmatpush.msra.mxu0 %v1826
  %v1828 = vand.u32 %v142, 4294901760
  %v1829 = vsub.f32 %v142, %v1828
  %v1830 = vand.u32 %v1829, 4294901760
  %v1831 = vsub.f32 %v1829, %v1830
  %v1832 = vand.u32 %v1831, 4294901760
  %1833 = vmatpush.msra.mxu0 %v1832
  %v1834 = vand.u32 %v141, 4294901760
  %v1835 = vsub.f32 %v141, %v1834
  %v1836 = vand.u32 %v1835, 4294901760
  %v1837 = vsub.f32 %v1835, %v1836
  %v1838 = vand.u32 %v1837, 4294901760
  %1839 = vmatpush.msra.mxu0 %v1838
  %v1840 = vand.u32 %v140, 4294901760
  %v1841 = vsub.f32 %v140, %v1840
  %v1842 = vand.u32 %v1841, 4294901760
  %v1843 = vsub.f32 %v1841, %v1842
  %v1844 = vand.u32 %v1843, 4294901760
  %1845 = vmatpush.msra.mxu0 %v1844
  %v1846 = vand.u32 %v139, 4294901760
  %v1847 = vsub.f32 %v139, %v1846
  %v1848 = vand.u32 %v1847, 4294901760
  %v1849 = vsub.f32 %v1847, %v1848
  %v1850 = vand.u32 %v1849, 4294901760
  %1851 = vmatpush.msra.mxu0 %v1850
  %v1852 = vand.u32 %v138, 4294901760
  %v1853 = vsub.f32 %v138, %v1852
  %v1854 = vand.u32 %v1853, 4294901760
  %v1855 = vsub.f32 %v1853, %v1854
  %v1856 = vand.u32 %v1855, 4294901760
  %1857 = vmatpush.msra.mxu0 %v1856
  %v1858 = vand.u32 %v137, 4294901760
  %v1859 = vsub.f32 %v137, %v1858
  %v1860 = vand.u32 %v1859, 4294901760
  %v1861 = vsub.f32 %v1859, %v1860
  %v1862 = vand.u32 %v1861, 4294901760
  %1863 = vmatpush.msra.mxu0 %v1862
  %v1864 = vand.u32 %v136, 4294901760
  %v1865 = vsub.f32 %v136, %v1864
  %v1866 = vand.u32 %v1865, 4294901760
  %v1867 = vsub.f32 %v1865, %v1866
  %v1868 = vand.u32 %v1867, 4294901760
  %1869 = vmatpush.msra.mxu0 %v1868
  %v1870 = vand.u32 %v135, 4294901760
  %v1871 = vsub.f32 %v135, %v1870
  %v1872 = vand.u32 %v1871, 4294901760
  %v1873 = vsub.f32 %v1871, %v1872
  %v1874 = vand.u32 %v1873, 4294901760
  %1875 = vmatpush.msra.mxu0 %v1874
  %v1876 = vand.u32 %v134, 4294901760
  %v1877 = vsub.f32 %v134, %v1876
  %v1878 = vand.u32 %v1877, 4294901760
  %v1879 = vsub.f32 %v1877, %v1878
  %v1880 = vand.u32 %v1879, 4294901760
  %1881 = vmatpush.msra.mxu0 %v1880
  %v1882 = vand.u32 %v133, 4294901760
  %v1883 = vsub.f32 %v133, %v1882
  %v1884 = vand.u32 %v1883, 4294901760
  %v1885 = vsub.f32 %v1883, %v1884
  %v1886 = vand.u32 %v1885, 4294901760
  %1887 = vmatpush.msra.mxu0 %v1886
  %v1888 = vand.u32 %v1687, 4294901760
  %1889 = vmatmul.f32.gmra.mxu0 %v1888
  %v1890 = vpop.f32.mrf.mxu0
  %v1891 = vadd.f32 %v1734, %v1890
  %v1892 = vand.u32 %v1688, 4294901760
  %1893 = vmatmul.f32.gmra.mxu0 %v1892
  %v1894 = vpop.f32.mrf.mxu0
  %v1895 = vadd.f32 %v1742, %v1894
  %v1896 = vand.u32 %v1689, 4294901760
  %1897 = vmatmul.f32.gmra.mxu0 %v1896
  %v1898 = vpop.f32.mrf.mxu0
  %v1899 = vadd.f32 %v1750, %v1898
  %v1900 = vand.u32 %v1690, 4294901760
  %1901 = vmatmul.f32.gmra.mxu0 %v1900
  %v1902 = vpop.f32.mrf.mxu0
  %v1903 = vadd.f32 %v1758, %v1902
  %v1904 = vand.u32 %v1691, 4294901760
  %1905 = vmatmul.f32.gmra.mxu0 %v1904
  %v1906 = vpop.f32.mrf.mxu0
  %v1907 = vadd.f32 %v1766, %v1906
  %v1908 = vand.u32 %v1692, 4294901760
  %1909 = vmatmul.f32.gmra.mxu0 %v1908
  %v1910 = vpop.f32.mrf.mxu0
  %v1911 = vadd.f32 %v1774, %v1910
  %v1912 = vand.u32 %v1693, 4294901760
  %1913 = vmatmul.f32.gmra.mxu0 %v1912
  %v1914 = vpop.f32.mrf.mxu0
  %v1915 = vadd.f32 %v1782, %v1914
  %v1916 = vand.u32 %v1694, 4294901760
  %1917 = vmatmul.f32.gmra.mxu0 %v1916
  %v1918 = vpop.f32.mrf.mxu0
  %v1919 = vadd.f32 %v1790, %v1918
  %1920 = vdwg.mxu0
  %v1921 = vand.u32 %v148, 4294901760
  %v1922 = vsub.f32 %v148, %v1921
  %1923 = vmatpush.msra.mxu0 %v1922
  %v1924 = vand.u32 %v147, 4294901760
  %v1925 = vsub.f32 %v147, %v1924
  %1926 = vmatpush.msra.mxu0 %v1925
  %v1927 = vand.u32 %v146, 4294901760
  %v1928 = vsub.f32 %v146, %v1927
  %1929 = vmatpush.msra.mxu0 %v1928
  %v1930 = vand.u32 %v145, 4294901760
  %v1931 = vsub.f32 %v145, %v1930
  %1932 = vmatpush.msra.mxu0 %v1931
  %v1933 = vand.u32 %v144, 4294901760
  %v1934 = vsub.f32 %v144, %v1933
  %1935 = vmatpush.msra.mxu0 %v1934
  %v1936 = vand.u32 %v143, 4294901760
  %v1937 = vsub.f32 %v143, %v1936
  %1938 = vmatpush.msra.mxu0 %v1937
  %v1939 = vand.u32 %v142, 4294901760
  %v1940 = vsub.f32 %v142, %v1939
  %1941 = vmatpush.msra.mxu0 %v1940
  %v1942 = vand.u32 %v141, 4294901760
  %v1943 = vsub.f32 %v141, %v1942
  %1944 = vmatpush.msra.mxu0 %v1943
  %v1945 = vand.u32 %v140, 4294901760
  %v1946 = vsub.f32 %v140, %v1945
  %1947 = vmatpush.msra.mxu0 %v1946
  %v1948 = vand.u32 %v139, 4294901760
  %v1949 = vsub.f32 %v139, %v1948
  %1950 = vmatpush.msra.mxu0 %v1949
  %v1951 = vand.u32 %v138, 4294901760
  %v1952 = vsub.f32 %v138, %v1951
  %1953 = vmatpush.msra.mxu0 %v1952
  %v1954 = vand.u32 %v137, 4294901760
  %v1955 = vsub.f32 %v137, %v1954
  %1956 = vmatpush.msra.mxu0 %v1955
  %v1957 = vand.u32 %v136, 4294901760
  %v1958 = vsub.f32 %v136, %v1957
  %1959 = vmatpush.msra.mxu0 %v1958
  %v1960 = vand.u32 %v135, 4294901760
  %v1961 = vsub.f32 %v135, %v1960
  %1962 = vmatpush.msra.mxu0 %v1961
  %v1963 = vand.u32 %v134, 4294901760
  %v1964 = vsub.f32 %v134, %v1963
  %1965 = vmatpush.msra.mxu0 %v1964
  %v1966 = vand.u32 %v133, 4294901760
  %v1967 = vsub.f32 %v133, %v1966
  %1968 = vmatpush.msra.mxu0 %v1967
  %v1969 = vand.u32 %v1687, 4294901760
  %v1970 = vsub.f32 %v1687, %v1969
  %1971 = vmatmul.f32.gmra.mxu0 %v1970
  %v1972 = vpop.f32.mrf.mxu0
  %v1973 = vadd.f32 %v1891, %v1972
  %v1974 = vand.u32 %v1688, 4294901760
  %v1975 = vsub.f32 %v1688, %v1974
  %1976 = vmatmul.f32.gmra.mxu0 %v1975
  %v1977 = vpop.f32.mrf.mxu0
  %v1978 = vadd.f32 %v1895, %v1977
  %v1979 = vand.u32 %v1689, 4294901760
  %v1980 = vsub.f32 %v1689, %v1979
  %1981 = vmatmul.f32.gmra.mxu0 %v1980
  %v1982 = vpop.f32.mrf.mxu0
  %v1983 = vadd.f32 %v1899, %v1982
  %v1984 = vand.u32 %v1690, 4294901760
  %v1985 = vsub.f32 %v1690, %v1984
  %1986 = vmatmul.f32.gmra.mxu0 %v1985
  %v1987 = vpop.f32.mrf.mxu0
  %v1988 = vadd.f32 %v1903, %v1987
  %v1989 = vand.u32 %v1691, 4294901760
  %v1990 = vsub.f32 %v1691, %v1989
  %1991 = vmatmul.f32.gmra.mxu0 %v1990
  %v1992 = vpop.f32.mrf.mxu0
  %v1993 = vadd.f32 %v1907, %v1992
  %v1994 = vand.u32 %v1692, 4294901760
  %v1995 = vsub.f32 %v1692, %v1994
  %1996 = vmatmul.f32.gmra.mxu0 %v1995
  %v1997 = vpop.f32.mrf.mxu0
  %v1998 = vadd.f32 %v1911, %v1997
  %v1999 = vand.u32 %v1693, 4294901760
  %v2000 = vsub.f32 %v1693, %v1999
  %2001 = vmatmul.f32.gmra.mxu0 %v2000
  %v2002 = vpop.f32.mrf.mxu0
  %v2003 = vadd.f32 %v1915, %v2002
  %v2004 = vand.u32 %v1694, 4294901760
  %v2005 = vsub.f32 %v1694, %v2004
  %2006 = vmatmul.f32.gmra.mxu0 %v2005
  %v2007 = vpop.f32.mrf.mxu0
  %v2008 = vadd.f32 %v1919, %v2007
  %2009 = vdwg.mxu0
  %v2010 = vand.u32 %v148, 4294901760
  %2011 = vmatpush.msra.mxu0 %v2010
  %v2012 = vand.u32 %v147, 4294901760
  %2013 = vmatpush.msra.mxu0 %v2012
  %v2014 = vand.u32 %v146, 4294901760
  %2015 = vmatpush.msra.mxu0 %v2014
  %v2016 = vand.u32 %v145, 4294901760
  %2017 = vmatpush.msra.mxu0 %v2016
  %v2018 = vand.u32 %v144, 4294901760
  %2019 = vmatpush.msra.mxu0 %v2018
  %v2020 = vand.u32 %v143, 4294901760
  %2021 = vmatpush.msra.mxu0 %v2020
  %v2022 = vand.u32 %v142, 4294901760
  %2023 = vmatpush.msra.mxu0 %v2022
  %v2024 = vand.u32 %v141, 4294901760
  %2025 = vmatpush.msra.mxu0 %v2024
  %v2026 = vand.u32 %v140, 4294901760
  %2027 = vmatpush.msra.mxu0 %v2026
  %v2028 = vand.u32 %v139, 4294901760
  %2029 = vmatpush.msra.mxu0 %v2028
  %v2030 = vand.u32 %v138, 4294901760
  %2031 = vmatpush.msra.mxu0 %v2030
  %v2032 = vand.u32 %v137, 4294901760
  %2033 = vmatpush.msra.mxu0 %v2032
  %v2034 = vand.u32 %v136, 4294901760
  %2035 = vmatpush.msra.mxu0 %v2034
  %v2036 = vand.u32 %v135, 4294901760
  %2037 = vmatpush.msra.mxu0 %v2036
  %v2038 = vand.u32 %v134, 4294901760
  %2039 = vmatpush.msra.mxu0 %v2038
  %v2040 = vand.u32 %v133, 4294901760
  %2041 = vmatpush.msra.mxu0 %v2040
  %v2042 = vand.u32 %v1687, 4294901760
  %v2043 = vsub.f32 %v1687, %v2042
  %v2044 = vand.u32 %v2043, 4294901760
  %2045 = vmatmul.f32.gmra.mxu0 %v2044
  %v2046 = vpop.f32.mrf.mxu0
  %v2047 = vadd.f32 %v1973, %v2046
  %v2048 = vand.u32 %v1688, 4294901760
  %v2049 = vsub.f32 %v1688, %v2048
  %v2050 = vand.u32 %v2049, 4294901760
  %2051 = vmatmul.f32.gmra.mxu0 %v2050
  %v2052 = vpop.f32.mrf.mxu0
  %v2053 = vadd.f32 %v1978, %v2052
  %v2054 = vand.u32 %v1689, 4294901760
  %v2055 = vsub.f32 %v1689, %v2054
  %v2056 = vand.u32 %v2055, 4294901760
  %2057 = vmatmul.f32.gmra.mxu0 %v2056
  %v2058 = vpop.f32.mrf.mxu0
  %v2059 = vadd.f32 %v1983, %v2058
  %v2060 = vand.u32 %v1690, 4294901760
  %v2061 = vsub.f32 %v1690, %v2060
  %v2062 = vand.u32 %v2061, 4294901760
  %2063 = vmatmul.f32.gmra.mxu0 %v2062
  %v2064 = vpop.f32.mrf.mxu0
  %v2065 = vadd.f32 %v1988, %v2064
  %v2066 = vand.u32 %v1691, 4294901760
  %v2067 = vsub.f32 %v1691, %v2066
  %v2068 = vand.u32 %v2067, 4294901760
  %2069 = vmatmul.f32.gmra.mxu0 %v2068
  %v2070 = vpop.f32.mrf.mxu0
  %v2071 = vadd.f32 %v1993, %v2070
  %v2072 = vand.u32 %v1692, 4294901760
  %v2073 = vsub.f32 %v1692, %v2072
  %v2074 = vand.u32 %v2073, 4294901760
  %2075 = vmatmul.f32.gmra.mxu0 %v2074
  %v2076 = vpop.f32.mrf.mxu0
  %v2077 = vadd.f32 %v1998, %v2076
  %v2078 = vand.u32 %v1693, 4294901760
  %v2079 = vsub.f32 %v1693, %v2078
  %v2080 = vand.u32 %v2079, 4294901760
  %2081 = vmatmul.f32.gmra.mxu0 %v2080
  %v2082 = vpop.f32.mrf.mxu0
  %v2083 = vadd.f32 %v2003, %v2082
  %v2084 = vand.u32 %v1694, 4294901760
  %v2085 = vsub.f32 %v1694, %v2084
  %v2086 = vand.u32 %v2085, 4294901760
  %2087 = vmatmul.f32.gmra.mxu0 %v2086
  %v2088 = vpop.f32.mrf.mxu0
  %v2089 = vadd.f32 %v2008, %v2088
  %2090 = vdwg.mxu0
  %v2091 = vand.u32 %v148, 4294901760
  %v2092 = vsub.f32 %v148, %v2091
  %v2093 = vand.u32 %v2092, 4294901760
  %2094 = vmatpush.msra.mxu0 %v2093
  %v2095 = vand.u32 %v147, 4294901760
  %v2096 = vsub.f32 %v147, %v2095
  %v2097 = vand.u32 %v2096, 4294901760
  %2098 = vmatpush.msra.mxu0 %v2097
  %v2099 = vand.u32 %v146, 4294901760
  %v2100 = vsub.f32 %v146, %v2099
  %v2101 = vand.u32 %v2100, 4294901760
  %2102 = vmatpush.msra.mxu0 %v2101
  %v2103 = vand.u32 %v145, 4294901760
  %v2104 = vsub.f32 %v145, %v2103
  %v2105 = vand.u32 %v2104, 4294901760
  %2106 = vmatpush.msra.mxu0 %v2105
  %v2107 = vand.u32 %v144, 4294901760
  %v2108 = vsub.f32 %v144, %v2107
  %v2109 = vand.u32 %v2108, 4294901760
  %2110 = vmatpush.msra.mxu0 %v2109
  %v2111 = vand.u32 %v143, 4294901760
  %v2112 = vsub.f32 %v143, %v2111
  %v2113 = vand.u32 %v2112, 4294901760
  %2114 = vmatpush.msra.mxu0 %v2113
  %v2115 = vand.u32 %v142, 4294901760
  %v2116 = vsub.f32 %v142, %v2115
  %v2117 = vand.u32 %v2116, 4294901760
  %2118 = vmatpush.msra.mxu0 %v2117
  %v2119 = vand.u32 %v141, 4294901760
  %v2120 = vsub.f32 %v141, %v2119
  %v2121 = vand.u32 %v2120, 4294901760
  %2122 = vmatpush.msra.mxu0 %v2121
  %v2123 = vand.u32 %v140, 4294901760
  %v2124 = vsub.f32 %v140, %v2123
  %v2125 = vand.u32 %v2124, 4294901760
  %2126 = vmatpush.msra.mxu0 %v2125
  %v2127 = vand.u32 %v139, 4294901760
  %v2128 = vsub.f32 %v139, %v2127
  %v2129 = vand.u32 %v2128, 4294901760
  %2130 = vmatpush.msra.mxu0 %v2129
  %v2131 = vand.u32 %v138, 4294901760
  %v2132 = vsub.f32 %v138, %v2131
  %v2133 = vand.u32 %v2132, 4294901760
  %2134 = vmatpush.msra.mxu0 %v2133
  %v2135 = vand.u32 %v137, 4294901760
  %v2136 = vsub.f32 %v137, %v2135
  %v2137 = vand.u32 %v2136, 4294901760
  %2138 = vmatpush.msra.mxu0 %v2137
  %v2139 = vand.u32 %v136, 4294901760
  %v2140 = vsub.f32 %v136, %v2139
  %v2141 = vand.u32 %v2140, 4294901760
  %2142 = vmatpush.msra.mxu0 %v2141
  %v2143 = vand.u32 %v135, 4294901760
  %v2144 = vsub.f32 %v135, %v2143
  %v2145 = vand.u32 %v2144, 4294901760
  %2146 = vmatpush.msra.mxu0 %v2145
  %v2147 = vand.u32 %v134, 4294901760
  %v2148 = vsub.f32 %v134, %v2147
  %v2149 = vand.u32 %v2148, 4294901760
  %2150 = vmatpush.msra.mxu0 %v2149
  %v2151 = vand.u32 %v133, 4294901760
  %v2152 = vsub.f32 %v133, %v2151
  %v2153 = vand.u32 %v2152, 4294901760
  %2154 = vmatpush.msra.mxu0 %v2153
  %v2155 = vand.u32 %v1687, 4294901760
  %2156 = vmatmul.f32.gmra.mxu0 %v2155
  %v2157 = vpop.f32.mrf.mxu0
  %v2158 = vadd.f32 %v2047, %v2157
  %v2159 = vand.u32 %v1688, 4294901760
  %2160 = vmatmul.f32.gmra.mxu0 %v2159
  %v2161 = vpop.f32.mrf.mxu0
  %v2162 = vadd.f32 %v2053, %v2161
  %v2163 = vand.u32 %v1689, 4294901760
  %2164 = vmatmul.f32.gmra.mxu0 %v2163
  %v2165 = vpop.f32.mrf.mxu0
  %v2166 = vadd.f32 %v2059, %v2165
  %v2167 = vand.u32 %v1690, 4294901760
  %2168 = vmatmul.f32.gmra.mxu0 %v2167
  %v2169 = vpop.f32.mrf.mxu0
  %v2170 = vadd.f32 %v2065, %v2169
  %v2171 = vand.u32 %v1691, 4294901760
  %2172 = vmatmul.f32.gmra.mxu0 %v2171
  %v2173 = vpop.f32.mrf.mxu0
  %v2174 = vadd.f32 %v2071, %v2173
  %v2175 = vand.u32 %v1692, 4294901760
  %2176 = vmatmul.f32.gmra.mxu0 %v2175
  %v2177 = vpop.f32.mrf.mxu0
  %v2178 = vadd.f32 %v2077, %v2177
  %v2179 = vand.u32 %v1693, 4294901760
  %2180 = vmatmul.f32.gmra.mxu0 %v2179
  %v2181 = vpop.f32.mrf.mxu0
  %v2182 = vadd.f32 %v2083, %v2181
  %v2183 = vand.u32 %v1694, 4294901760
  %2184 = vmatmul.f32.gmra.mxu0 %v2183
  %v2185 = vpop.f32.mrf.mxu0
  %v2186 = vadd.f32 %v2089, %v2185
  %2187 = vdwg.mxu0
  %v2188 = vand.u32 %v148, 4294901760
  %2189 = vmatpush.msra.mxu0 %v2188
  %v2190 = vand.u32 %v147, 4294901760
  %2191 = vmatpush.msra.mxu0 %v2190
  %v2192 = vand.u32 %v146, 4294901760
  %2193 = vmatpush.msra.mxu0 %v2192
  %v2194 = vand.u32 %v145, 4294901760
  %2195 = vmatpush.msra.mxu0 %v2194
  %v2196 = vand.u32 %v144, 4294901760
  %2197 = vmatpush.msra.mxu0 %v2196
  %v2198 = vand.u32 %v143, 4294901760
  %2199 = vmatpush.msra.mxu0 %v2198
  %v2200 = vand.u32 %v142, 4294901760
  %2201 = vmatpush.msra.mxu0 %v2200
  %v2202 = vand.u32 %v141, 4294901760
  %2203 = vmatpush.msra.mxu0 %v2202
  %v2204 = vand.u32 %v140, 4294901760
  %2205 = vmatpush.msra.mxu0 %v2204
  %v2206 = vand.u32 %v139, 4294901760
  %2207 = vmatpush.msra.mxu0 %v2206
  %v2208 = vand.u32 %v138, 4294901760
  %2209 = vmatpush.msra.mxu0 %v2208
  %v2210 = vand.u32 %v137, 4294901760
  %2211 = vmatpush.msra.mxu0 %v2210
  %v2212 = vand.u32 %v136, 4294901760
  %2213 = vmatpush.msra.mxu0 %v2212
  %v2214 = vand.u32 %v135, 4294901760
  %2215 = vmatpush.msra.mxu0 %v2214
  %v2216 = vand.u32 %v134, 4294901760
  %2217 = vmatpush.msra.mxu0 %v2216
  %v2218 = vand.u32 %v133, 4294901760
  %2219 = vmatpush.msra.mxu0 %v2218
  %v2220 = vand.u32 %v1687, 4294901760
  %2221 = vmatmul.f32.gmra.mxu0 %v2220
  %v2222 = vpop.f32.mrf.mxu0
  %v2223 = vadd.f32 %v2158, %v2222
  %v2224 = vand.u32 %v1688, 4294901760
  %2225 = vmatmul.f32.gmra.mxu0 %v2224
  %v2226 = vpop.f32.mrf.mxu0
  %v2227 = vadd.f32 %v2162, %v2226
  %v2228 = vand.u32 %v1689, 4294901760
  %2229 = vmatmul.f32.gmra.mxu0 %v2228
  %v2230 = vpop.f32.mrf.mxu0
  %v2231 = vadd.f32 %v2166, %v2230
  %v2232 = vand.u32 %v1690, 4294901760
  %2233 = vmatmul.f32.gmra.mxu0 %v2232
  %v2234 = vpop.f32.mrf.mxu0
  %v2235 = vadd.f32 %v2170, %v2234
  %v2236 = vand.u32 %v1691, 4294901760
  %2237 = vmatmul.f32.gmra.mxu0 %v2236
  %v2238 = vpop.f32.mrf.mxu0
  %v2239 = vadd.f32 %v2174, %v2238
  %v2240 = vand.u32 %v1692, 4294901760
  %2241 = vmatmul.f32.gmra.mxu0 %v2240
  %v2242 = vpop.f32.mrf.mxu0
  %v2243 = vadd.f32 %v2178, %v2242
  %v2244 = vand.u32 %v1693, 4294901760
  %2245 = vmatmul.f32.gmra.mxu0 %v2244
  %v2246 = vpop.f32.mrf.mxu0
  %v2247 = vadd.f32 %v2182, %v2246
  %v2248 = vand.u32 %v1694, 4294901760
  %2249 = vmatmul.f32.gmra.mxu0 %v2248
  %v2250 = vpop.f32.mrf.mxu0
  %v2251 = vadd.f32 %v2186, %v2250
  %2252 = vdwg.mxu0
  %v2253 = vsub.f32 %v1687, %v2223
  %v2254 = vsub.f32 %v1688, %v2227
  %v2255 = vsub.f32 %v1689, %v2231
  %v2256 = vsub.f32 %v1690, %v2235
  %v2257 = vsub.f32 %v1691, %v2239
  %v2258 = vsub.f32 %v1692, %v2243
  %v2259 = vsub.f32 %v1693, %v2247
  %v2260 = vsub.f32 %v1694, %v2251
  %v2261 = vmul.f32 %v2253, %v2253
  %v2262 = vmul.f32 %v2254, %v2254
  %v2263 = vmul.f32 %v2255, %v2255
  %v2264 = vmul.f32 %v2256, %v2256
  %v2265 = vmul.f32 %v2257, %v2257
  %v2266 = vmul.f32 %v2258, %v2258
  %v2267 = vmul.f32 %v2259, %v2259
  %v2268 = vmul.f32 %v2260, %v2260
  %v2269 = vand.u32 %v148, 4294901760
  %2270 = vmatpush.msra.mxu0 %v2269
  %v2271 = vand.u32 %v147, 4294901760
  %2272 = vmatpush.msra.mxu0 %v2271
  %v2273 = vand.u32 %v146, 4294901760
  %2274 = vmatpush.msra.mxu0 %v2273
  %v2275 = vand.u32 %v145, 4294901760
  %2276 = vmatpush.msra.mxu0 %v2275
  %v2277 = vand.u32 %v144, 4294901760
  %2278 = vmatpush.msra.mxu0 %v2277
  %v2279 = vand.u32 %v143, 4294901760
  %2280 = vmatpush.msra.mxu0 %v2279
  %v2281 = vand.u32 %v142, 4294901760
  %2282 = vmatpush.msra.mxu0 %v2281
  %v2283 = vand.u32 %v141, 4294901760
  %2284 = vmatpush.msra.mxu0 %v2283
  %v2285 = vand.u32 %v140, 4294901760
  %2286 = vmatpush.msra.mxu0 %v2285
  %v2287 = vand.u32 %v139, 4294901760
  %2288 = vmatpush.msra.mxu0 %v2287
  %v2289 = vand.u32 %v138, 4294901760
  %2290 = vmatpush.msra.mxu0 %v2289
  %v2291 = vand.u32 %v137, 4294901760
  %2292 = vmatpush.msra.mxu0 %v2291
  %v2293 = vand.u32 %v136, 4294901760
  %2294 = vmatpush.msra.mxu0 %v2293
  %v2295 = vand.u32 %v135, 4294901760
  %2296 = vmatpush.msra.mxu0 %v2295
  %v2297 = vand.u32 %v134, 4294901760
  %2298 = vmatpush.msra.mxu0 %v2297
  %v2299 = vand.u32 %v133, 4294901760
  %2300 = vmatpush.msra.mxu0 %v2299
  %v2301 = vand.u32 %v2261, 4294901760
  %v2302 = vsub.f32 %v2261, %v2301
  %v2303 = vand.u32 %v2302, 4294901760
  %v2304 = vsub.f32 %v2302, %v2303
  %v2305 = vand.u32 %v2304, 4294901760
  %2306 = vmatmul.f32.gmra.mxu0 %v2305
  %v2307 = vpop.f32.mrf.mxu0
  %v2308 = vadd.f32 1e-05, %v2307
  %v2309 = vand.u32 %v2262, 4294901760
  %v2310 = vsub.f32 %v2262, %v2309
  %v2311 = vand.u32 %v2310, 4294901760
  %v2312 = vsub.f32 %v2310, %v2311
  %v2313 = vand.u32 %v2312, 4294901760
  %2314 = vmatmul.f32.gmra.mxu0 %v2313
  %v2315 = vpop.f32.mrf.mxu0
  %v2316 = vadd.f32 1e-05, %v2315
  %v2317 = vand.u32 %v2263, 4294901760
  %v2318 = vsub.f32 %v2263, %v2317
  %v2319 = vand.u32 %v2318, 4294901760
  %v2320 = vsub.f32 %v2318, %v2319
  %v2321 = vand.u32 %v2320, 4294901760
  %2322 = vmatmul.f32.gmra.mxu0 %v2321
  %v2323 = vpop.f32.mrf.mxu0
  %v2324 = vadd.f32 1e-05, %v2323
  %v2325 = vand.u32 %v2264, 4294901760
  %v2326 = vsub.f32 %v2264, %v2325
  %v2327 = vand.u32 %v2326, 4294901760
  %v2328 = vsub.f32 %v2326, %v2327
  %v2329 = vand.u32 %v2328, 4294901760
  %2330 = vmatmul.f32.gmra.mxu0 %v2329
  %v2331 = vpop.f32.mrf.mxu0
  %v2332 = vadd.f32 1e-05, %v2331
  %v2333 = vand.u32 %v2265, 4294901760
  %v2334 = vsub.f32 %v2265, %v2333
  %v2335 = vand.u32 %v2334, 4294901760
  %v2336 = vsub.f32 %v2334, %v2335
  %v2337 = vand.u32 %v2336, 4294901760
  %2338 = vmatmul.f32.gmra.mxu0 %v2337
  %v2339 = vpop.f32.mrf.mxu0
  %v2340 = vadd.f32 1e-05, %v2339
  %v2341 = vand.u32 %v2266, 4294901760
  %v2342 = vsub.f32 %v2266, %v2341
  %v2343 = vand.u32 %v2342, 4294901760
  %v2344 = vsub.f32 %v2342, %v2343
  %v2345 = vand.u32 %v2344, 4294901760
  %2346 = vmatmul.f32.gmra.mxu0 %v2345
  %v2347 = vpop.f32.mrf.mxu0
  %v2348 = vadd.f32 1e-05, %v2347
  %v2349 = vand.u32 %v2267, 4294901760
  %v2350 = vsub.f32 %v2267, %v2349
  %v2351 = vand.u32 %v2350, 4294901760
  %v2352 = vsub.f32 %v2350, %v2351
  %v2353 = vand.u32 %v2352, 4294901760
  %2354 = vmatmul.f32.gmra.mxu0 %v2353
  %v2355 = vpop.f32.mrf.mxu0
  %v2356 = vadd.f32 1e-05, %v2355
  %v2357 = vand.u32 %v2268, 4294901760
  %v2358 = vsub.f32 %v2268, %v2357
  %v2359 = vand.u32 %v2358, 4294901760
  %v2360 = vsub.f32 %v2358, %v2359
  %v2361 = vand.u32 %v2360, 4294901760
  %2362 = vmatmul.f32.gmra.mxu0 %v2361
  %v2363 = vpop.f32.mrf.mxu0
  %v2364 = vadd.f32 1e-05, %v2363
  %2365 = vdwg.mxu0
  %v2366 = vand.u32 %v148, 4294901760
  %v2367 = vsub.f32 %v148, %v2366
  %v2368 = vand.u32 %v2367, 4294901760
  %v2369 = vsub.f32 %v2367, %v2368
  %v2370 = vand.u32 %v2369, 4294901760
  %2371 = vmatpush.msra.mxu0 %v2370
  %v2372 = vand.u32 %v147, 4294901760
  %v2373 = vsub.f32 %v147, %v2372
  %v2374 = vand.u32 %v2373, 4294901760
  %v2375 = vsub.f32 %v2373, %v2374
  %v2376 = vand.u32 %v2375, 4294901760
  %2377 = vmatpush.msra.mxu0 %v2376
  %v2378 = vand.u32 %v146, 4294901760
  %v2379 = vsub.f32 %v146, %v2378
  %v2380 = vand.u32 %v2379, 4294901760
  %v2381 = vsub.f32 %v2379, %v2380
  %v2382 = vand.u32 %v2381, 4294901760
  %2383 = vmatpush.msra.mxu0 %v2382
  %v2384 = vand.u32 %v145, 4294901760
  %v2385 = vsub.f32 %v145, %v2384
  %v2386 = vand.u32 %v2385, 4294901760
  %v2387 = vsub.f32 %v2385, %v2386
  %v2388 = vand.u32 %v2387, 4294901760
  %2389 = vmatpush.msra.mxu0 %v2388
  %v2390 = vand.u32 %v144, 4294901760
  %v2391 = vsub.f32 %v144, %v2390
  %v2392 = vand.u32 %v2391, 4294901760
  %v2393 = vsub.f32 %v2391, %v2392
  %v2394 = vand.u32 %v2393, 4294901760
  %2395 = vmatpush.msra.mxu0 %v2394
  %v2396 = vand.u32 %v143, 4294901760
  %v2397 = vsub.f32 %v143, %v2396
  %v2398 = vand.u32 %v2397, 4294901760
  %v2399 = vsub.f32 %v2397, %v2398
  %v2400 = vand.u32 %v2399, 4294901760
  %2401 = vmatpush.msra.mxu0 %v2400
  %v2402 = vand.u32 %v142, 4294901760
  %v2403 = vsub.f32 %v142, %v2402
  %v2404 = vand.u32 %v2403, 4294901760
  %v2405 = vsub.f32 %v2403, %v2404
  %v2406 = vand.u32 %v2405, 4294901760
  %2407 = vmatpush.msra.mxu0 %v2406
  %v2408 = vand.u32 %v141, 4294901760
  %v2409 = vsub.f32 %v141, %v2408
  %v2410 = vand.u32 %v2409, 4294901760
  %v2411 = vsub.f32 %v2409, %v2410
  %v2412 = vand.u32 %v2411, 4294901760
  %2413 = vmatpush.msra.mxu0 %v2412
  %v2414 = vand.u32 %v140, 4294901760
  %v2415 = vsub.f32 %v140, %v2414
  %v2416 = vand.u32 %v2415, 4294901760
  %v2417 = vsub.f32 %v2415, %v2416
  %v2418 = vand.u32 %v2417, 4294901760
  %2419 = vmatpush.msra.mxu0 %v2418
  %v2420 = vand.u32 %v139, 4294901760
  %v2421 = vsub.f32 %v139, %v2420
  %v2422 = vand.u32 %v2421, 4294901760
  %v2423 = vsub.f32 %v2421, %v2422
  %v2424 = vand.u32 %v2423, 4294901760
  %2425 = vmatpush.msra.mxu0 %v2424
  %v2426 = vand.u32 %v138, 4294901760
  %v2427 = vsub.f32 %v138, %v2426
  %v2428 = vand.u32 %v2427, 4294901760
  %v2429 = vsub.f32 %v2427, %v2428
  %v2430 = vand.u32 %v2429, 4294901760
  %2431 = vmatpush.msra.mxu0 %v2430
  %v2432 = vand.u32 %v137, 4294901760
  %v2433 = vsub.f32 %v137, %v2432
  %v2434 = vand.u32 %v2433, 4294901760
  %v2435 = vsub.f32 %v2433, %v2434
  %v2436 = vand.u32 %v2435, 4294901760
  %2437 = vmatpush.msra.mxu0 %v2436
  %v2438 = vand.u32 %v136, 4294901760
  %v2439 = vsub.f32 %v136, %v2438
  %v2440 = vand.u32 %v2439, 4294901760
  %v2441 = vsub.f32 %v2439, %v2440
  %v2442 = vand.u32 %v2441, 4294901760
  %2443 = vmatpush.msra.mxu0 %v2442
  %v2444 = vand.u32 %v135, 4294901760
  %v2445 = vsub.f32 %v135, %v2444
  %v2446 = vand.u32 %v2445, 4294901760
  %v2447 = vsub.f32 %v2445, %v2446
  %v2448 = vand.u32 %v2447, 4294901760
  %2449 = vmatpush.msra.mxu0 %v2448
  %v2450 = vand.u32 %v134, 4294901760
  %v2451 = vsub.f32 %v134, %v2450
  %v2452 = vand.u32 %v2451, 4294901760
  %v2453 = vsub.f32 %v2451, %v2452
  %v2454 = vand.u32 %v2453, 4294901760
  %2455 = vmatpush.msra.mxu0 %v2454
  %v2456 = vand.u32 %v133, 4294901760
  %v2457 = vsub.f32 %v133, %v2456
  %v2458 = vand.u32 %v2457, 4294901760
  %v2459 = vsub.f32 %v2457, %v2458
  %v2460 = vand.u32 %v2459, 4294901760
  %2461 = vmatpush.msra.mxu0 %v2460
  %v2462 = vand.u32 %v2261, 4294901760
  %2463 = vmatmul.f32.gmra.mxu0 %v2462
  %v2464 = vpop.f32.mrf.mxu0
  %v2465 = vadd.f32 %v2308, %v2464
  %v2466 = vand.u32 %v2262, 4294901760
  %2467 = vmatmul.f32.gmra.mxu0 %v2466
  %v2468 = vpop.f32.mrf.mxu0
  %v2469 = vadd.f32 %v2316, %v2468
  %v2470 = vand.u32 %v2263, 4294901760
  %2471 = vmatmul.f32.gmra.mxu0 %v2470
  %v2472 = vpop.f32.mrf.mxu0
  %v2473 = vadd.f32 %v2324, %v2472
  %v2474 = vand.u32 %v2264, 4294901760
  %2475 = vmatmul.f32.gmra.mxu0 %v2474
  %v2476 = vpop.f32.mrf.mxu0
  %v2477 = vadd.f32 %v2332, %v2476
  %v2478 = vand.u32 %v2265, 4294901760
  %2479 = vmatmul.f32.gmra.mxu0 %v2478
  %v2480 = vpop.f32.mrf.mxu0
  %v2481 = vadd.f32 %v2340, %v2480
  %v2482 = vand.u32 %v2266, 4294901760
  %2483 = vmatmul.f32.gmra.mxu0 %v2482
  %v2484 = vpop.f32.mrf.mxu0
  %v2485 = vadd.f32 %v2348, %v2484
  %v2486 = vand.u32 %v2267, 4294901760
  %2487 = vmatmul.f32.gmra.mxu0 %v2486
  %v2488 = vpop.f32.mrf.mxu0
  %v2489 = vadd.f32 %v2356, %v2488
  %v2490 = vand.u32 %v2268, 4294901760
  %2491 = vmatmul.f32.gmra.mxu0 %v2490
  %v2492 = vpop.f32.mrf.mxu0
  %v2493 = vadd.f32 %v2364, %v2492
  %2494 = vdwg.mxu0
  %v2495 = vand.u32 %v148, 4294901760
  %v2496 = vsub.f32 %v148, %v2495
  %2497 = vmatpush.msra.mxu0 %v2496
  %v2498 = vand.u32 %v147, 4294901760
  %v2499 = vsub.f32 %v147, %v2498
  %2500 = vmatpush.msra.mxu0 %v2499
  %v2501 = vand.u32 %v146, 4294901760
  %v2502 = vsub.f32 %v146, %v2501
  %2503 = vmatpush.msra.mxu0 %v2502
  %v2504 = vand.u32 %v145, 4294901760
  %v2505 = vsub.f32 %v145, %v2504
  %2506 = vmatpush.msra.mxu0 %v2505
  %v2507 = vand.u32 %v144, 4294901760
  %v2508 = vsub.f32 %v144, %v2507
  %2509 = vmatpush.msra.mxu0 %v2508
  %v2510 = vand.u32 %v143, 4294901760
  %v2511 = vsub.f32 %v143, %v2510
  %2512 = vmatpush.msra.mxu0 %v2511
  %v2513 = vand.u32 %v142, 4294901760
  %v2514 = vsub.f32 %v142, %v2513
  %2515 = vmatpush.msra.mxu0 %v2514
  %v2516 = vand.u32 %v141, 4294901760
  %v2517 = vsub.f32 %v141, %v2516
  %2518 = vmatpush.msra.mxu0 %v2517
  %v2519 = vand.u32 %v140, 4294901760
  %v2520 = vsub.f32 %v140, %v2519
  %2521 = vmatpush.msra.mxu0 %v2520
  %v2522 = vand.u32 %v139, 4294901760
  %v2523 = vsub.f32 %v139, %v2522
  %2524 = vmatpush.msra.mxu0 %v2523
  %v2525 = vand.u32 %v138, 4294901760
  %v2526 = vsub.f32 %v138, %v2525
  %2527 = vmatpush.msra.mxu0 %v2526
  %v2528 = vand.u32 %v137, 4294901760
  %v2529 = vsub.f32 %v137, %v2528
  %2530 = vmatpush.msra.mxu0 %v2529
  %v2531 = vand.u32 %v136, 4294901760
  %v2532 = vsub.f32 %v136, %v2531
  %2533 = vmatpush.msra.mxu0 %v2532
  %v2534 = vand.u32 %v135, 4294901760
  %v2535 = vsub.f32 %v135, %v2534
  %2536 = vmatpush.msra.mxu0 %v2535
  %v2537 = vand.u32 %v134, 4294901760
  %v2538 = vsub.f32 %v134, %v2537
  %2539 = vmatpush.msra.mxu0 %v2538
  %v2540 = vand.u32 %v133, 4294901760
  %v2541 = vsub.f32 %v133, %v2540
  %2542 = vmatpush.msra.mxu0 %v2541
  %v2543 = vand.u32 %v2261, 4294901760
  %v2544 = vsub.f32 %v2261, %v2543
  %2545 = vmatmul.f32.gmra.mxu0 %v2544
  %v2546 = vpop.f32.mrf.mxu0
  %v2547 = vadd.f32 %v2465, %v2546
  %v2548 = vand.u32 %v2262, 4294901760
  %v2549 = vsub.f32 %v2262, %v2548
  %2550 = vmatmul.f32.gmra.mxu0 %v2549
  %v2551 = vpop.f32.mrf.mxu0
  %v2552 = vadd.f32 %v2469, %v2551
  %v2553 = vand.u32 %v2263, 4294901760
  %v2554 = vsub.f32 %v2263, %v2553
  %2555 = vmatmul.f32.gmra.mxu0 %v2554
  %v2556 = vpop.f32.mrf.mxu0
  %v2557 = vadd.f32 %v2473, %v2556
  %v2558 = vand.u32 %v2264, 4294901760
  %v2559 = vsub.f32 %v2264, %v2558
  %2560 = vmatmul.f32.gmra.mxu0 %v2559
  %v2561 = vpop.f32.mrf.mxu0
  %v2562 = vadd.f32 %v2477, %v2561
  %v2563 = vand.u32 %v2265, 4294901760
  %v2564 = vsub.f32 %v2265, %v2563
  %2565 = vmatmul.f32.gmra.mxu0 %v2564
  %v2566 = vpop.f32.mrf.mxu0
  %v2567 = vadd.f32 %v2481, %v2566
  %v2568 = vand.u32 %v2266, 4294901760
  %v2569 = vsub.f32 %v2266, %v2568
  %2570 = vmatmul.f32.gmra.mxu0 %v2569
  %v2571 = vpop.f32.mrf.mxu0
  %v2572 = vadd.f32 %v2485, %v2571
  %v2573 = vand.u32 %v2267, 4294901760
  %v2574 = vsub.f32 %v2267, %v2573
  %2575 = vmatmul.f32.gmra.mxu0 %v2574
  %v2576 = vpop.f32.mrf.mxu0
  %v2577 = vadd.f32 %v2489, %v2576
  %v2578 = vand.u32 %v2268, 4294901760
  %v2579 = vsub.f32 %v2268, %v2578
  %2580 = vmatmul.f32.gmra.mxu0 %v2579
  %v2581 = vpop.f32.mrf.mxu0
  %v2582 = vadd.f32 %v2493, %v2581
  %2583 = vdwg.mxu0
  %v2584 = vand.u32 %v148, 4294901760
  %2585 = vmatpush.msra.mxu0 %v2584
  %v2586 = vand.u32 %v147, 4294901760
  %2587 = vmatpush.msra.mxu0 %v2586
  %v2588 = vand.u32 %v146, 4294901760
  %2589 = vmatpush.msra.mxu0 %v2588
  %v2590 = vand.u32 %v145, 4294901760
  %2591 = vmatpush.msra.mxu0 %v2590
  %v2592 = vand.u32 %v144, 4294901760
  %2593 = vmatpush.msra.mxu0 %v2592
  %v2594 = vand.u32 %v143, 4294901760
  %2595 = vmatpush.msra.mxu0 %v2594
  %v2596 = vand.u32 %v142, 4294901760
  %2597 = vmatpush.msra.mxu0 %v2596
  %v2598 = vand.u32 %v141, 4294901760
  %2599 = vmatpush.msra.mxu0 %v2598
  %v2600 = vand.u32 %v140, 4294901760
  %2601 = vmatpush.msra.mxu0 %v2600
  %v2602 = vand.u32 %v139, 4294901760
  %2603 = vmatpush.msra.mxu0 %v2602
  %v2604 = vand.u32 %v138, 4294901760
  %2605 = vmatpush.msra.mxu0 %v2604
  %v2606 = vand.u32 %v137, 4294901760
  %2607 = vmatpush.msra.mxu0 %v2606
  %v2608 = vand.u32 %v136, 4294901760
  %2609 = vmatpush.msra.mxu0 %v2608
  %v2610 = vand.u32 %v135, 4294901760
  %2611 = vmatpush.msra.mxu0 %v2610
  %v2612 = vand.u32 %v134, 4294901760
  %2613 = vmatpush.msra.mxu0 %v2612
  %v2614 = vand.u32 %v133, 4294901760
  %2615 = vmatpush.msra.mxu0 %v2614
  %v2616 = vand.u32 %v2261, 4294901760
  %v2617 = vsub.f32 %v2261, %v2616
  %v2618 = vand.u32 %v2617, 4294901760
  %2619 = vmatmul.f32.gmra.mxu0 %v2618
  %v2620 = vpop.f32.mrf.mxu0
  %v2621 = vadd.f32 %v2547, %v2620
  %v2622 = vand.u32 %v2262, 4294901760
  %v2623 = vsub.f32 %v2262, %v2622
  %v2624 = vand.u32 %v2623, 4294901760
  %2625 = vmatmul.f32.gmra.mxu0 %v2624
  %v2626 = vpop.f32.mrf.mxu0
  %v2627 = vadd.f32 %v2552, %v2626
  %v2628 = vand.u32 %v2263, 4294901760
  %v2629 = vsub.f32 %v2263, %v2628
  %v2630 = vand.u32 %v2629, 4294901760
  %2631 = vmatmul.f32.gmra.mxu0 %v2630
  %v2632 = vpop.f32.mrf.mxu0
  %v2633 = vadd.f32 %v2557, %v2632
  %v2634 = vand.u32 %v2264, 4294901760
  %v2635 = vsub.f32 %v2264, %v2634
  %v2636 = vand.u32 %v2635, 4294901760
  %2637 = vmatmul.f32.gmra.mxu0 %v2636
  %v2638 = vpop.f32.mrf.mxu0
  %v2639 = vadd.f32 %v2562, %v2638
  %v2640 = vand.u32 %v2265, 4294901760
  %v2641 = vsub.f32 %v2265, %v2640
  %v2642 = vand.u32 %v2641, 4294901760
  %2643 = vmatmul.f32.gmra.mxu0 %v2642
  %v2644 = vpop.f32.mrf.mxu0
  %v2645 = vadd.f32 %v2567, %v2644
  %v2646 = vand.u32 %v2266, 4294901760
  %v2647 = vsub.f32 %v2266, %v2646
  %v2648 = vand.u32 %v2647, 4294901760
  %2649 = vmatmul.f32.gmra.mxu0 %v2648
  %v2650 = vpop.f32.mrf.mxu0
  %v2651 = vadd.f32 %v2572, %v2650
  %v2652 = vand.u32 %v2267, 4294901760
  %v2653 = vsub.f32 %v2267, %v2652
  %v2654 = vand.u32 %v2653, 4294901760
  %2655 = vmatmul.f32.gmra.mxu0 %v2654
  %v2656 = vpop.f32.mrf.mxu0
  %v2657 = vadd.f32 %v2577, %v2656
  %v2658 = vand.u32 %v2268, 4294901760
  %v2659 = vsub.f32 %v2268, %v2658
  %v2660 = vand.u32 %v2659, 4294901760
  %2661 = vmatmul.f32.gmra.mxu0 %v2660
  %v2662 = vpop.f32.mrf.mxu0
  %v2663 = vadd.f32 %v2582, %v2662
  %2664 = vdwg.mxu0
  %v2665 = vand.u32 %v148, 4294901760
  %v2666 = vsub.f32 %v148, %v2665
  %v2667 = vand.u32 %v2666, 4294901760
  %2668 = vmatpush.msra.mxu0 %v2667
  %v2669 = vand.u32 %v147, 4294901760
  %v2670 = vsub.f32 %v147, %v2669
  %v2671 = vand.u32 %v2670, 4294901760
  %2672 = vmatpush.msra.mxu0 %v2671
  %v2673 = vand.u32 %v146, 4294901760
  %v2674 = vsub.f32 %v146, %v2673
  %v2675 = vand.u32 %v2674, 4294901760
  %2676 = vmatpush.msra.mxu0 %v2675
  %v2677 = vand.u32 %v145, 4294901760
  %v2678 = vsub.f32 %v145, %v2677
  %v2679 = vand.u32 %v2678, 4294901760
  %2680 = vmatpush.msra.mxu0 %v2679
  %v2681 = vand.u32 %v144, 4294901760
  %v2682 = vsub.f32 %v144, %v2681
  %v2683 = vand.u32 %v2682, 4294901760
  %2684 = vmatpush.msra.mxu0 %v2683
  %v2685 = vand.u32 %v143, 4294901760
  %v2686 = vsub.f32 %v143, %v2685
  %v2687 = vand.u32 %v2686, 4294901760
  %2688 = vmatpush.msra.mxu0 %v2687
  %v2689 = vand.u32 %v142, 4294901760
  %v2690 = vsub.f32 %v142, %v2689
  %v2691 = vand.u32 %v2690, 4294901760
  %2692 = vmatpush.msra.mxu0 %v2691
  %v2693 = vand.u32 %v141, 4294901760
  %v2694 = vsub.f32 %v141, %v2693
  %v2695 = vand.u32 %v2694, 4294901760
  %2696 = vmatpush.msra.mxu0 %v2695
  %v2697 = vand.u32 %v140, 4294901760
  %v2698 = vsub.f32 %v140, %v2697
  %v2699 = vand.u32 %v2698, 4294901760
  %2700 = vmatpush.msra.mxu0 %v2699
  %v2701 = vand.u32 %v139, 4294901760
  %v2702 = vsub.f32 %v139, %v2701
  %v2703 = vand.u32 %v2702, 4294901760
  %2704 = vmatpush.msra.mxu0 %v2703
  %v2705 = vand.u32 %v138, 4294901760
  %v2706 = vsub.f32 %v138, %v2705
  %v2707 = vand.u32 %v2706, 4294901760
  %2708 = vmatpush.msra.mxu0 %v2707
  %v2709 = vand.u32 %v137, 4294901760
  %v2710 = vsub.f32 %v137, %v2709
  %v2711 = vand.u32 %v2710, 4294901760
  %2712 = vmatpush.msra.mxu0 %v2711
  %v2713 = vand.u32 %v136, 4294901760
  %v2714 = vsub.f32 %v136, %v2713
  %v2715 = vand.u32 %v2714, 4294901760
  %2716 = vmatpush.msra.mxu0 %v2715
  %v2717 = vand.u32 %v135, 4294901760
  %v2718 = vsub.f32 %v135, %v2717
  %v2719 = vand.u32 %v2718, 4294901760
  %2720 = vmatpush.msra.mxu0 %v2719
  %v2721 = vand.u32 %v134, 4294901760
  %v2722 = vsub.f32 %v134, %v2721
  %v2723 = vand.u32 %v2722, 4294901760
  %2724 = vmatpush.msra.mxu0 %v2723
  %v2725 = vand.u32 %v133, 4294901760
  %v2726 = vsub.f32 %v133, %v2725
  %v2727 = vand.u32 %v2726, 4294901760
  %2728 = vmatpush.msra.mxu0 %v2727
  %v2729 = vand.u32 %v2261, 4294901760
  %2730 = vmatmul.f32.gmra.mxu0 %v2729
  %v2731 = vpop.f32.mrf.mxu0
  %v2732 = vadd.f32 %v2621, %v2731
  %v2733 = vand.u32 %v2262, 4294901760
  %2734 = vmatmul.f32.gmra.mxu0 %v2733
  %v2735 = vpop.f32.mrf.mxu0
  %v2736 = vadd.f32 %v2627, %v2735
  %v2737 = vand.u32 %v2263, 4294901760
  %2738 = vmatmul.f32.gmra.mxu0 %v2737
  %v2739 = vpop.f32.mrf.mxu0
  %v2740 = vadd.f32 %v2633, %v2739
  %v2741 = vand.u32 %v2264, 4294901760
  %2742 = vmatmul.f32.gmra.mxu0 %v2741
  %v2743 = vpop.f32.mrf.mxu0
  %v2744 = vadd.f32 %v2639, %v2743
  %v2745 = vand.u32 %v2265, 4294901760
  %2746 = vmatmul.f32.gmra.mxu0 %v2745
  %v2747 = vpop.f32.mrf.mxu0
  %v2748 = vadd.f32 %v2645, %v2747
  %v2749 = vand.u32 %v2266, 4294901760
  %2750 = vmatmul.f32.gmra.mxu0 %v2749
  %v2751 = vpop.f32.mrf.mxu0
  %v2752 = vadd.f32 %v2651, %v2751
  %v2753 = vand.u32 %v2267, 4294901760
  %2754 = vmatmul.f32.gmra.mxu0 %v2753
  %v2755 = vpop.f32.mrf.mxu0
  %v2756 = vadd.f32 %v2657, %v2755
  %v2757 = vand.u32 %v2268, 4294901760
  %2758 = vmatmul.f32.gmra.mxu0 %v2757
  %v2759 = vpop.f32.mrf.mxu0
  %v2760 = vadd.f32 %v2663, %v2759
  %2761 = vdwg.mxu0
  %v2762 = vand.u32 %v148, 4294901760
  %2763 = vmatpush.msra.mxu0 %v2762
  %v2764 = vand.u32 %v147, 4294901760
  %2765 = vmatpush.msra.mxu0 %v2764
  %v2766 = vand.u32 %v146, 4294901760
  %2767 = vmatpush.msra.mxu0 %v2766
  %v2768 = vand.u32 %v145, 4294901760
  %2769 = vmatpush.msra.mxu0 %v2768
  %v2770 = vand.u32 %v144, 4294901760
  %2771 = vmatpush.msra.mxu0 %v2770
  %v2772 = vand.u32 %v143, 4294901760
  %2773 = vmatpush.msra.mxu0 %v2772
  %v2774 = vand.u32 %v142, 4294901760
  %2775 = vmatpush.msra.mxu0 %v2774
  %v2776 = vand.u32 %v141, 4294901760
  %2777 = vmatpush.msra.mxu0 %v2776
  %v2778 = vand.u32 %v140, 4294901760
  %2779 = vmatpush.msra.mxu0 %v2778
  %v2780 = vand.u32 %v139, 4294901760
  %2781 = vmatpush.msra.mxu0 %v2780
  %v2782 = vand.u32 %v138, 4294901760
  %2783 = vmatpush.msra.mxu0 %v2782
  %v2784 = vand.u32 %v137, 4294901760
  %2785 = vmatpush.msra.mxu0 %v2784
  %v2786 = vand.u32 %v136, 4294901760
  %2787 = vmatpush.msra.mxu0 %v2786
  %v2788 = vand.u32 %v135, 4294901760
  %2789 = vmatpush.msra.mxu0 %v2788
  %v2790 = vand.u32 %v134, 4294901760
  %2791 = vmatpush.msra.mxu0 %v2790
  %v2792 = vand.u32 %v133, 4294901760
  %2793 = vmatpush.msra.mxu0 %v2792
  %v2794 = vand.u32 %v2261, 4294901760
  %2795 = vmatmul.f32.gmra.mxu0 %v2794
  %v2796 = vpop.f32.mrf.mxu0
  %v2797 = vadd.f32 %v2732, %v2796
  %v2798 = vand.u32 %v2262, 4294901760
  %2799 = vmatmul.f32.gmra.mxu0 %v2798
  %v2800 = vpop.f32.mrf.mxu0
  %v2801 = vadd.f32 %v2736, %v2800
  %v2802 = vand.u32 %v2263, 4294901760
  %2803 = vmatmul.f32.gmra.mxu0 %v2802
  %v2804 = vpop.f32.mrf.mxu0
  %v2805 = vadd.f32 %v2740, %v2804
  %v2806 = vand.u32 %v2264, 4294901760
  %2807 = vmatmul.f32.gmra.mxu0 %v2806
  %v2808 = vpop.f32.mrf.mxu0
  %v2809 = vadd.f32 %v2744, %v2808
  %v2810 = vand.u32 %v2265, 4294901760
  %2811 = vmatmul.f32.gmra.mxu0 %v2810
  %v2812 = vpop.f32.mrf.mxu0
  %v2813 = vadd.f32 %v2748, %v2812
  %v2814 = vand.u32 %v2266, 4294901760
  %2815 = vmatmul.f32.gmra.mxu0 %v2814
  %v2816 = vpop.f32.mrf.mxu0
  %v2817 = vadd.f32 %v2752, %v2816
  %v2818 = vand.u32 %v2267, 4294901760
  %2819 = vmatmul.f32.gmra.mxu0 %v2818
  %v2820 = vpop.f32.mrf.mxu0
  %v2821 = vadd.f32 %v2756, %v2820
  %v2822 = vand.u32 %v2268, 4294901760
  %2823 = vmatmul.f32.gmra.mxu0 %v2822
  %v2824 = vpop.f32.mrf.mxu0
  %v2825 = vadd.f32 %v2760, %v2824
  %2826 = vdwg.mxu0
  %v2827 = vrsqrt.pop %v2797
  %v2828 = vmul.f32 %v2827, %v2797
  %v2829 = vmul.f32 %v2828, %v2827
  %v2830 = vmul.f32 0.5, %v2829
  %v2831 = vsub.f32 1.5, %v2830
  %v2832 = vmul.f32 %v2827, %v2831
  %vm2833 = vweird.f32 %v2797
  %vm2834 = vweird.f32 %v2827
  %vm2835 = vmor %vm2833, %vm2834
  %v2836 = vsel %vm2835, %v2827, %v2832
  %v2837 = vrsqrt.pop %v2801
  %v2838 = vmul.f32 %v2837, %v2801
  %v2839 = vmul.f32 %v2838, %v2837
  %v2840 = vmul.f32 0.5, %v2839
  %v2841 = vsub.f32 1.5, %v2840
  %v2842 = vmul.f32 %v2837, %v2841
  %vm2843 = vweird.f32 %v2801
  %vm2844 = vweird.f32 %v2837
  %vm2845 = vmor %vm2843, %vm2844
  %v2846 = vsel %vm2845, %v2837, %v2842
  %v2847 = vrsqrt.pop %v2805
  %v2848 = vmul.f32 %v2847, %v2805
  %v2849 = vmul.f32 %v2848, %v2847
  %v2850 = vmul.f32 0.5, %v2849
  %v2851 = vsub.f32 1.5, %v2850
  %v2852 = vmul.f32 %v2847, %v2851
  %vm2853 = vweird.f32 %v2805
  %vm2854 = vweird.f32 %v2847
  %vm2855 = vmor %vm2853, %vm2854
  %v2856 = vsel %vm2855, %v2847, %v2852
  %v2857 = vrsqrt.pop %v2809
  %v2858 = vmul.f32 %v2857, %v2809
  %v2859 = vmul.f32 %v2858, %v2857
  %v2860 = vmul.f32 0.5, %v2859
  %v2861 = vsub.f32 1.5, %v2860
  %v2862 = vmul.f32 %v2857, %v2861
  %vm2863 = vweird.f32 %v2809
  %vm2864 = vweird.f32 %v2857
  %vm2865 = vmor %vm2863, %vm2864
  %v2866 = vsel %vm2865, %v2857, %v2862
  %v2867 = vrsqrt.pop %v2813
  %v2868 = vmul.f32 %v2867, %v2813
  %v2869 = vmul.f32 %v2868, %v2867
  %v2870 = vmul.f32 0.5, %v2869
  %v2871 = vsub.f32 1.5, %v2870
  %v2872 = vmul.f32 %v2867, %v2871
  %vm2873 = vweird.f32 %v2813
  %vm2874 = vweird.f32 %v2867
  %vm2875 = vmor %vm2873, %vm2874
  %v2876 = vsel %vm2875, %v2867, %v2872
  %v2877 = vrsqrt.pop %v2817
  %v2878 = vmul.f32 %v2877, %v2817
  %v2879 = vmul.f32 %v2878, %v2877
  %v2880 = vmul.f32 0.5, %v2879
  %v2881 = vsub.f32 1.5, %v2880
  %v2882 = vmul.f32 %v2877, %v2881
  %vm2883 = vweird.f32 %v2817
  %vm2884 = vweird.f32 %v2877
  %vm2885 = vmor %vm2883, %vm2884
  %v2886 = vsel %vm2885, %v2877, %v2882
  %v2887 = vrsqrt.pop %v2821
  %v2888 = vmul.f32 %v2887, %v2821
  %v2889 = vmul.f32 %v2888, %v2887
  %v2890 = vmul.f32 0.5, %v2889
  %v2891 = vsub.f32 1.5, %v2890
  %v2892 = vmul.f32 %v2887, %v2891
  %vm2893 = vweird.f32 %v2821
  %vm2894 = vweird.f32 %v2887
  %vm2895 = vmor %vm2893, %vm2894
  %v2896 = vsel %vm2895, %v2887, %v2892
  %v2897 = vrsqrt.pop %v2825
  %v2898 = vmul.f32 %v2897, %v2825
  %v2899 = vmul.f32 %v2898, %v2897
  %v2900 = vmul.f32 0.5, %v2899
  %v2901 = vsub.f32 1.5, %v2900
  %v2902 = vmul.f32 %v2897, %v2901
  %vm2903 = vweird.f32 %v2825
  %vm2904 = vweird.f32 %v2897
  %vm2905 = vmor %vm2903, %vm2904
  %v2906 = vsel %vm2905, %v2897, %v2902
  %v2907 = vmul.f32 %v2253, %v2836
  %v2908 = vmul.f32 %v2254, %v2846
  %v2909 = vmul.f32 %v2255, %v2856
  %v2910 = vmul.f32 %v2256, %v2866
  %v2911 = vmul.f32 %v2257, %v2876
  %v2912 = vmul.f32 %v2258, %v2886
  %v2913 = vmul.f32 %v2259, %v2896
  %v2914 = vmul.f32 %v2260, %v2906
  %v2915 = vld [vmem:[%s11] sm:$0x1]
  %v2917 = vperm.slane %v2915, 0
  %v2919 = vmul.f32 %v2907, %v2917
  %v2920 = vmul.f32 %v2908, %v2917
  %v2921 = vmul.f32 %v2909, %v2917
  %v2922 = vmul.f32 %v2910, %v2917
  %v2923 = vmul.f32 %v2911, %v2917
  %v2924 = vmul.f32 %v2912, %v2917
  %v2925 = vmul.f32 %v2913, %v2917
  %v2926 = vmul.f32 %v2914, %v2917
  %v2927 = vld [vmem:[%s12] sm:$0x1]
  %v2929 = vperm.slane %v2927, 0
  %v2931 = vadd.f32 %v2919, %v2929
  %v2932 = vadd.f32 %v2920, %v2929
  %v2933 = vadd.f32 %v2921, %v2929
  %v2934 = vadd.f32 %v2922, %v2929
  %v2935 = vadd.f32 %v2923, %v2929
  %v2936 = vadd.f32 %v2924, %v2929
  %v2937 = vadd.f32 %v2925, %v2929
  %v2938 = vadd.f32 %v2926, %v2929
  %v2939 = vmax.f32 %v2931, 0.0
  %v2940 = vmax.f32 %v2932, 0.0
  %v2941 = vmax.f32 %v2933, 0.0
  %v2942 = vmax.f32 %v2934, 0.0
  %v2943 = vmax.f32 %v2935, 0.0
  %v2944 = vmax.f32 %v2936, 0.0
  %v2945 = vmax.f32 %v2937, 0.0
  %v2946 = vmax.f32 %v2938, 0.0
  %v2947 = vmul.f32 %v2939, %v110
  %v2948 = vmul.f32 %v2940, %v113
  %v2949 = vmul.f32 %v2941, %v116
  %v2950 = vmul.f32 %v2942, %v119
  %v2951 = vmul.f32 %v2943, %v122
  %v2952 = vmul.f32 %v2944, %v125
  %v2953 = vmul.f32 %v2945, %v128
  %v2954 = vmul.f32 %v2946, %v131
  %v2955 = vrot.slane %v2947, 4
  %v2956 = vmax.f32 %v2947, %v2955
  %v2957 = vrot.slane %v2956, 2
  %v2958 = vmax.f32 %v2956, %v2957
  %v2959 = vrot.slane %v2958, 1
  %v2960 = vmax.f32 %v2958, %v2959
  %v2961 = vrot.slane %v2948, 4
  %v2962 = vmax.f32 %v2948, %v2961
  %v2963 = vrot.slane %v2962, 2
  %v2964 = vmax.f32 %v2962, %v2963
  %v2965 = vrot.slane %v2964, 1
  %v2966 = vmax.f32 %v2964, %v2965
  %v2967 = vrot.slane %v2949, 4
  %v2968 = vmax.f32 %v2949, %v2967
  %v2969 = vrot.slane %v2968, 2
  %v2970 = vmax.f32 %v2968, %v2969
  %v2971 = vrot.slane %v2970, 1
  %v2972 = vmax.f32 %v2970, %v2971
  %v2973 = vrot.slane %v2950, 4
  %v2974 = vmax.f32 %v2950, %v2973
  %v2975 = vrot.slane %v2974, 2
  %v2976 = vmax.f32 %v2974, %v2975
  %v2977 = vrot.slane %v2976, 1
  %v2978 = vmax.f32 %v2976, %v2977
  %v2979 = vrot.slane %v2951, 4
  %v2980 = vmax.f32 %v2951, %v2979
  %v2981 = vrot.slane %v2980, 2
  %v2982 = vmax.f32 %v2980, %v2981
  %v2983 = vrot.slane %v2982, 1
  %v2984 = vmax.f32 %v2982, %v2983
  %v2985 = vrot.slane %v2952, 4
  %v2986 = vmax.f32 %v2952, %v2985
  %v2987 = vrot.slane %v2986, 2
  %v2988 = vmax.f32 %v2986, %v2987
  %v2989 = vrot.slane %v2988, 1
  %v2990 = vmax.f32 %v2988, %v2989
  %v2991 = vrot.slane %v2953, 4
  %v2992 = vmax.f32 %v2953, %v2991
  %v2993 = vrot.slane %v2992, 2
  %v2994 = vmax.f32 %v2992, %v2993
  %v2995 = vrot.slane %v2994, 1
  %v2996 = vmax.f32 %v2994, %v2995
  %v2997 = vrot.slane %v2954, 4
  %v2998 = vmax.f32 %v2954, %v2997
  %v2999 = vrot.slane %v2998, 2
  %v3000 = vmax.f32 %v2998, %v2999
  %v3001 = vrot.slane %v3000, 1
  %v3002 = vmax.f32 %v3000, %v3001
  %v3003 = vrot.slane %v2939, 4
  %v3004 = vmax.f32 %v2939, %v3003
  %v3005 = vrot.slane %v3004, 2
  %v3006 = vmax.f32 %v3004, %v3005
  %v3007 = vrot.slane %v3006, 1
  %v3008 = vmax.f32 %v3006, %v3007
  %v3009 = vrot.slane %v2940, 4
  %v3010 = vmax.f32 %v2940, %v3009
  %v3011 = vrot.slane %v3010, 2
  %v3012 = vmax.f32 %v3010, %v3011
  %v3013 = vrot.slane %v3012, 1
  %v3014 = vmax.f32 %v3012, %v3013
  %v3015 = vrot.slane %v2941, 4
  %v3016 = vmax.f32 %v2941, %v3015
  %v3017 = vrot.slane %v3016, 2
  %v3018 = vmax.f32 %v3016, %v3017
  %v3019 = vrot.slane %v3018, 1
  %v3020 = vmax.f32 %v3018, %v3019
  %v3021 = vrot.slane %v2942, 4
  %v3022 = vmax.f32 %v2942, %v3021
  %v3023 = vrot.slane %v3022, 2
  %v3024 = vmax.f32 %v3022, %v3023
  %v3025 = vrot.slane %v3024, 1
  %v3026 = vmax.f32 %v3024, %v3025
  %v3027 = vrot.slane %v2943, 4
  %v3028 = vmax.f32 %v2943, %v3027
  %v3029 = vrot.slane %v3028, 2
  %v3030 = vmax.f32 %v3028, %v3029
  %v3031 = vrot.slane %v3030, 1
  %v3032 = vmax.f32 %v3030, %v3031
  %v3033 = vrot.slane %v2944, 4
  %v3034 = vmax.f32 %v2944, %v3033
  %v3035 = vrot.slane %v3034, 2
  %v3036 = vmax.f32 %v3034, %v3035
  %v3037 = vrot.slane %v3036, 1
  %v3038 = vmax.f32 %v3036, %v3037
  %v3039 = vrot.slane %v2945, 4
  %v3040 = vmax.f32 %v2945, %v3039
  %v3041 = vrot.slane %v3040, 2
  %v3042 = vmax.f32 %v3040, %v3041
  %v3043 = vrot.slane %v3042, 1
  %v3044 = vmax.f32 %v3042, %v3043
  %v3045 = vrot.slane %v2946, 4
  %v3046 = vmax.f32 %v2946, %v3045
  %v3047 = vrot.slane %v3046, 2
  %v3048 = vmax.f32 %v3046, %v3047
  %v3049 = vrot.slane %v3048, 1
  %v3050 = vmax.f32 %v3048, %v3049
  %v3059 = vsel %vm1616, %v3014, %v3008
  %v3060 = vsel %vm1618, %v3020, %v3059
  %v3061 = vsel %vm1620, %v3026, %v3060
  %v3062 = vsel %vm1622, %v3032, %v3061
  %v3063 = vsel %vm1624, %v3038, %v3062
  %v3064 = vsel %vm1626, %v3044, %v3063
  %v3065 = vsel %vm1628, %v3050, %v3064
  %3067 = vst [vmem:[%s13] sm:$0xff] %v3065
  %v3076 = vsel %vm1616, %v2966, %v2960
  %v3077 = vsel %vm1618, %v2972, %v3076
  %v3078 = vsel %vm1620, %v2978, %v3077
  %v3079 = vsel %vm1622, %v2984, %v3078
  %v3080 = vsel %vm1624, %v2990, %v3079
  %v3081 = vsel %vm1626, %v2996, %v3080
  %v3082 = vsel %vm1628, %v3002, %v3081
  %3084 = vst [vmem:[%s14] sm:$0xff] %v3082
  // Predicated region
  $region54: #{agent_vec_encoder.1} parent=0 // pred_check
    _
  $region55: #{agent_vec_encoder.1} parent=0 // pred_check_branch
    %3086 = sbr.rel (0) target = $region57
  $region56: #{agent_vec_encoder.1} parent=0 // pred_region
    _
  $region57: #{agent_vec_encoder.1} parent=0 // pred_fallthru
    _
  // Predicated region
  $region58: #{agent_vec_encoder.1} parent=0 // pred_check
    _
  $region59: #{agent_vec_encoder.1} parent=0 // pred_check_branch
    %3088 = sbr.rel (0) target = $region61
  $region60: #{agent_vec_encoder.1} parent=0 // pred_region
    _
  $region61: #{agent_vec_encoder.1} parent=0 // pred_fallthru
    _
  // Predicated region
  $region62: #{agent_vec_encoder.1} parent=0 // pred_check
    _
  $region63: #{agent_vec_encoder.1} parent=0 // pred_check_branch
    %3090 = sbr.rel (0) target = $region65
  $region64: #{agent_vec_encoder.1} parent=0 // pred_region
    _
  $region65: #{agent_vec_encoder.1} parent=0 // pred_fallthru
    _
  // Predicated region
  $region66: #{agent_vec_encoder.1} parent=0 // pred_check
    _
  $region67: #{agent_vec_encoder.1} parent=0 // pred_check_branch
    %3092 = sbr.rel (0) target = $region69
  $region68: #{agent_vec_encoder.1} parent=0 // pred_region
    _
  $region69: #{agent_vec_encoder.1} parent=0 // pred_fallthru
    _

</llo_original>
